<compile_context>
chip_gen: v7x
topology: tpu7x:2x2x1
jax: 0.10.0
libtpu: 0.0.40
codegen_flags: <defaults>
</compile_context>

<pallas_src>
import functools

import numpy as np
import jax
import jax.numpy as jnp
from jax.experimental import pallas as pl
from jax.experimental.pallas import tpu as pltpu


_VMEM = pl.BlockSpec(memory_space=pltpu.MemorySpace.VMEM)
_BN_EPS = 1e-5


# -----------------------------------------------------------------------------
# Fused Pallas kernel: LFLB1 -> LFLB2 -> LSTM -> mean(t) -> Linear
# -----------------------------------------------------------------------------
def _bn_scale_shift(z, gamma, beta, n_rows):
    """Training-mode BatchNorm over all rows of z (rows == all conv output positions)."""
    inv_n = 1.0 / float(n_rows)
    s = jnp.sum(z, axis=0, keepdims=True)
    s2 = jnp.sum(z * z, axis=0, keepdims=True)
    mean = s * inv_n
    var = jnp.maximum(s2 * inv_n - mean * mean, 0.0)   # clamp: cancellation safety
    scale = gamma * jax.lax.rsqrt(var + _BN_EPS)
    shift = beta - mean * scale
    return scale, shift


def fused_cnn_lstm_kernel(patches1_ref, w1_ref, g1_ref, be1_ref,
                          s2cat_ref, w2_ref, g2_ref, be2_ref,
                          qcat_ref, wih_ref, whh_ref, bias_ref,
                          wc_ref, bc_ref,
                          logits_ref,
                          y2_ref, xa_ref):
    """patches1: (4*N1, Cin*9) layer-1 im2col, pool-offset outermost on rows.
    w1: (Cin*9, C1); g1/be1: (1, C1).
    s2cat: (4*N2, 9*N1) concatenated 0/1 selection matrices (layer-2 conv taps + padding),
           columns ordered (tap k, layer-1 row r1).
    w2: (9, C1, C2) per-tap conv weights; g2/be2: (1, C2).
    qcat: (T*B, F2*N2) concatenated 0/1 gather matrices (LSTM input layout),
          columns ordered (f2, layer-2 row n2);  wih: (F2, C2, 4H).
    whh: (H, 4H); bias: (1, 4H) (b_ih + b_hh, gates concatenated [i|f|g|o]).
    wc: (H, num_labels); bc: (1, num_labels).  logits: (B, num_labels).
    Scratch: y2 (9*N1, C2) tap products; xa (F2*N2, 4H) per-f2 input projections."""
    n1x4 = patches1_ref.shape[0]
    n1 = n1x4 // 4
    n2x4 = s2cat_ref.shape[0]
    n2 = n2x4 // 4
    f2_cnt = wih_ref.shape[0]
    tb = qcat_ref.shape[0]
    four_h = whh_ref.shape[1]
    H = four_h // 4
    B = logits_ref.shape[0]
    T = tb // B

    # ---------------- LFLB 1: conv(3x3, no bias) + BN(train) + ReLU + maxpool(2x2) ------
    z1 = jnp.dot(patches1_ref[...], w1_ref[...], preferred_element_type=jnp.float32)
    sc1, sh1 = _bn_scale_shift(z1, g1_ref[...], be1_ref[...], n1x4)
    a1 = jnp.maximum(z1 * sc1 + sh1, 0.0)
    act1 = jnp.maximum(jnp.maximum(a1[0 * n1:1 * n1], a1[1 * n1:2 * n1]),
                       jnp.maximum(a1[2 * n1:3 * n1], a1[3 * n1:4 * n1]))   # (N1, C1)

    # ---------------- LFLB 2: 9 tap matmuls -> scratch, ONE merged selection matmul -----
    for k in range(9):
        y2_ref[k * n1:(k + 1) * n1, :] = jnp.dot(
            act1, w2_ref[k], preferred_element_type=jnp.float32)            # (N1, C2)
    z2 = jnp.dot(s2cat_ref[...], y2_ref[...],
                 preferred_element_type=jnp.float32)                        # (4*N2, C2)
    sc2, sh2 = _bn_scale_shift(z2, g2_ref[...], be2_ref[...], n2x4)
    a2 = jnp.maximum(z2 * sc2 + sh2, 0.0)
    act2 = jnp.maximum(jnp.maximum(a2[0 * n2:1 * n2], a2[1 * n2:2 * n2]),
                       jnp.maximum(a2[2 * n2:3 * n2], a2[3 * n2:4 * n2]))   # (N2, C2)

    # ---------------- Hoisted LSTM input projection (all timesteps, gates concatenated) -
    # xproj[(t,b), :] = x_t[b, :] @ W_ih + (b_ih + b_hh), via one merged gather matmul.
    for f in range(f2_cnt):
        xa_ref[f * n2:(f + 1) * n2, :] = jnp.dot(
            act2, wih_ref[f], preferred_element_type=jnp.float32)           # (N2, 4H)
    xproj = jnp.dot(qcat_ref[...], xa_ref[...],
                    preferred_element_type=jnp.float32) + bias_ref[...]     # (T*B, 4H)

    # ---------------- LSTM recurrence: one (B,H)@(H,4H) dot per step ---------------------
    whh = whh_ref[...]
    h = jnp.zeros((B, H), jnp.float32)
    c = jnp.zeros((B, H), jnp.float32)
    hsum = jnp.zeros((B, H), jnp.float32)
    for t in range(T):                                   # T is small & static -> unrolled
        gates = xproj[t * B:(t + 1) * B, :] + jnp.dot(
            h, whh, preferred_element_type=jnp.float32)                      # (B, 4H)
        i_g = jax.nn.sigmoid(gates[:, 0 * H:1 * H])
        f_g = jax.nn.sigmoid(gates[:, 1 * H:2 * H])
        g_g = jnp.tanh(gates[:, 2 * H:3 * H])
        o_g = jax.nn.sigmoid(gates[:, 3 * H:4 * H])
        c = f_g * c + i_g * g_g
        h = o_g * jnp.tanh(c)
        hsum = hsum + h

    hbar = hsum * (1.0 / float(T))                                   # mean over time
    logits_ref[...] = (jnp.dot(hbar, wc_ref[...], preferred_element_type=jnp.float32)
                       + bc_ref[...])


# -----------------------------------------------------------------------------
# Trace-time constant builders (layout plumbing expressed as 0/1 matrices)
# -----------------------------------------------------------------------------
def _build_patches_l1(x_nchw, F1, T1):
    """Layer-1 im2col, 4 pool offsets stacked along rows.
    Rows ordered (pool_offset, b, f1, t1); cols ordered (cin, di, dj)."""
    B, Cin, _, _ = x_nchw.shape
    xpad = jnp.pad(x_nchw, ((0, 0), (0, 0), (1, 1), (1, 1)))
    blocks = []
    for ph in range(2):
        for pw in range(2):
            cols = []
            for di in range(3):
                for dj in range(3):
                    sl = xpad[:, :, ph + di: ph + di + 2 * F1: 2,
                                    pw + dj: pw + dj + 2 * T1: 2]     # (B, Cin, F1, T1)
                    cols.append(sl)
            p = jnp.stack(cols, axis=2)                               # (B, Cin, 9, F1, T1)
            p = p.transpose(0, 3, 4, 1, 2).reshape(B * F1 * T1, Cin * 9)
            blocks.append(p)
    return jnp.concatenate(blocks, axis=0)                            # (4*N1, Cin*9)


def _layer2_selection_cat(B, F1, T1, F2, T2):
    """S[(off,b,f2,t2), k*N1 + (b,f1,t1)] = 1 where tap k=(di,dj) of the 3x3 conv at
    conv-output position (2*f2+ph, 2*t2+pw) reads layer-1 pooled position (f1,t1);
    zero rows encode the zero padding.  Taps concatenated along the K axis."""
    N1, N2 = B * F1 * T1, B * F2 * T2
    S = np.zeros((4 * N2, 9 * N1), np.float32)
    for di in range(3):
        for dj in range(3):
            k = di * 3 + dj
            for ph in range(2):
                for pw in range(2):
                    off = ph * 2 + pw
                    for b in range(B):
                        for f2 in range(F2):
                            for t2 in range(T2):
                                fi = 2 * f2 + ph + di - 1
                                ti = 2 * t2 + pw + dj - 1
                                if 0 <= fi < F1 and 0 <= ti < T1:
                                    r2 = off * N2 + (b * F2 + f2) * T2 + t2
                                    r1 = (b * F1 + fi) * T1 + ti
                                    S[r2, k * N1 + r1] = 1.0
    return S


def _lstm_gather_cat(B, F2, T2):
    """Q[(t,b), f2*N2 + (b,f2,t)] = 1: gathers x_t[b, c2*F2+f2] = act2[(b,f2,t), c2]
    (i.e. torch.flatten(1,2).permute(0,2,1)), f2 blocks concatenated along the K axis."""
    N2 = B * F2 * T2
    Q = np.zeros((T2 * B, F2 * N2), np.float32)
    for f2 in range(F2):
        for t in range(T2):
            for b in range(B):
                Q[t * B + b, f2 * N2 + (b * F2 + f2) * T2 + t] = 1.0
    return Q


# -----------------------------------------------------------------------------
# Forward (mirrors CNN_FTLSTM.forward)
# -----------------------------------------------------------------------------
def cnn_ftlstm_forward(params, input_lstm, input1, input2, target, seq_length,
                       train=True):
    """input_lstm / input1 / seq_length are unused, exactly as in the reference forward."""
    del input_lstm, input1, seq_length

    assert len(params['lflb']) == 2, "fused kernel is specialized to 2 LFLB cells"
    l1, l2 = params['lflb']
    B, Cin, F0, T0 = input2.shape
    C1 = l1['w'].shape[0]
    C2 = l2['w'].shape[0]
    F1, T1 = F0 // 2, T0 // 2
    F2, T2 = F1 // 2, T1 // 2
    N1, N2 = B * F1 * T1, B * F2 * T2
    H = params['lstm']['whh'].shape[0]
    four_h = 4 * H
    num_labels = params['wc'].shape[1]

    # Layer-1 im2col (tiny; one pass over the raw input in XLA glue).
    patches1 = _build_patches_l1(input2, F1, T1)                        # (4*N1, Cin*9)
    w1_mat = l1['w'].reshape(C1, Cin * 9).T                             # (Cin*9, C1)

    # Layer-2 conv as per-tap (C1,C2) weights + ONE concatenated 0/1 selection matrix.
    w2_taps = jnp.transpose(l2['w'], (2, 3, 1, 0)).reshape(9, C1, C2)   # [k][c1, c2]
    S2cat = jnp.asarray(_layer2_selection_cat(B, F1, T1, F2, T2))       # (4*N2, 9*N1)

    # LSTM input gather (merged) + gate-concatenated per-f2 split of W_ih (d = c2*F2+f2).
    Qcat = jnp.asarray(_lstm_gather_cat(B, F2, T2))                     # (T*B, F2*N2)
    wih_f2 = params['lstm']['wih'].reshape(C2, F2, four_h).transpose(1, 0, 2)  # (F2,C2,4H)

    logits = pl.pallas_call(
        fused_cnn_lstm_kernel,
        out_shape=jax.ShapeDtypeStruct((B, num_labels), jnp.float32),
        in_specs=[_VMEM] * 14,
        out_specs=_VMEM,
        scratch_shapes=[pltpu.VMEM((9 * N1, C2), jnp.float32),      # layer-2 tap products
                        pltpu.VMEM((F2 * N2, four_h), jnp.float32)],  # per-f2 projections
    )(patches1, w1_mat,
      l1['gamma'].reshape(1, C1), l1['beta'].reshape(1, C1),
      S2cat, w2_taps,
      l2['gamma'].reshape(1, C2), l2['beta'].reshape(1, C2),
      Qcat, wih_f2,
      params['lstm']['whh'], params['lstm']['bias'],
      params['wc'], params['bc'])

    # Cross-entropy / accuracy bookkeeping over tiny (B, 4) logits (plain-JAX glue).
    target_index = jnp.argmax(target, axis=1)
    pred_index = jnp.argmax(logits, axis=1)
    correct_batch = jnp.sum((target_index == pred_index).astype(jnp.int32))
    logz = jax.scipy.special.logsumexp(logits, axis=1)
    picked = jnp.take_along_axis(logits, target_index[:, None], axis=1)[:, 0]
    losses_batch = jnp.mean(logz - picked)

    losses_batch = losses_batch[None]
    correct_batch = correct_batch[None]
    if train:
        return losses_batch, correct_batch
    return losses_batch, correct_batch, (target_index, pred_index)


# -----------------------------------------------------------------------------
# Deterministic parameter construction
# -----------------------------------------------------------------------------
def init_params(key, in_channels, out_channels, hidden_dim, num_labels, inputx_dim):
    params = {'lflb': []}
    chans = [in_channels] + list(out_channels)
    for i, cout in enumerate(out_channels):
        cin = chans[i]
        key, k1, k2, k3, k4 = jax.random.split(key, 5)
        params['lflb'].append({
            'w': 0.2 * jax.random.normal(k1, (cout, cin, 3, 3), jnp.float32),
            # Conv bias exists in the PyTorch module but is exactly absorbed by the
            # training-mode BatchNorm that follows -> never read by the kernel.
            'b': 0.1 * jax.random.normal(k2, (cout,), jnp.float32),
            'gamma': 1.0 + 0.1 * jax.random.normal(k3, (cout,), jnp.float32),
            'beta': 0.1 * jax.random.normal(k4, (cout,), jnp.float32),
        })

    H, D = hidden_dim, inputx_dim
    key, k1, k2, k3, k4 = jax.random.split(key, 5)
    sc = 1.0 / jnp.sqrt(H)
    w_ih = sc * jax.random.normal(k1, (4 * H, D), jnp.float32)   # PyTorch layout [i;f;g;o]
    w_hh = sc * jax.random.normal(k2, (4 * H, H), jnp.float32)
    b_ih = sc * jax.random.normal(k3, (4 * H,), jnp.float32)
    b_hh = sc * jax.random.normal(k4, (4 * H,), jnp.float32)
    params['lstm'] = {
        'wih': w_ih.T,                           # (D, 4H), gates concatenated [i|f|g|o]
        'whh': w_hh.T,                           # (H, 4H)
        'bias': (b_ih + b_hh).reshape(1, 4 * H),
    }

    key, k1, k2 = jax.random.split(key, 3)
    w_c = sc * jax.random.normal(k1, (num_labels, H), jnp.float32)
    b_c = sc * jax.random.normal(k2, (num_labels,), jnp.float32)
    params['wc'] = w_c.T                         # (H, num_labels)
    params['bc'] = b_c.reshape(1, num_labels)
    return params


# -----------------------------------------------------------------------------
# Main
# -----------------------------------------------------------------------------
if __name__ == "__main__":
    # Module configuration (small, shape-consistent with the reference forward):
    #   in_channels=1, out_channels=[4, 8], kernel_size_cnn=(3,3), stride_cnn=(1,1),
    #   kernel_size_pool=(2,2), stride_pool=2, nfft=64 -> strideF = 64//4 = 16;
    #   after 2 LFLB cells: strideF=4, inputx_dim = 4*8 = 32, hidden_dim=32,
    #   num_layers_ftlstm=1, num_labels=4.
    B = 2
    in_channels = 1
    out_channels = [4, 8]
    nfft = 64
    freq = nfft // 4            # 16
    time = 16
    hidden_dim = 32
    num_labels = 4
    inputx_dim = (freq // 4) * out_channels[-1]   # 4 * 8 = 32

    key = jax.random.PRNGKey(0)
    key, kp, k_in2, k_tgt, k_in1, k_lstm_in = jax.random.split(key, 6)
    params = init_params(kp, in_channels, out_channels, hidden_dim, num_labels,
                         inputx_dim)

    input2 = jax.random.normal(k_in2, (B, in_channels, freq, time), jnp.float32)
    target = jax.nn.one_hot(jax.random.randint(k_tgt, (B,), 0, num_labels),
                            num_labels).astype(jnp.float32)
    # Unused by the forward path (kept to mirror the PyTorch signature).
    input1 = jax.random.normal(k_in1, (B, in_channels, freq, time), jnp.float32)
    input_lstm = jax.random.normal(k_lstm_in, (B, 8, 16), jnp.float32)
    seq_length = jnp.full((B,), time, jnp.int32)

    fwd = jax.jit(functools.partial(cnn_ftlstm_forward, train=True))
    losses_batch, correct_batch = fwd(params, input_lstm, input1, input2, target,
                                      seq_length)
    jax.block_until_ready((losses_batch, correct_batch))

    assert losses_batch.shape == (1,) and correct_batch.shape == (1,)
    assert bool(jnp.isfinite(losses_batch).all())
    print("KERNEL_OK")
</pallas_src>

<mosaic_0001>
module attributes {stable_mosaic.version = 11 : i64} {
  func.func @fused_cnn_lstm_kernel(%arg0: memref<512x9xf32, #tpu.memory_space<vmem>>, %arg1: memref<9x4xf32, #tpu.memory_space<vmem>>, %arg2: memref<1x4xf32, #tpu.memory_space<vmem>>, %arg3: memref<1x4xf32, #tpu.memory_space<vmem>>, %arg4: memref<128x1152xf32, #tpu.memory_space<vmem>>, %arg5: memref<9x4x8xf32, #tpu.memory_space<vmem>>, %arg6: memref<1x8xf32, #tpu.memory_space<vmem>>, %arg7: memref<1x8xf32, #tpu.memory_space<vmem>>, %arg8: memref<8x128xf32, #tpu.memory_space<vmem>>, %arg9: memref<4x8x128xf32, #tpu.memory_space<vmem>>, %arg10: memref<32x128xf32, #tpu.memory_space<vmem>>, %arg11: memref<1x128xf32, #tpu.memory_space<vmem>>, %arg12: memref<32x4xf32, #tpu.memory_space<vmem>>, %arg13: memref<1x4xf32, #tpu.memory_space<vmem>>, %arg14: memref<2x4xf32, #tpu.memory_space<vmem>>, %arg15: memref<1152x8xf32, #tpu.memory_space<vmem>>, %arg16: memref<128x128xf32, #tpu.memory_space<vmem>>) attributes {dimension_semantics = [], scalar_prefetch = 0 : i64, scratch_operands = 2 : i64, tpu.core_type = #tpu.core_type<tc>} {
    %c0 = arith.constant 0 : index
    %c0_0 = arith.constant 0 : index
    %0 = vector.load %arg0[%c0, %c0_0] : memref<512x9xf32, #tpu.memory_space<vmem>>, vector<512x9xf32>
    %c0_1 = arith.constant 0 : index
    %c0_2 = arith.constant 0 : index
    %1 = vector.load %arg1[%c0_1, %c0_2] : memref<9x4xf32, #tpu.memory_space<vmem>>, vector<9x4xf32>
    %cst = arith.constant dense<0.000000e+00> : vector<512x4xf32>
    %2 = tpu.matmul %0, %1, %cst {dimension_numbers = #tpu.dot_dimension_numbers<[1], [0], [0], [1], [0, 0, 1, 1], [], []>} : vector<512x9xf32>, vector<9x4xf32>, vector<512x4xf32> -> vector<512x4xf32>
    %c0_3 = arith.constant 0 : index
    %c0_4 = arith.constant 0 : index
    %3 = vector.load %arg2[%c0_3, %c0_4] : memref<1x4xf32, #tpu.memory_space<vmem>>, vector<1x4xf32>
    %c0_5 = arith.constant 0 : index
    %c0_6 = arith.constant 0 : index
    %4 = vector.load %arg3[%c0_5, %c0_6] : memref<1x4xf32, #tpu.memory_space<vmem>>, vector<1x4xf32>
    %cst_7 = arith.constant dense<0.000000e+00> : vector<4xf32>
    %5 = vector.multi_reduction <add>, %2, %cst_7 [0] : vector<512x4xf32> to vector<4xf32>
    %6 = vector.shape_cast %5 : vector<4xf32> to vector<1x4xf32>
    %7 = arith.mulf %2, %2 : vector<512x4xf32>
    %cst_8 = arith.constant dense<0.000000e+00> : vector<4xf32>
    %8 = vector.multi_reduction <add>, %7, %cst_8 [0] : vector<512x4xf32> to vector<4xf32>
    %9 = vector.shape_cast %8 : vector<4xf32> to vector<1x4xf32>
    %cst_9 = arith.constant 0.001953125 : f32
    %10 = vector.broadcast %cst_9 : f32 to vector<1x4xf32>
    %11 = arith.mulf %6, %10 : vector<1x4xf32>
    %cst_10 = arith.constant 0.001953125 : f32
    %12 = vector.broadcast %cst_10 : f32 to vector<1x4xf32>
    %13 = arith.mulf %9, %12 : vector<1x4xf32>
    %14 = arith.mulf %11, %11 : vector<1x4xf32>
    %15 = arith.subf %13, %14 : vector<1x4xf32>
    %cst_11 = arith.constant 0.000000e+00 : f32
    %16 = vector.broadcast %cst_11 : f32 to vector<1x4xf32>
    %17 = arith.maximumf %15, %16 : vector<1x4xf32>
    %cst_12 = arith.constant 9.99999974E-6 : f32
    %18 = vector.broadcast %cst_12 : f32 to vector<1x4xf32>
    %19 = arith.addf %17, %18 : vector<1x4xf32>
    %20 = math.rsqrt %19 : vector<1x4xf32>
    %21 = arith.mulf %3, %20 : vector<1x4xf32>
    %22 = arith.mulf %11, %21 : vector<1x4xf32>
    %23 = arith.subf %4, %22 : vector<1x4xf32>
    %24 = vector.broadcast %21 : vector<1x4xf32> to vector<512x4xf32>
    %25 = arith.mulf %2, %24 : vector<512x4xf32>
    %26 = vector.broadcast %23 : vector<1x4xf32> to vector<512x4xf32>
    %27 = arith.addf %25, %26 : vector<512x4xf32>
    %cst_13 = arith.constant 0.000000e+00 : f32
    %28 = vector.broadcast %cst_13 : f32 to vector<512x4xf32>
    %29 = arith.maximumf %27, %28 : vector<512x4xf32>
    %30 = vector.extract_strided_slice %29 {offsets = [0, 0], sizes = [128, 4], strides = [1, 1]} : vector<512x4xf32> to vector<128x4xf32>
    %31 = vector.extract_strided_slice %29 {offsets = [128, 0], sizes = [128, 4], strides = [1, 1]} : vector<512x4xf32> to vector<128x4xf32>
    %32 = arith.maximumf %30, %31 : vector<128x4xf32>
    %33 = vector.extract_strided_slice %29 {offsets = [256, 0], sizes = [128, 4], strides = [1, 1]} : vector<512x4xf32> to vector<128x4xf32>
    %34 = vector.extract_strided_slice %29 {offsets = [384, 0], sizes = [128, 4], strides = [1, 1]} : vector<512x4xf32> to vector<128x4xf32>
    %35 = arith.maximumf %33, %34 : vector<128x4xf32>
    %36 = arith.maximumf %32, %35 : vector<128x4xf32>
    %c0_14 = arith.constant 0 : index
    %c0_15 = arith.constant 0 : index
    %c0_16 = arith.constant 0 : index
    %37 = vector.load %arg5[%c0_14, %c0_15, %c0_16] : memref<9x4x8xf32, #tpu.memory_space<vmem>>, vector<1x4x8xf32>
    %38 = vector.shape_cast %37 : vector<1x4x8xf32> to vector<4x8xf32>
    %cst_17 = arith.constant dense<0.000000e+00> : vector<128x8xf32>
    %39 = tpu.matmul %36, %38, %cst_17 {dimension_numbers = #tpu.dot_dimension_numbers<[1], [0], [0], [1], [0, 0, 1, 1], [], []>} : vector<128x4xf32>, vector<4x8xf32>, vector<128x8xf32> -> vector<128x8xf32>
    %c0_18 = arith.constant 0 : index
    %c0_19 = arith.constant 0 : index
    %40 = vector.load %arg15[%c0_18, %c0_19] : memref<1152x8xf32, #tpu.memory_space<vmem>>, vector<128x8xf32>
    tpu.vector_store %arg15[%c0_18, %c0_19], %39 {strides = array<i32>} : memref<1152x8xf32, #tpu.memory_space<vmem>>, vector<128x8xf32>,
    %c1 = arith.constant 1 : index
    %c0_20 = arith.constant 0 : index
    %c0_21 = arith.constant 0 : index
    %41 = vector.load %arg5[%c1, %c0_20, %c0_21] : memref<9x4x8xf32, #tpu.memory_space<vmem>>, vector<1x4x8xf32>
    %42 = vector.shape_cast %41 : vector<1x4x8xf32> to vector<4x8xf32>
    %cst_22 = arith.constant dense<0.000000e+00> : vector<128x8xf32>
    %43 = tpu.matmul %36, %42, %cst_22 {dimension_numbers = #tpu.dot_dimension_numbers<[1], [0], [0], [1], [0, 0, 1, 1], [], []>} : vector<128x4xf32>, vector<4x8xf32>, vector<128x8xf32> -> vector<128x8xf32>
    %c128 = arith.constant 128 : index
    %c0_23 = arith.constant 0 : index
    %44 = vector.load %arg15[%c128, %c0_23] : memref<1152x8xf32, #tpu.memory_space<vmem>>, vector<128x8xf32>
    tpu.vector_store %arg15[%c128, %c0_23], %43 {strides = array<i32>} : memref<1152x8xf32, #tpu.memory_space<vmem>>, vector<128x8xf32>,
    %c2 = arith.constant 2 : index
    %c0_24 = arith.constant 0 : index
    %c0_25 = arith.constant 0 : index
    %45 = vector.load %arg5[%c2, %c0_24, %c0_25] : memref<9x4x8xf32, #tpu.memory_space<vmem>>, vector<1x4x8xf32>
    %46 = vector.shape_cast %45 : vector<1x4x8xf32> to vector<4x8xf32>
    %cst_26 = arith.constant dense<0.000000e+00> : vector<128x8xf32>
    %47 = tpu.matmul %36, %46, %cst_26 {dimension_numbers = #tpu.dot_dimension_numbers<[1], [0], [0], [1], [0, 0, 1, 1], [], []>} : vector<128x4xf32>, vector<4x8xf32>, vector<128x8xf32> -> vector<128x8xf32>
    %c256 = arith.constant 256 : index
    %c0_27 = arith.constant 0 : index
    %48 = vector.load %arg15[%c256, %c0_27] : memref<1152x8xf32, #tpu.memory_space<vmem>>, vector<128x8xf32>
    tpu.vector_store %arg15[%c256, %c0_27], %47 {strides = array<i32>} : memref<1152x8xf32, #tpu.memory_space<vmem>>, vector<128x8xf32>,
    %c3 = arith.constant 3 : index
    %c0_28 = arith.constant 0 : index
    %c0_29 = arith.constant 0 : index
    %49 = vector.load %arg5[%c3, %c0_28, %c0_29] : memref<9x4x8xf32, #tpu.memory_space<vmem>>, vector<1x4x8xf32>
    %50 = vector.shape_cast %49 : vector<1x4x8xf32> to vector<4x8xf32>
    %cst_30 = arith.constant dense<0.000000e+00> : vector<128x8xf32>
    %51 = tpu.matmul %36, %50, %cst_30 {dimension_numbers = #tpu.dot_dimension_numbers<[1], [0], [0], [1], [0, 0, 1, 1], [], []>} : vector<128x4xf32>, vector<4x8xf32>, vector<128x8xf32> -> vector<128x8xf32>
    %c384 = arith.constant 384 : index
    %c0_31 = arith.constant 0 : index
    %52 = vector.load %arg15[%c384, %c0_31] : memref<1152x8xf32, #tpu.memory_space<vmem>>, vector<128x8xf32>
    tpu.vector_store %arg15[%c384, %c0_31], %51 {strides = array<i32>} : memref<1152x8xf32, #tpu.memory_space<vmem>>, vector<128x8xf32>,
    %c4 = arith.constant 4 : index
    %c0_32 = arith.constant 0 : index
    %c0_33 = arith.constant 0 : index
    %53 = vector.load %arg5[%c4, %c0_32, %c0_33] : memref<9x4x8xf32, #tpu.memory_space<vmem>>, vector<1x4x8xf32>
    %54 = vector.shape_cast %53 : vector<1x4x8xf32> to vector<4x8xf32>
    %cst_34 = arith.constant dense<0.000000e+00> : vector<128x8xf32>
    %55 = tpu.matmul %36, %54, %cst_34 {dimension_numbers = #tpu.dot_dimension_numbers<[1], [0], [0], [1], [0, 0, 1, 1], [], []>} : vector<128x4xf32>, vector<4x8xf32>, vector<128x8xf32> -> vector<128x8xf32>
    %c512 = arith.constant 512 : index
    %c0_35 = arith.constant 0 : index
    %56 = vector.load %arg15[%c512, %c0_35] : memref<1152x8xf32, #tpu.memory_space<vmem>>, vector<128x8xf32>
    tpu.vector_store %arg15[%c512, %c0_35], %55 {strides = array<i32>} : memref<1152x8xf32, #tpu.memory_space<vmem>>, vector<128x8xf32>,
    %c5 = arith.constant 5 : index
    %c0_36 = arith.constant 0 : index
    %c0_37 = arith.constant 0 : index
    %57 = vector.load %arg5[%c5, %c0_36, %c0_37] : memref<9x4x8xf32, #tpu.memory_space<vmem>>, vector<1x4x8xf32>
    %58 = vector.shape_cast %57 : vector<1x4x8xf32> to vector<4x8xf32>
    %cst_38 = arith.constant dense<0.000000e+00> : vector<128x8xf32>
    %59 = tpu.matmul %36, %58, %cst_38 {dimension_numbers = #tpu.dot_dimension_numbers<[1], [0], [0], [1], [0, 0, 1, 1], [], []>} : vector<128x4xf32>, vector<4x8xf32>, vector<128x8xf32> -> vector<128x8xf32>
    %c640 = arith.constant 640 : index
    %c0_39 = arith.constant 0 : index
    %60 = vector.load %arg15[%c640, %c0_39] : memref<1152x8xf32, #tpu.memory_space<vmem>>, vector<128x8xf32>
    tpu.vector_store %arg15[%c640, %c0_39], %59 {strides = array<i32>} : memref<1152x8xf32, #tpu.memory_space<vmem>>, vector<128x8xf32>,
    %c6 = arith.constant 6 : index
    %c0_40 = arith.constant 0 : index
    %c0_41 = arith.constant 0 : index
    %61 = vector.load %arg5[%c6, %c0_40, %c0_41] : memref<9x4x8xf32, #tpu.memory_space<vmem>>, vector<1x4x8xf32>
    %62 = vector.shape_cast %61 : vector<1x4x8xf32> to vector<4x8xf32>
    %cst_42 = arith.constant dense<0.000000e+00> : vector<128x8xf32>
    %63 = tpu.matmul %36, %62, %cst_42 {dimension_numbers = #tpu.dot_dimension_numbers<[1], [0], [0], [1], [0, 0, 1, 1], [], []>} : vector<128x4xf32>, vector<4x8xf32>, vector<128x8xf32> -> vector<128x8xf32>
    %c768 = arith.constant 768 : index
    %c0_43 = arith.constant 0 : index
    %64 = vector.load %arg15[%c768, %c0_43] : memref<1152x8xf32, #tpu.memory_space<vmem>>, vector<128x8xf32>
    tpu.vector_store %arg15[%c768, %c0_43], %63 {strides = array<i32>} : memref<1152x8xf32, #tpu.memory_space<vmem>>, vector<128x8xf32>,
    %c7 = arith.constant 7 : index
    %c0_44 = arith.constant 0 : index
    %c0_45 = arith.constant 0 : index
    %65 = vector.load %arg5[%c7, %c0_44, %c0_45] : memref<9x4x8xf32, #tpu.memory_space<vmem>>, vector<1x4x8xf32>
    %66 = vector.shape_cast %65 : vector<1x4x8xf32> to vector<4x8xf32>
    %cst_46 = arith.constant dense<0.000000e+00> : vector<128x8xf32>
    %67 = tpu.matmul %36, %66, %cst_46 {dimension_numbers = #tpu.dot_dimension_numbers<[1], [0], [0], [1], [0, 0, 1, 1], [], []>} : vector<128x4xf32>, vector<4x8xf32>, vector<128x8xf32> -> vector<128x8xf32>
    %c896 = arith.constant 896 : index
    %c0_47 = arith.constant 0 : index
    %68 = vector.load %arg15[%c896, %c0_47] : memref<1152x8xf32, #tpu.memory_space<vmem>>, vector<128x8xf32>
    tpu.vector_store %arg15[%c896, %c0_47], %67 {strides = array<i32>} : memref<1152x8xf32, #tpu.memory_space<vmem>>, vector<128x8xf32>,
    %c8 = arith.constant 8 : index
    %c0_48 = arith.constant 0 : index
    %c0_49 = arith.constant 0 : index
    %69 = vector.load %arg5[%c8, %c0_48, %c0_49] : memref<9x4x8xf32, #tpu.memory_space<vmem>>, vector<1x4x8xf32>
    %70 = vector.shape_cast %69 : vector<1x4x8xf32> to vector<4x8xf32>
    %cst_50 = arith.constant dense<0.000000e+00> : vector<128x8xf32>
    %71 = tpu.matmul %36, %70, %cst_50 {dimension_numbers = #tpu.dot_dimension_numbers<[1], [0], [0], [1], [0, 0, 1, 1], [], []>} : vector<128x4xf32>, vector<4x8xf32>, vector<128x8xf32> -> vector<128x8xf32>
    %c1024 = arith.constant 1024 : index
    %c0_51 = arith.constant 0 : index
    %72 = vector.load %arg15[%c1024, %c0_51] : memref<1152x8xf32, #tpu.memory_space<vmem>>, vector<128x8xf32>
    tpu.vector_store %arg15[%c1024, %c0_51], %71 {strides = array<i32>} : memref<1152x8xf32, #tpu.memory_space<vmem>>, vector<128x8xf32>,
    %c0_52 = arith.constant 0 : index
    %c0_53 = arith.constant 0 : index
    %73 = vector.load %arg4[%c0_52, %c0_53] : memref<128x1152xf32, #tpu.memory_space<vmem>>, vector<128x1152xf32>
    %c0_54 = arith.constant 0 : index
    %c0_55 = arith.constant 0 : index
    %74 = vector.load %arg15[%c0_54, %c0_55] : memref<1152x8xf32, #tpu.memory_space<vmem>>, vector<1152x8xf32>
    %cst_56 = arith.constant dense<0.000000e+00> : vector<128x8xf32>
    %75 = tpu.matmul %73, %74, %cst_56 {dimension_numbers = #tpu.dot_dimension_numbers<[1], [0], [0], [1], [0, 0, 1, 1], [], []>} : vector<128x1152xf32>, vector<1152x8xf32>, vector<128x8xf32> -> vector<128x8xf32>
    %c0_57 = arith.constant 0 : index
    %c0_58 = arith.constant 0 : index
    %76 = vector.load %arg6[%c0_57, %c0_58] : memref<1x8xf32, #tpu.memory_space<vmem>>, vector<1x8xf32>
    %c0_59 = arith.constant 0 : index
    %c0_60 = arith.constant 0 : index
    %77 = vector.load %arg7[%c0_59, %c0_60] : memref<1x8xf32, #tpu.memory_space<vmem>>, vector<1x8xf32>
    %cst_61 = arith.constant dense<0.000000e+00> : vector<8xf32>
    %78 = vector.multi_reduction <add>, %75, %cst_61 [0] : vector<128x8xf32> to vector<8xf32>
    %79 = vector.shape_cast %78 : vector<8xf32> to vector<1x8xf32>
    %80 = arith.mulf %75, %75 : vector<128x8xf32>
    %cst_62 = arith.constant dense<0.000000e+00> : vector<8xf32>
    %81 = vector.multi_reduction <add>, %80, %cst_62 [0] : vector<128x8xf32> to vector<8xf32>
    %82 = vector.shape_cast %81 : vector<8xf32> to vector<1x8xf32>
    %cst_63 = arith.constant 7.812500e-03 : f32
    %83 = vector.broadcast %cst_63 : f32 to vector<1x8xf32>
    %84 = arith.mulf %79, %83 : vector<1x8xf32>
    %cst_64 = arith.constant 7.812500e-03 : f32
    %85 = vector.broadcast %cst_64 : f32 to vector<1x8xf32>
    %86 = arith.mulf %82, %85 : vector<1x8xf32>
    %87 = arith.mulf %84, %84 : vector<1x8xf32>
    %88 = arith.subf %86, %87 : vector<1x8xf32>
    %cst_65 = arith.constant 0.000000e+00 : f32
    %89 = vector.broadcast %cst_65 : f32 to vector<1x8xf32>
    %90 = arith.maximumf %88, %89 : vector<1x8xf32>
    %cst_66 = arith.constant 9.99999974E-6 : f32
    %91 = vector.broadcast %cst_66 : f32 to vector<1x8xf32>
    %92 = arith.addf %90, %91 : vector<1x8xf32>
    %93 = math.rsqrt %92 : vector<1x8xf32>
    %94 = arith.mulf %76, %93 : vector<1x8xf32>
    %95 = arith.mulf %84, %94 : vector<1x8xf32>
    %96 = arith.subf %77, %95 : vector<1x8xf32>
    %97 = vector.broadcast %94 : vector<1x8xf32> to vector<128x8xf32>
    %98 = arith.mulf %75, %97 : vector<128x8xf32>
    %99 = vector.broadcast %96 : vector<1x8xf32> to vector<128x8xf32>
    %100 = arith.addf %98, %99 : vector<128x8xf32>
    %cst_67 = arith.constant 0.000000e+00 : f32
    %101 = vector.broadcast %cst_67 : f32 to vector<128x8xf32>
    %102 = arith.maximumf %100, %101 : vector<128x8xf32>
    %103 = vector.extract_strided_slice %102 {offsets = [0, 0], sizes = [32, 8], strides = [1, 1]} : vector<128x8xf32> to vector<32x8xf32>
    %104 = vector.extract_strided_slice %102 {offsets = [32, 0], sizes = [32, 8], strides = [1, 1]} : vector<128x8xf32> to vector<32x8xf32>
    %105 = arith.maximumf %103, %104 : vector<32x8xf32>
    %106 = vector.extract_strided_slice %102 {offsets = [64, 0], sizes = [32, 8], strides = [1, 1]} : vector<128x8xf32> to vector<32x8xf32>
    %107 = vector.extract_strided_slice %102 {offsets = [96, 0], sizes = [32, 8], strides = [1, 1]} : vector<128x8xf32> to vector<32x8xf32>
    %108 = arith.maximumf %106, %107 : vector<32x8xf32>
    %109 = arith.maximumf %105, %108 : vector<32x8xf32>
    %c0_68 = arith.constant 0 : index
    %c0_69 = arith.constant 0 : index
    %c0_70 = arith.constant 0 : index
    %110 = vector.load %arg9[%c0_68, %c0_69, %c0_70] : memref<4x8x128xf32, #tpu.memory_space<vmem>>, vector<1x8x128xf32>
    %111 = vector.shape_cast %110 : vector<1x8x128xf32> to vector<8x128xf32>
    %cst_71 = arith.constant dense<0.000000e+00> : vector<32x128xf32>
    %112 = tpu.matmul %109, %111, %cst_71 {dimension_numbers = #tpu.dot_dimension_numbers<[1], [0], [0], [1], [0, 0, 1, 1], [], []>} : vector<32x8xf32>, vector<8x128xf32>, vector<32x128xf32> -> vector<32x128xf32>
    %c0_72 = arith.constant 0 : index
    %c0_73 = arith.constant 0 : index
    %113 = vector.load %arg16[%c0_72, %c0_73] : memref<128x128xf32, #tpu.memory_space<vmem>>, vector<32x128xf32>
    tpu.vector_store %arg16[%c0_72, %c0_73], %112 {strides = array<i32>} : memref<128x128xf32, #tpu.memory_space<vmem>>, vector<32x128xf32>,
    %c1_74 = arith.constant 1 : index
    %c0_75 = arith.constant 0 : index
    %c0_76 = arith.constant 0 : index
    %114 = vector.load %arg9[%c1_74, %c0_75, %c0_76] : memref<4x8x128xf32, #tpu.memory_space<vmem>>, vector<1x8x128xf32>
    %115 = vector.shape_cast %114 : vector<1x8x128xf32> to vector<8x128xf32>
    %cst_77 = arith.constant dense<0.000000e+00> : vector<32x128xf32>
    %116 = tpu.matmul %109, %115, %cst_77 {dimension_numbers = #tpu.dot_dimension_numbers<[1], [0], [0], [1], [0, 0, 1, 1], [], []>} : vector<32x8xf32>, vector<8x128xf32>, vector<32x128xf32> -> vector<32x128xf32>
    %c32 = arith.constant 32 : index
    %c0_78 = arith.constant 0 : index
    %117 = vector.load %arg16[%c32, %c0_78] : memref<128x128xf32, #tpu.memory_space<vmem>>, vector<32x128xf32>
    tpu.vector_store %arg16[%c32, %c0_78], %116 {strides = array<i32>} : memref<128x128xf32, #tpu.memory_space<vmem>>, vector<32x128xf32>,
    %c2_79 = arith.constant 2 : index
    %c0_80 = arith.constant 0 : index
    %c0_81 = arith.constant 0 : index
    %118 = vector.load %arg9[%c2_79, %c0_80, %c0_81] : memref<4x8x128xf32, #tpu.memory_space<vmem>>, vector<1x8x128xf32>
    %119 = vector.shape_cast %118 : vector<1x8x128xf32> to vector<8x128xf32>
    %cst_82 = arith.constant dense<0.000000e+00> : vector<32x128xf32>
    %120 = tpu.matmul %109, %119, %cst_82 {dimension_numbers = #tpu.dot_dimension_numbers<[1], [0], [0], [1], [0, 0, 1, 1], [], []>} : vector<32x8xf32>, vector<8x128xf32>, vector<32x128xf32> -> vector<32x128xf32>
    %c64 = arith.constant 64 : index
    %c0_83 = arith.constant 0 : index
    %121 = vector.load %arg16[%c64, %c0_83] : memref<128x128xf32, #tpu.memory_space<vmem>>, vector<32x128xf32>
    tpu.vector_store %arg16[%c64, %c0_83], %120 {strides = array<i32>} : memref<128x128xf32, #tpu.memory_space<vmem>>, vector<32x128xf32>,
    %c3_84 = arith.constant 3 : index
    %c0_85 = arith.constant 0 : index
    %c0_86 = arith.constant 0 : index
    %122 = vector.load %arg9[%c3_84, %c0_85, %c0_86] : memref<4x8x128xf32, #tpu.memory_space<vmem>>, vector<1x8x128xf32>
    %123 = vector.shape_cast %122 : vector<1x8x128xf32> to vector<8x128xf32>
    %cst_87 = arith.constant dense<0.000000e+00> : vector<32x128xf32>
    %124 = tpu.matmul %109, %123, %cst_87 {dimension_numbers = #tpu.dot_dimension_numbers<[1], [0], [0], [1], [0, 0, 1, 1], [], []>} : vector<32x8xf32>, vector<8x128xf32>, vector<32x128xf32> -> vector<32x128xf32>
    %c96 = arith.constant 96 : index
    %c0_88 = arith.constant 0 : index
    %125 = vector.load %arg16[%c96, %c0_88] : memref<128x128xf32, #tpu.memory_space<vmem>>, vector<32x128xf32>
    tpu.vector_store %arg16[%c96, %c0_88], %124 {strides = array<i32>} : memref<128x128xf32, #tpu.memory_space<vmem>>, vector<32x128xf32>,
    %c0_89 = arith.constant 0 : index
    %c0_90 = arith.constant 0 : index
    %126 = vector.load %arg8[%c0_89, %c0_90] : memref<8x128xf32, #tpu.memory_space<vmem>>, vector<8x128xf32>
    %c0_91 = arith.constant 0 : index
    %c0_92 = arith.constant 0 : index
    %127 = vector.load %arg16[%c0_91, %c0_92] : memref<128x128xf32, #tpu.memory_space<vmem>>, vector<128x128xf32>
    %cst_93 = arith.constant dense<0.000000e+00> : vector<8x128xf32>
    %128 = tpu.matmul %126, %127, %cst_93 {dimension_numbers = #tpu.dot_dimension_numbers<[1], [0], [0], [1], [0, 0, 1, 1], [], []>} : vector<8x128xf32>, vector<128x128xf32>, vector<8x128xf32> -> vector<8x128xf32>
    %c0_94 = arith.constant 0 : index
    %c0_95 = arith.constant 0 : index
    %129 = vector.load %arg11[%c0_94, %c0_95] : memref<1x128xf32, #tpu.memory_space<vmem>>, vector<1x128xf32>
    %130 = vector.broadcast %129 : vector<1x128xf32> to vector<8x128xf32>
    %131 = arith.addf %128, %130 : vector<8x128xf32>
    %c0_96 = arith.constant 0 : index
    %c0_97 = arith.constant 0 : index
    %132 = vector.load %arg10[%c0_96, %c0_97] : memref<32x128xf32, #tpu.memory_space<vmem>>, vector<32x128xf32>
    %cst_98 = arith.constant 0.000000e+00 : f32
    %133 = vector.broadcast %cst_98 : f32 to vector<2x32xf32>
    %cst_99 = arith.constant 0.000000e+00 : f32
    %134 = vector.broadcast %cst_99 : f32 to vector<2x32xf32>
    %cst_100 = arith.constant 0.000000e+00 : f32
    %135 = vector.broadcast %cst_100 : f32 to vector<2x32xf32>
    %136 = vector.extract_strided_slice %131 {offsets = [0, 0], sizes = [2, 128], strides = [1, 1]} : vector<8x128xf32> to vector<2x128xf32>
    %cst_101 = arith.constant dense<0.000000e+00> : vector<2x128xf32>
    %137 = tpu.matmul %133, %132, %cst_101 {dimension_numbers = #tpu.dot_dimension_numbers<[1], [0], [0], [1], [0, 0, 1, 1], [], []>} : vector<2x32xf32>, vector<32x128xf32>, vector<2x128xf32> -> vector<2x128xf32>
    %138 = arith.addf %136, %137 : vector<2x128xf32>
    %139 = vector.extract_strided_slice %138 {offsets = [0, 0], sizes = [2, 32], strides = [1, 1]} : vector<2x128xf32> to vector<2x32xf32>
    %140 = arith.negf %139 : vector<2x32xf32>
    %141 = math.exp %140 : vector<2x32xf32>
    %cst_102 = arith.constant 1.000000e+00 : f32
    %142 = vector.broadcast %cst_102 : f32 to vector<2x32xf32>
    %143 = arith.addf %142, %141 : vector<2x32xf32>
    %144 = arith.divf %142, %143 : vector<2x32xf32>
    %145 = vector.extract_strided_slice %138 {offsets = [0, 32], sizes = [2, 32], strides = [1, 1]} : vector<2x128xf32> to vector<2x32xf32>
    %146 = arith.negf %145 : vector<2x32xf32>
    %147 = math.exp %146 : vector<2x32xf32>
    %cst_103 = arith.constant 1.000000e+00 : f32
    %148 = vector.broadcast %cst_103 : f32 to vector<2x32xf32>
    %149 = arith.addf %148, %147 : vector<2x32xf32>
    %150 = arith.divf %148, %149 : vector<2x32xf32>
    %151 = vector.extract_strided_slice %138 {offsets = [0, 64], sizes = [2, 32], strides = [1, 1]} : vector<2x128xf32> to vector<2x32xf32>
    %152 = math.tanh %151 : vector<2x32xf32>
    %153 = vector.extract_strided_slice %138 {offsets = [0, 96], sizes = [2, 32], strides = [1, 1]} : vector<2x128xf32> to vector<2x32xf32>
    %154 = arith.negf %153 : vector<2x32xf32>
    %155 = math.exp %154 : vector<2x32xf32>
    %cst_104 = arith.constant 1.000000e+00 : f32
    %156 = vector.broadcast %cst_104 : f32 to vector<2x32xf32>
    %157 = arith.addf %156, %155 : vector<2x32xf32>
    %158 = arith.divf %156, %157 : vector<2x32xf32>
    %159 = arith.mulf %150, %134 : vector<2x32xf32>
    %160 = arith.mulf %144, %152 : vector<2x32xf32>
    %161 = arith.addf %159, %160 : vector<2x32xf32>
    %162 = math.tanh %161 : vector<2x32xf32>
    %163 = arith.mulf %158, %162 : vector<2x32xf32>
    %164 = arith.addf %135, %163 : vector<2x32xf32>
    %165 = vector.extract_strided_slice %131 {offsets = [2, 0], sizes = [2, 128], strides = [1, 1]} : vector<8x128xf32> to vector<2x128xf32>
    %cst_105 = arith.constant dense<0.000000e+00> : vector<2x128xf32>
    %166 = tpu.matmul %163, %132, %cst_105 {dimension_numbers = #tpu.dot_dimension_numbers<[1], [0], [0], [1], [0, 0, 1, 1], [], []>} : vector<2x32xf32>, vector<32x128xf32>, vector<2x128xf32> -> vector<2x128xf32>
    %167 = arith.addf %165, %166 : vector<2x128xf32>
    %168 = vector.extract_strided_slice %167 {offsets = [0, 0], sizes = [2, 32], strides = [1, 1]} : vector<2x128xf32> to vector<2x32xf32>
    %169 = arith.negf %168 : vector<2x32xf32>
    %170 = math.exp %169 : vector<2x32xf32>
    %cst_106 = arith.constant 1.000000e+00 : f32
    %171 = vector.broadcast %cst_106 : f32 to vector<2x32xf32>
    %172 = arith.addf %171, %170 : vector<2x32xf32>
    %173 = arith.divf %171, %172 : vector<2x32xf32>
    %174 = vector.extract_strided_slice %167 {offsets = [0, 32], sizes = [2, 32], strides = [1, 1]} : vector<2x128xf32> to vector<2x32xf32>
    %175 = arith.negf %174 : vector<2x32xf32>
    %176 = math.exp %175 : vector<2x32xf32>
    %cst_107 = arith.constant 1.000000e+00 : f32
    %177 = vector.broadcast %cst_107 : f32 to vector<2x32xf32>
    %178 = arith.addf %177, %176 : vector<2x32xf32>
    %179 = arith.divf %177, %178 : vector<2x32xf32>
    %180 = vector.extract_strided_slice %167 {offsets = [0, 64], sizes = [2, 32], strides = [1, 1]} : vector<2x128xf32> to vector<2x32xf32>
    %181 = math.tanh %180 : vector<2x32xf32>
    %182 = vector.extract_strided_slice %167 {offsets = [0, 96], sizes = [2, 32], strides = [1, 1]} : vector<2x128xf32> to vector<2x32xf32>
    %183 = arith.negf %182 : vector<2x32xf32>
    %184 = math.exp %183 : vector<2x32xf32>
    %cst_108 = arith.constant 1.000000e+00 : f32
    %185 = vector.broadcast %cst_108 : f32 to vector<2x32xf32>
    %186 = arith.addf %185, %184 : vector<2x32xf32>
    %187 = arith.divf %185, %186 : vector<2x32xf32>
    %188 = arith.mulf %179, %161 : vector<2x32xf32>
    %189 = arith.mulf %173, %181 : vector<2x32xf32>
    %190 = arith.addf %188, %189 : vector<2x32xf32>
    %191 = math.tanh %190 : vector<2x32xf32>
    %192 = arith.mulf %187, %191 : vector<2x32xf32>
    %193 = arith.addf %164, %192 : vector<2x32xf32>
    %194 = vector.extract_strided_slice %131 {offsets = [4, 0], sizes = [2, 128], strides = [1, 1]} : vector<8x128xf32> to vector<2x128xf32>
    %cst_109 = arith.constant dense<0.000000e+00> : vector<2x128xf32>
    %195 = tpu.matmul %192, %132, %cst_109 {dimension_numbers = #tpu.dot_dimension_numbers<[1], [0], [0], [1], [0, 0, 1, 1], [], []>} : vector<2x32xf32>, vector<32x128xf32>, vector<2x128xf32> -> vector<2x128xf32>
    %196 = arith.addf %194, %195 : vector<2x128xf32>
    %197 = vector.extract_strided_slice %196 {offsets = [0, 0], sizes = [2, 32], strides = [1, 1]} : vector<2x128xf32> to vector<2x32xf32>
    %198 = arith.negf %197 : vector<2x32xf32>
    %199 = math.exp %198 : vector<2x32xf32>
    %cst_110 = arith.constant 1.000000e+00 : f32
    %200 = vector.broadcast %cst_110 : f32 to vector<2x32xf32>
    %201 = arith.addf %200, %199 : vector<2x32xf32>
    %202 = arith.divf %200, %201 : vector<2x32xf32>
    %203 = vector.extract_strided_slice %196 {offsets = [0, 32], sizes = [2, 32], strides = [1, 1]} : vector<2x128xf32> to vector<2x32xf32>
    %204 = arith.negf %203 : vector<2x32xf32>
    %205 = math.exp %204 : vector<2x32xf32>
    %cst_111 = arith.constant 1.000000e+00 : f32
    %206 = vector.broadcast %cst_111 : f32 to vector<2x32xf32>
    %207 = arith.addf %206, %205 : vector<2x32xf32>
    %208 = arith.divf %206, %207 : vector<2x32xf32>
    %209 = vector.extract_strided_slice %196 {offsets = [0, 64], sizes = [2, 32], strides = [1, 1]} : vector<2x128xf32> to vector<2x32xf32>
    %210 = math.tanh %209 : vector<2x32xf32>
    %211 = vector.extract_strided_slice %196 {offsets = [0, 96], sizes = [2, 32], strides = [1, 1]} : vector<2x128xf32> to vector<2x32xf32>
    %212 = arith.negf %211 : vector<2x32xf32>
    %213 = math.exp %212 : vector<2x32xf32>
    %cst_112 = arith.constant 1.000000e+00 : f32
    %214 = vector.broadcast %cst_112 : f32 to vector<2x32xf32>
    %215 = arith.addf %214, %213 : vector<2x32xf32>
    %216 = arith.divf %214, %215 : vector<2x32xf32>
    %217 = arith.mulf %208, %190 : vector<2x32xf32>
    %218 = arith.mulf %202, %210 : vector<2x32xf32>
    %219 = arith.addf %217, %218 : vector<2x32xf32>
    %220 = math.tanh %219 : vector<2x32xf32>
    %221 = arith.mulf %216, %220 : vector<2x32xf32>
    %222 = arith.addf %193, %221 : vector<2x32xf32>
    %223 = vector.extract_strided_slice %131 {offsets = [6, 0], sizes = [2, 128], strides = [1, 1]} : vector<8x128xf32> to vector<2x128xf32>
    %cst_113 = arith.constant dense<0.000000e+00> : vector<2x128xf32>
    %224 = tpu.matmul %221, %132, %cst_113 {dimension_numbers = #tpu.dot_dimension_numbers<[1], [0], [0], [1], [0, 0, 1, 1], [], []>} : vector<2x32xf32>, vector<32x128xf32>, vector<2x128xf32> -> vector<2x128xf32>
    %225 = arith.addf %223, %224 : vector<2x128xf32>
    %226 = vector.extract_strided_slice %225 {offsets = [0, 0], sizes = [2, 32], strides = [1, 1]} : vector<2x128xf32> to vector<2x32xf32>
    %227 = arith.negf %226 : vector<2x32xf32>
    %228 = math.exp %227 : vector<2x32xf32>
    %cst_114 = arith.constant 1.000000e+00 : f32
    %229 = vector.broadcast %cst_114 : f32 to vector<2x32xf32>
    %230 = arith.addf %229, %228 : vector<2x32xf32>
    %231 = arith.divf %229, %230 : vector<2x32xf32>
    %232 = vector.extract_strided_slice %225 {offsets = [0, 32], sizes = [2, 32], strides = [1, 1]} : vector<2x128xf32> to vector<2x32xf32>
    %233 = arith.negf %232 : vector<2x32xf32>
    %234 = math.exp %233 : vector<2x32xf32>
    %cst_115 = arith.constant 1.000000e+00 : f32
    %235 = vector.broadcast %cst_115 : f32 to vector<2x32xf32>
    %236 = arith.addf %235, %234 : vector<2x32xf32>
    %237 = arith.divf %235, %236 : vector<2x32xf32>
    %238 = vector.extract_strided_slice %225 {offsets = [0, 64], sizes = [2, 32], strides = [1, 1]} : vector<2x128xf32> to vector<2x32xf32>
    %239 = math.tanh %238 : vector<2x32xf32>
    %240 = vector.extract_strided_slice %225 {offsets = [0, 96], sizes = [2, 32], strides = [1, 1]} : vector<2x128xf32> to vector<2x32xf32>
    %241 = arith.negf %240 : vector<2x32xf32>
    %242 = math.exp %241 : vector<2x32xf32>
    %cst_116 = arith.constant 1.000000e+00 : f32
    %243 = vector.broadcast %cst_116 : f32 to vector<2x32xf32>
    %244 = arith.addf %243, %242 : vector<2x32xf32>
    %245 = arith.divf %243, %244 : vector<2x32xf32>
    %246 = arith.mulf %237, %219 : vector<2x32xf32>
    %247 = arith.mulf %231, %239 : vector<2x32xf32>
    %248 = arith.addf %246, %247 : vector<2x32xf32>
    %249 = math.tanh %248 : vector<2x32xf32>
    %250 = arith.mulf %245, %249 : vector<2x32xf32>
    %251 = arith.addf %222, %250 : vector<2x32xf32>
    %cst_117 = arith.constant 2.500000e-01 : f32
    %252 = vector.broadcast %cst_117 : f32 to vector<2x32xf32>
    %253 = arith.mulf %251, %252 : vector<2x32xf32>
    %c0_118 = arith.constant 0 : index
    %c0_119 = arith.constant 0 : index
    %254 = vector.load %arg12[%c0_118, %c0_119] : memref<32x4xf32, #tpu.memory_space<vmem>>, vector<32x4xf32>
    %cst_120 = arith.constant dense<0.000000e+00> : vector<2x4xf32>
    %255 = tpu.matmul %253, %254, %cst_120 {dimension_numbers = #tpu.dot_dimension_numbers<[1], [0], [0], [1], [0, 0, 1, 1], [], []>} : vector<2x32xf32>, vector<32x4xf32>, vector<2x4xf32> -> vector<2x4xf32>
    %c0_121 = arith.constant 0 : index
    %c0_122 = arith.constant 0 : index
    %256 = vector.load %arg13[%c0_121, %c0_122] : memref<1x4xf32, #tpu.memory_space<vmem>>, vector<1x4xf32>
    %257 = vector.broadcast %256 : vector<1x4xf32> to vector<2x4xf32>
    %258 = arith.addf %255, %257 : vector<2x4xf32>
    %c0_123 = arith.constant 0 : index
    %c0_124 = arith.constant 0 : index
    %259 = vector.load %arg14[%c0_123, %c0_124] : memref<2x4xf32, #tpu.memory_space<vmem>>, vector<2x4xf32>
    tpu.vector_store %arg14[%c0_123, %c0_124], %258 {strides = array<i32>} : memref<2x4xf32, #tpu.memory_space<vmem>>, vector<2x4xf32>,
    return
  }
}

</mosaic_0001>

<llo_original>
// kernel: cnn_ftlstm_forward.1
$region0: #{cnn_ftlstm_forward.1}
  #allocation0 [shape = 'u32[]', space=smem, size = 0x4, offset = 0x4, fixed_abs, tag = 'smem constant byte address 0x4 - core index']
  #allocation1 [shape = 'u32[144,128]{1,0:T(1,128)}', space=vmem, size = 0x12000, scoped, tag = 'internal scratch']
  #allocation2 [shape = 'f32[1152,8]{1,0:T(8,128)}', space=vmem, size = 0x90000, scoped, tag = 'scratch operand']
  #allocation3 [shape = 'f32[128,128]{1,0:T(8,128)}', space=vmem, size = 0x10000, scoped, tag = 'scratch operand']
  %s0 = inlined_call_operand.vmem [shape: f32[512,9], index: 0, kind: input, shape index: {}]
  %s1 = inlined_call_operand.vmem [shape: f32[9,4], index: 1, kind: input, shape index: {}]
  %s2 = inlined_call_operand.vmem [shape: f32[1,4], index: 2, kind: input, shape index: {}]
  %s3 = inlined_call_operand.vmem [shape: f32[1,4], index: 3, kind: input, shape index: {}]
  %s4 = inlined_call_operand.vmem [shape: f32[128,1152], index: 4, kind: input, shape index: {}]
  %s5 = inlined_call_operand.vmem [shape: f32[9,4,8], index: 5, kind: input, shape index: {}]
  %s6 = inlined_call_operand.vmem [shape: f32[1,8], index: 6, kind: input, shape index: {}]
  %s7 = inlined_call_operand.vmem [shape: f32[1,8], index: 7, kind: input, shape index: {}]
  %s8 = inlined_call_operand.vmem [shape: f32[8,128], index: 8, kind: input, shape index: {}]
  %s9 = inlined_call_operand.vmem [shape: f32[4,8,128], index: 9, kind: input, shape index: {}]
  %s10 = inlined_call_operand.vmem [shape: f32[32,128], index: 10, kind: input, shape index: {}]
  %s11 = inlined_call_operand.vmem [shape: f32[1,128], index: 11, kind: input, shape index: {}]
  %s12 = inlined_call_operand.vmem [shape: f32[32,4], index: 12, kind: input, shape index: {}]
  %s13 = inlined_call_operand.vmem [shape: f32[1,4], index: 13, kind: input, shape index: {}]
  %s14 = inlined_call_operand.vmem [shape: f32[2,4], index: 14, kind: output, shape index: {}]
  %s15 = sld [smem:[#allocation0]]
  $region66: #{cnn_ftlstm_forward.1} parent=0
    _
  %s17 = ssub.s32 1, %s15
  %s18 = scalar_select 0, %s17, %s15
  // Predicated region
  $region2: #{cnn_ftlstm_forward.1} parent=0 // pred_check
    _
  $region3: #{cnn_ftlstm_forward.1} parent=0 // pred_check_branch
    %20 = sbr.rel (0) target = $region5
  $region4: #{cnn_ftlstm_forward.1} parent=0 // pred_region
    _
  $region5: #{cnn_ftlstm_forward.1} parent=0 // pred_fallthru
    _
  // Predicated region
  $region6: #{cnn_ftlstm_forward.1} parent=0 // pred_check
    _
  $region7: #{cnn_ftlstm_forward.1} parent=0 // pred_check_branch
    %22 = sbr.rel (0) target = $region9
  $region8: #{cnn_ftlstm_forward.1} parent=0 // pred_region
    _
  $region9: #{cnn_ftlstm_forward.1} parent=0 // pred_fallthru
    _
  // Predicated region
  $region10: #{cnn_ftlstm_forward.1} parent=0 // pred_check
    _
  $region11: #{cnn_ftlstm_forward.1} parent=0 // pred_check_branch
    %24 = sbr.rel (0) target = $region13
  $region12: #{cnn_ftlstm_forward.1} parent=0 // pred_region
    _
  $region13: #{cnn_ftlstm_forward.1} parent=0 // pred_fallthru
    _
  // Predicated region
  $region14: #{cnn_ftlstm_forward.1} parent=0 // pred_check
    _
  $region15: #{cnn_ftlstm_forward.1} parent=0 // pred_check_branch
    %26 = sbr.rel (0) target = $region17
  $region16: #{cnn_ftlstm_forward.1} parent=0 // pred_region
    _
  $region17: #{cnn_ftlstm_forward.1} parent=0 // pred_fallthru
    _
  // Predicated region
  $region18: #{cnn_ftlstm_forward.1} parent=0 // pred_check
    _
  $region19: #{cnn_ftlstm_forward.1} parent=0 // pred_check_branch
    %28 = sbr.rel (0) target = $region21
  $region20: #{cnn_ftlstm_forward.1} parent=0 // pred_region
    _
  $region21: #{cnn_ftlstm_forward.1} parent=0 // pred_fallthru
    _
  // Predicated region
  $region22: #{cnn_ftlstm_forward.1} parent=0 // pred_check
    _
  $region23: #{cnn_ftlstm_forward.1} parent=0 // pred_check_branch
    %30 = sbr.rel (0) target = $region25
  $region24: #{cnn_ftlstm_forward.1} parent=0 // pred_region
    _
  $region25: #{cnn_ftlstm_forward.1} parent=0 // pred_fallthru
    _
  // Predicated region
  $region26: #{cnn_ftlstm_forward.1} parent=0 // pred_check
    _
  $region27: #{cnn_ftlstm_forward.1} parent=0 // pred_check_branch
    %32 = sbr.rel (0) target = $region29
  $region28: #{cnn_ftlstm_forward.1} parent=0 // pred_region
    _
  $region29: #{cnn_ftlstm_forward.1} parent=0 // pred_fallthru
    _
  // Predicated region
  $region30: #{cnn_ftlstm_forward.1} parent=0 // pred_check
    _
  $region31: #{cnn_ftlstm_forward.1} parent=0 // pred_check_branch
    %34 = sbr.rel (0) target = $region33
  $region32: #{cnn_ftlstm_forward.1} parent=0 // pred_region
    _
  $region33: #{cnn_ftlstm_forward.1} parent=0 // pred_fallthru
    _
  // Predicated region
  $region34: #{cnn_ftlstm_forward.1} parent=0 // pred_check
    _
  $region35: #{cnn_ftlstm_forward.1} parent=0 // pred_check_branch
    %36 = sbr.rel (0) target = $region37
  $region36: #{cnn_ftlstm_forward.1} parent=0 // pred_region
    _
  $region37: #{cnn_ftlstm_forward.1} parent=0 // pred_fallthru
    _
  // Predicated region
  $region38: #{cnn_ftlstm_forward.1} parent=0 // pred_check
    _
  $region39: #{cnn_ftlstm_forward.1} parent=0 // pred_check_branch
    %38 = sbr.rel (0) target = $region41
  $region40: #{cnn_ftlstm_forward.1} parent=0 // pred_region
    _
  $region41: #{cnn_ftlstm_forward.1} parent=0 // pred_fallthru
    _
  // Predicated region
  $region42: #{cnn_ftlstm_forward.1} parent=0 // pred_check
    _
  $region43: #{cnn_ftlstm_forward.1} parent=0 // pred_check_branch
    %40 = sbr.rel (0) target = $region45
  $region44: #{cnn_ftlstm_forward.1} parent=0 // pred_region
    _
  $region45: #{cnn_ftlstm_forward.1} parent=0 // pred_fallthru
    _
  // Predicated region
  $region46: #{cnn_ftlstm_forward.1} parent=0 // pred_check
    _
  $region47: #{cnn_ftlstm_forward.1} parent=0 // pred_check_branch
    %42 = sbr.rel (0) target = $region49
  $region48: #{cnn_ftlstm_forward.1} parent=0 // pred_region
    _
  $region49: #{cnn_ftlstm_forward.1} parent=0 // pred_fallthru
    _
  // Predicated region
  $region50: #{cnn_ftlstm_forward.1} parent=0 // pred_check
    _
  $region51: #{cnn_ftlstm_forward.1} parent=0 // pred_check_branch
    %44 = sbr.rel (0) target = $region53
  $region52: #{cnn_ftlstm_forward.1} parent=0 // pred_region
    _
  $region53: #{cnn_ftlstm_forward.1} parent=0 // pred_fallthru
    _
  // Predicated region
  $region54: #{cnn_ftlstm_forward.1} parent=0 // pred_check
    _
  $region55: #{cnn_ftlstm_forward.1} parent=0 // pred_check_branch
    %46 = sbr.rel (0) target = $region57
  $region56: #{cnn_ftlstm_forward.1} parent=0 // pred_region
    _
  $region57: #{cnn_ftlstm_forward.1} parent=0 // pred_fallthru
    _
  %v47 = vld [vmem:[%s0] sm:$0xff]
  %v48 = vld [vmem:[%s0 + $0x8] sm:$0xff]
  %v49 = vld [vmem:[%s0 + $0x10] sm:$0xff]
  %v50 = vld [vmem:[%s0 + $0x18] sm:$0xff]
  %v51 = vld [vmem:[%s0 + $0x20] sm:$0xff]
  %v52 = vld [vmem:[%s0 + $0x28] sm:$0xff]
  %v53 = vld [vmem:[%s0 + $0x30] sm:$0xff]
  %v54 = vld [vmem:[%s0 + $0x38] sm:$0xff]
  %v55 = vld [vmem:[%s0 + $0x40] sm:$0xff]
  %v56 = vld [vmem:[%s0 + $0x48] sm:$0xff]
  %v57 = vld [vmem:[%s0 + $0x50] sm:$0xff]
  %v58 = vld [vmem:[%s0 + $0x58] sm:$0xff]
  %v59 = vld [vmem:[%s0 + $0x60] sm:$0xff]
  %v60 = vld [vmem:[%s0 + $0x68] sm:$0xff]
  %v61 = vld [vmem:[%s0 + $0x70] sm:$0xff]
  %v62 = vld [vmem:[%s0 + $0x78] sm:$0xff]
  %v63 = vld [vmem:[%s0 + $0x80] sm:$0xff]
  %v64 = vld [vmem:[%s0 + $0x88] sm:$0xff]
  %v65 = vld [vmem:[%s0 + $0x90] sm:$0xff]
  %v66 = vld [vmem:[%s0 + $0x98] sm:$0xff]
  %v67 = vld [vmem:[%s0 + $0xa0] sm:$0xff]
  %v68 = vld [vmem:[%s0 + $0xa8] sm:$0xff]
  %v69 = vld [vmem:[%s0 + $0xb0] sm:$0xff]
  %v70 = vld [vmem:[%s0 + $0xb8] sm:$0xff]
  %v71 = vld [vmem:[%s0 + $0xc0] sm:$0xff]
  %v72 = vld [vmem:[%s0 + $0xc8] sm:$0xff]
  %v73 = vld [vmem:[%s0 + $0xd0] sm:$0xff]
  %v74 = vld [vmem:[%s0 + $0xd8] sm:$0xff]
  %v75 = vld [vmem:[%s0 + $0xe0] sm:$0xff]
  %v76 = vld [vmem:[%s0 + $0xe8] sm:$0xff]
  %v77 = vld [vmem:[%s0 + $0xf0] sm:$0xff]
  %v78 = vld [vmem:[%s0 + $0xf8] sm:$0xff]
  %v79 = vld [vmem:[%s0 + $0x100] sm:$0xff]
  %v80 = vld [vmem:[%s0 + $0x108] sm:$0xff]
  %v81 = vld [vmem:[%s0 + $0x110] sm:$0xff]
  %v82 = vld [vmem:[%s0 + $0x118] sm:$0xff]
  %v83 = vld [vmem:[%s0 + $0x120] sm:$0xff]
  %v84 = vld [vmem:[%s0 + $0x128] sm:$0xff]
  %v85 = vld [vmem:[%s0 + $0x130] sm:$0xff]
  %v86 = vld [vmem:[%s0 + $0x138] sm:$0xff]
  %v87 = vld [vmem:[%s0 + $0x140] sm:$0xff]
  %v88 = vld [vmem:[%s0 + $0x148] sm:$0xff]
  %v89 = vld [vmem:[%s0 + $0x150] sm:$0xff]
  %v90 = vld [vmem:[%s0 + $0x158] sm:$0xff]
  %v91 = vld [vmem:[%s0 + $0x160] sm:$0xff]
  %v92 = vld [vmem:[%s0 + $0x168] sm:$0xff]
  %v93 = vld [vmem:[%s0 + $0x170] sm:$0xff]
  %v94 = vld [vmem:[%s0 + $0x178] sm:$0xff]
  %v95 = vld [vmem:[%s0 + $0x180] sm:$0xff]
  %v96 = vld [vmem:[%s0 + $0x188] sm:$0xff]
  %v97 = vld [vmem:[%s0 + $0x190] sm:$0xff]
  %v98 = vld [vmem:[%s0 + $0x198] sm:$0xff]
  %v99 = vld [vmem:[%s0 + $0x1a0] sm:$0xff]
  %v100 = vld [vmem:[%s0 + $0x1a8] sm:$0xff]
  %v101 = vld [vmem:[%s0 + $0x1b0] sm:$0xff]
  %v102 = vld [vmem:[%s0 + $0x1b8] sm:$0xff]
  %v103 = vld [vmem:[%s0 + $0x1c0] sm:$0xff]
  %v104 = vld [vmem:[%s0 + $0x1c8] sm:$0xff]
  %v105 = vld [vmem:[%s0 + $0x1d0] sm:$0xff]
  %v106 = vld [vmem:[%s0 + $0x1d8] sm:$0xff]
  %v107 = vld [vmem:[%s0 + $0x1e0] sm:$0xff]
  %v108 = vld [vmem:[%s0 + $0x1e8] sm:$0xff]
  %v109 = vld [vmem:[%s0 + $0x1f0] sm:$0xff]
  %v110 = vld [vmem:[%s0 + $0x1f8] sm:$0xff]
  %v111 = vld [vmem:[%s1] sm:$0xff]
  %v112 = vld [vmem:[%s1 + $0x8] sm:$0x1]
  %vm113 = vcmask 72704
  %v115 = vsel %vm113, %v47, 0
  %v118 = vsel %vm113, %v48, 0
  %v121 = vsel %vm113, %v49, 0
  %v124 = vsel %vm113, %v50, 0
  %v127 = vsel %vm113, %v51, 0
  %v130 = vsel %vm113, %v52, 0
  %v133 = vsel %vm113, %v53, 0
  %v136 = vsel %vm113, %v54, 0
  %v139 = vsel %vm113, %v55, 0
  %v142 = vsel %vm113, %v56, 0
  %v145 = vsel %vm113, %v57, 0
  %v148 = vsel %vm113, %v58, 0
  %v151 = vsel %vm113, %v59, 0
  %v154 = vsel %vm113, %v60, 0
  %v157 = vsel %vm113, %v61, 0
  %v160 = vsel %vm113, %v62, 0
  %v163 = vsel %vm113, %v63, 0
  %v166 = vsel %vm113, %v64, 0
  %v169 = vsel %vm113, %v65, 0
  %v172 = vsel %vm113, %v66, 0
  %v175 = vsel %vm113, %v67, 0
  %v178 = vsel %vm113, %v68, 0
  %v181 = vsel %vm113, %v69, 0
  %v184 = vsel %vm113, %v70, 0
  %v187 = vsel %vm113, %v71, 0
  %v190 = vsel %vm113, %v72, 0
  %v193 = vsel %vm113, %v73, 0
  %v196 = vsel %vm113, %v74, 0
  %v199 = vsel %vm113, %v75, 0
  %v202 = vsel %vm113, %v76, 0
  %v205 = vsel %vm113, %v77, 0
  %v208 = vsel %vm113, %v78, 0
  %v211 = vsel %vm113, %v79, 0
  %v214 = vsel %vm113, %v80, 0
  %v217 = vsel %vm113, %v81, 0
  %v220 = vsel %vm113, %v82, 0
  %v223 = vsel %vm113, %v83, 0
  %v226 = vsel %vm113, %v84, 0
  %v229 = vsel %vm113, %v85, 0
  %v232 = vsel %vm113, %v86, 0
  %v235 = vsel %vm113, %v87, 0
  %v238 = vsel %vm113, %v88, 0
  %v241 = vsel %vm113, %v89, 0
  %v244 = vsel %vm113, %v90, 0
  %v247 = vsel %vm113, %v91, 0
  %v250 = vsel %vm113, %v92, 0
  %v253 = vsel %vm113, %v93, 0
  %v256 = vsel %vm113, %v94, 0
  %v259 = vsel %vm113, %v95, 0
  %v262 = vsel %vm113, %v96, 0
  %v265 = vsel %vm113, %v97, 0
  %v268 = vsel %vm113, %v98, 0
  %v271 = vsel %vm113, %v99, 0
  %v274 = vsel %vm113, %v100, 0
  %v277 = vsel %vm113, %v101, 0
  %v280 = vsel %vm113, %v102, 0
  %v283 = vsel %vm113, %v103, 0
  %v286 = vsel %vm113, %v104, 0
  %v289 = vsel %vm113, %v105, 0
  %v292 = vsel %vm113, %v106, 0
  %v295 = vsel %vm113, %v107, 0
  %v298 = vsel %vm113, %v108, 0
  %v301 = vsel %vm113, %v109, 0
  %v304 = vsel %vm113, %v110, 0
  %vm306 = vcmask 1040384
  %v308 = vsel %vm306, %v112, 0
  %310 = vmatprep.subr.mxu0 0.0
  %311 = vmatpush1.msra.mxu0 %v111
  %312 = vmatprep.subr.mxu0 0.0
  %313 = vmatpush1.msra.mxu0 %v308
  %314 = vmatprep.subr.mxu0 0.0
  %315 = vmatpush1.msra.mxu0 0.0
  %316 = vmatprep.subr.mxu0 0.0
  %317 = vmatpush1.msra.mxu0 0.0
  %318 = vmatprep.subr.mxu0 0.0
  %319 = vmatpush1.msra.mxu0 0.0
  %320 = vmatprep.subr.mxu0 0.0
  %321 = vmatpush1.msra.mxu0 0.0
  %322 = vmatprep.subr.mxu0 0.0
  %323 = vmatpush1.msra.mxu0 0.0
  %324 = vmatprep.subr.mxu0 0.0
  %325 = vmatpush1.msra.mxu0 0.0
  %326 = vmatprep.subr.mxu0 0.0
  %327 = vmatpush1.msra.mxu0 0.0
  %328 = vmatprep.subr.mxu0 0.0
  %329 = vmatpush1.msra.mxu0 0.0
  %330 = vmatprep.subr.mxu0 0.0
  %331 = vmatpush1.msra.mxu0 0.0
  %332 = vmatprep.subr.mxu0 0.0
  %333 = vmatpush1.msra.mxu0 0.0
  %334 = vmatprep.subr.mxu0 0.0
  %335 = vmatpush1.msra.mxu0 0.0
  %336 = vmatprep.subr.mxu0 0.0
  %337 = vmatpush1.msra.mxu0 0.0
  %338 = vmatprep.subr.mxu0 0.0
  %339 = vmatpush1.msra.mxu0 0.0
  %340 = vmatprep.subr.mxu0 0.0
  %341 = vmatpush1.msra.mxu0 0.0
  %342 = vmatprep.subr.mxu0 0.0
  %343 = vmatpush1.msra.mxu0 0.0
  %344 = vmatprep.subr.mxu0 0.0
  %345 = vmatpush1.msra.mxu0 0.0
  %346 = vmatprep.subr.mxu0 0.0
  %347 = vmatpush1.msra.mxu0 0.0
  %348 = vmatprep.subr.mxu0 0.0
  %349 = vmatpush1.msra.mxu0 0.0
  %350 = vmatprep.subr.mxu0 0.0
  %351 = vmatpush1.msra.mxu0 0.0
  %352 = vmatprep.subr.mxu0 0.0
  %353 = vmatpush1.msra.mxu0 0.0
  %354 = vmatprep.subr.mxu0 0.0
  %355 = vmatpush1.msra.mxu0 0.0
  %356 = vmatprep.subr.mxu0 0.0
  %357 = vmatpush1.msra.mxu0 0.0
  %358 = vmatprep.subr.mxu0 0.0
  %359 = vmatpush1.msra.mxu0 0.0
  %360 = vmatprep.subr.mxu0 0.0
  %361 = vmatpush1.msra.mxu0 0.0
  %362 = vmatprep.subr.mxu0 0.0
  %363 = vmatpush1.msra.mxu0 0.0
  %364 = vmatprep.subr.mxu0 0.0
  %365 = vmatpush1.msra.mxu0 0.0
  %366 = vmatprep.subr.mxu0 0.0
  %367 = vmatpush1.msra.mxu0 0.0
  %368 = vmatprep.subr.mxu0 0.0
  %369 = vmatpush1.msra.mxu0 0.0
  %370 = vmatprep.subr.mxu0 0.0
  %371 = vmatpush1.msra.mxu0 0.0
  %372 = vmatprep.subr.mxu0 0.0
  %373 = vmatpush1.msra.mxu0 0.0
  %374 = vmatprep.mubr.f32.mxu0 0.0
  %375 = vmatmul.mubr.f32.gmra.mrb[0].mxu0 %v115
  %v376 = vpop.f32.mrb[0].mxu0
  %v377 = vadd.f32 0.0, %v376
  %v378 = vpop.f32.mrb[0].mxu0
  %379 = vmatprep.mubr.f32.mxu0 0.0
  %380 = vmatmul.mubr.f32.gmra.mrb[0].mxu0 %v118
  %v381 = vpop.f32.mrb[0].mxu0
  %v382 = vadd.f32 0.0, %v381
  %v383 = vpop.f32.mrb[0].mxu0
  %384 = vmatprep.mubr.f32.mxu0 0.0
  %385 = vmatmul.mubr.f32.gmra.mrb[0].mxu0 %v121
  %v386 = vpop.f32.mrb[0].mxu0
  %v387 = vadd.f32 0.0, %v386
  %v388 = vpop.f32.mrb[0].mxu0
  %389 = vmatprep.mubr.f32.mxu0 0.0
  %390 = vmatmul.mubr.f32.gmra.mrb[0].mxu0 %v124
  %v391 = vpop.f32.mrb[0].mxu0
  %v392 = vadd.f32 0.0, %v391
  %v393 = vpop.f32.mrb[0].mxu0
  %394 = vmatprep.mubr.f32.mxu0 0.0
  %395 = vmatmul.mubr.f32.gmra.mrb[0].mxu0 %v127
  %v396 = vpop.f32.mrb[0].mxu0
  %v397 = vadd.f32 0.0, %v396
  %v398 = vpop.f32.mrb[0].mxu0
  %399 = vmatprep.mubr.f32.mxu0 0.0
  %400 = vmatmul.mubr.f32.gmra.mrb[0].mxu0 %v130
  %v401 = vpop.f32.mrb[0].mxu0
  %v402 = vadd.f32 0.0, %v401
  %v403 = vpop.f32.mrb[0].mxu0
  %404 = vmatprep.mubr.f32.mxu0 0.0
  %405 = vmatmul.mubr.f32.gmra.mrb[0].mxu0 %v133
  %v406 = vpop.f32.mrb[0].mxu0
  %v407 = vadd.f32 0.0, %v406
  %v408 = vpop.f32.mrb[0].mxu0
  %409 = vmatprep.mubr.f32.mxu0 0.0
  %410 = vmatmul.mubr.f32.gmra.mrb[0].mxu0 %v136
  %v411 = vpop.f32.mrb[0].mxu0
  %v412 = vadd.f32 0.0, %v411
  %v413 = vpop.f32.mrb[0].mxu0
  %414 = vmatprep.mubr.f32.mxu0 0.0
  %415 = vmatmul.mubr.f32.gmra.mrb[0].mxu0 %v139
  %v416 = vpop.f32.mrb[0].mxu0
  %v417 = vadd.f32 0.0, %v416
  %v418 = vpop.f32.mrb[0].mxu0
  %419 = vmatprep.mubr.f32.mxu0 0.0
  %420 = vmatmul.mubr.f32.gmra.mrb[0].mxu0 %v142
  %v421 = vpop.f32.mrb[0].mxu0
  %v422 = vadd.f32 0.0, %v421
  %v423 = vpop.f32.mrb[0].mxu0
  %424 = vmatprep.mubr.f32.mxu0 0.0
  %425 = vmatmul.mubr.f32.gmra.mrb[0].mxu0 %v145
  %v426 = vpop.f32.mrb[0].mxu0
  %v427 = vadd.f32 0.0, %v426
  %v428 = vpop.f32.mrb[0].mxu0
  %429 = vmatprep.mubr.f32.mxu0 0.0
  %430 = vmatmul.mubr.f32.gmra.mrb[0].mxu0 %v148
  %v431 = vpop.f32.mrb[0].mxu0
  %v432 = vadd.f32 0.0, %v431
  %v433 = vpop.f32.mrb[0].mxu0
  %434 = vmatprep.mubr.f32.mxu0 0.0
  %435 = vmatmul.mubr.f32.gmra.mrb[0].mxu0 %v151
  %v436 = vpop.f32.mrb[0].mxu0
  %v437 = vadd.f32 0.0, %v436
  %v438 = vpop.f32.mrb[0].mxu0
  %439 = vmatprep.mubr.f32.mxu0 0.0
  %440 = vmatmul.mubr.f32.gmra.mrb[0].mxu0 %v154
  %v441 = vpop.f32.mrb[0].mxu0
  %v442 = vadd.f32 0.0, %v441
  %v443 = vpop.f32.mrb[0].mxu0
  %444 = vmatprep.mubr.f32.mxu0 0.0
  %445 = vmatmul.mubr.f32.gmra.mrb[0].mxu0 %v157
  %v446 = vpop.f32.mrb[0].mxu0
  %v447 = vadd.f32 0.0, %v446
  %v448 = vpop.f32.mrb[0].mxu0
  %449 = vmatprep.mubr.f32.mxu0 0.0
  %450 = vmatmul.mubr.f32.gmra.mrb[0].mxu0 %v160
  %v451 = vpop.f32.mrb[0].mxu0
  %v452 = vadd.f32 0.0, %v451
  %v453 = vpop.f32.mrb[0].mxu0
  %454 = vmatprep.mubr.f32.mxu0 0.0
  %455 = vmatmul.mubr.f32.gmra.mrb[0].mxu0 %v163
  %v456 = vpop.f32.mrb[0].mxu0
  %v457 = vadd.f32 0.0, %v456
  %v458 = vpop.f32.mrb[0].mxu0
  %459 = vmatprep.mubr.f32.mxu0 0.0
  %460 = vmatmul.mubr.f32.gmra.mrb[0].mxu0 %v166
  %v461 = vpop.f32.mrb[0].mxu0
  %v462 = vadd.f32 0.0, %v461
  %v463 = vpop.f32.mrb[0].mxu0
  %464 = vmatprep.mubr.f32.mxu0 0.0
  %465 = vmatmul.mubr.f32.gmra.mrb[0].mxu0 %v169
  %v466 = vpop.f32.mrb[0].mxu0
  %v467 = vadd.f32 0.0, %v466
  %v468 = vpop.f32.mrb[0].mxu0
  %469 = vmatprep.mubr.f32.mxu0 0.0
  %470 = vmatmul.mubr.f32.gmra.mrb[0].mxu0 %v172
  %v471 = vpop.f32.mrb[0].mxu0
  %v472 = vadd.f32 0.0, %v471
  %v473 = vpop.f32.mrb[0].mxu0
  %474 = vmatprep.mubr.f32.mxu0 0.0
  %475 = vmatmul.mubr.f32.gmra.mrb[0].mxu0 %v175
  %v476 = vpop.f32.mrb[0].mxu0
  %v477 = vadd.f32 0.0, %v476
  %v478 = vpop.f32.mrb[0].mxu0
  %479 = vmatprep.mubr.f32.mxu0 0.0
  %480 = vmatmul.mubr.f32.gmra.mrb[0].mxu0 %v178
  %v481 = vpop.f32.mrb[0].mxu0
  %v482 = vadd.f32 0.0, %v481
  %v483 = vpop.f32.mrb[0].mxu0
  %484 = vmatprep.mubr.f32.mxu0 0.0
  %485 = vmatmul.mubr.f32.gmra.mrb[0].mxu0 %v181
  %v486 = vpop.f32.mrb[0].mxu0
  %v487 = vadd.f32 0.0, %v486
  %v488 = vpop.f32.mrb[0].mxu0
  %489 = vmatprep.mubr.f32.mxu0 0.0
  %490 = vmatmul.mubr.f32.gmra.mrb[0].mxu0 %v184
  %v491 = vpop.f32.mrb[0].mxu0
  %v492 = vadd.f32 0.0, %v491
  %v493 = vpop.f32.mrb[0].mxu0
  %494 = vmatprep.mubr.f32.mxu0 0.0
  %495 = vmatmul.mubr.f32.gmra.mrb[0].mxu0 %v187
  %v496 = vpop.f32.mrb[0].mxu0
  %v497 = vadd.f32 0.0, %v496
  %v498 = vpop.f32.mrb[0].mxu0
  %499 = vmatprep.mubr.f32.mxu0 0.0
  %500 = vmatmul.mubr.f32.gmra.mrb[0].mxu0 %v190
  %v501 = vpop.f32.mrb[0].mxu0
  %v502 = vadd.f32 0.0, %v501
  %v503 = vpop.f32.mrb[0].mxu0
  %504 = vmatprep.mubr.f32.mxu0 0.0
  %505 = vmatmul.mubr.f32.gmra.mrb[0].mxu0 %v193
  %v506 = vpop.f32.mrb[0].mxu0
  %v507 = vadd.f32 0.0, %v506
  %v508 = vpop.f32.mrb[0].mxu0
  %509 = vmatprep.mubr.f32.mxu0 0.0
  %510 = vmatmul.mubr.f32.gmra.mrb[0].mxu0 %v196
  %v511 = vpop.f32.mrb[0].mxu0
  %v512 = vadd.f32 0.0, %v511
  %v513 = vpop.f32.mrb[0].mxu0
  %514 = vmatprep.mubr.f32.mxu0 0.0
  %515 = vmatmul.mubr.f32.gmra.mrb[0].mxu0 %v199
  %v516 = vpop.f32.mrb[0].mxu0
  %v517 = vadd.f32 0.0, %v516
  %v518 = vpop.f32.mrb[0].mxu0
  %519 = vmatprep.mubr.f32.mxu0 0.0
  %520 = vmatmul.mubr.f32.gmra.mrb[0].mxu0 %v202
  %v521 = vpop.f32.mrb[0].mxu0
  %v522 = vadd.f32 0.0, %v521
  %v523 = vpop.f32.mrb[0].mxu0
  %524 = vmatprep.mubr.f32.mxu0 0.0
  %525 = vmatmul.mubr.f32.gmra.mrb[0].mxu0 %v205
  %v526 = vpop.f32.mrb[0].mxu0
  %v527 = vadd.f32 0.0, %v526
  %v528 = vpop.f32.mrb[0].mxu0
  %529 = vmatprep.mubr.f32.mxu0 0.0
  %530 = vmatmul.mubr.f32.gmra.mrb[0].mxu0 %v208
  %v531 = vpop.f32.mrb[0].mxu0
  %v532 = vadd.f32 0.0, %v531
  %v533 = vpop.f32.mrb[0].mxu0
  %534 = vmatprep.mubr.f32.mxu0 0.0
  %535 = vmatmul.mubr.f32.gmra.mrb[0].mxu0 %v211
  %v536 = vpop.f32.mrb[0].mxu0
  %v537 = vadd.f32 0.0, %v536
  %v538 = vpop.f32.mrb[0].mxu0
  %539 = vmatprep.mubr.f32.mxu0 0.0
  %540 = vmatmul.mubr.f32.gmra.mrb[0].mxu0 %v214
  %v541 = vpop.f32.mrb[0].mxu0
  %v542 = vadd.f32 0.0, %v541
  %v543 = vpop.f32.mrb[0].mxu0
  %544 = vmatprep.mubr.f32.mxu0 0.0
  %545 = vmatmul.mubr.f32.gmra.mrb[0].mxu0 %v217
  %v546 = vpop.f32.mrb[0].mxu0
  %v547 = vadd.f32 0.0, %v546
  %v548 = vpop.f32.mrb[0].mxu0
  %549 = vmatprep.mubr.f32.mxu0 0.0
  %550 = vmatmul.mubr.f32.gmra.mrb[0].mxu0 %v220
  %v551 = vpop.f32.mrb[0].mxu0
  %v552 = vadd.f32 0.0, %v551
  %v553 = vpop.f32.mrb[0].mxu0
  %554 = vmatprep.mubr.f32.mxu0 0.0
  %555 = vmatmul.mubr.f32.gmra.mrb[0].mxu0 %v223
  %v556 = vpop.f32.mrb[0].mxu0
  %v557 = vadd.f32 0.0, %v556
  %v558 = vpop.f32.mrb[0].mxu0
  %559 = vmatprep.mubr.f32.mxu0 0.0
  %560 = vmatmul.mubr.f32.gmra.mrb[0].mxu0 %v226
  %v561 = vpop.f32.mrb[0].mxu0
  %v562 = vadd.f32 0.0, %v561
  %v563 = vpop.f32.mrb[0].mxu0
  %564 = vmatprep.mubr.f32.mxu0 0.0
  %565 = vmatmul.mubr.f32.gmra.mrb[0].mxu0 %v229
  %v566 = vpop.f32.mrb[0].mxu0
  %v567 = vadd.f32 0.0, %v566
  %v568 = vpop.f32.mrb[0].mxu0
  %569 = vmatprep.mubr.f32.mxu0 0.0
  %570 = vmatmul.mubr.f32.gmra.mrb[0].mxu0 %v232
  %v571 = vpop.f32.mrb[0].mxu0
  %v572 = vadd.f32 0.0, %v571
  %v573 = vpop.f32.mrb[0].mxu0
  %574 = vmatprep.mubr.f32.mxu0 0.0
  %575 = vmatmul.mubr.f32.gmra.mrb[0].mxu0 %v235
  %v576 = vpop.f32.mrb[0].mxu0
  %v577 = vadd.f32 0.0, %v576
  %v578 = vpop.f32.mrb[0].mxu0
  %579 = vmatprep.mubr.f32.mxu0 0.0
  %580 = vmatmul.mubr.f32.gmra.mrb[0].mxu0 %v238
  %v581 = vpop.f32.mrb[0].mxu0
  %v582 = vadd.f32 0.0, %v581
  %v583 = vpop.f32.mrb[0].mxu0
  %584 = vmatprep.mubr.f32.mxu0 0.0
  %585 = vmatmul.mubr.f32.gmra.mrb[0].mxu0 %v241
  %v586 = vpop.f32.mrb[0].mxu0
  %v587 = vadd.f32 0.0, %v586
  %v588 = vpop.f32.mrb[0].mxu0
  %589 = vmatprep.mubr.f32.mxu0 0.0
  %590 = vmatmul.mubr.f32.gmra.mrb[0].mxu0 %v244
  %v591 = vpop.f32.mrb[0].mxu0
  %v592 = vadd.f32 0.0, %v591
  %v593 = vpop.f32.mrb[0].mxu0
  %594 = vmatprep.mubr.f32.mxu0 0.0
  %595 = vmatmul.mubr.f32.gmra.mrb[0].mxu0 %v247
  %v596 = vpop.f32.mrb[0].mxu0
  %v597 = vadd.f32 0.0, %v596
  %v598 = vpop.f32.mrb[0].mxu0
  %599 = vmatprep.mubr.f32.mxu0 0.0
  %600 = vmatmul.mubr.f32.gmra.mrb[0].mxu0 %v250
  %v601 = vpop.f32.mrb[0].mxu0
  %v602 = vadd.f32 0.0, %v601
  %v603 = vpop.f32.mrb[0].mxu0
  %604 = vmatprep.mubr.f32.mxu0 0.0
  %605 = vmatmul.mubr.f32.gmra.mrb[0].mxu0 %v253
  %v606 = vpop.f32.mrb[0].mxu0
  %v607 = vadd.f32 0.0, %v606
  %v608 = vpop.f32.mrb[0].mxu0
  %609 = vmatprep.mubr.f32.mxu0 0.0
  %610 = vmatmul.mubr.f32.gmra.mrb[0].mxu0 %v256
  %v611 = vpop.f32.mrb[0].mxu0
  %v612 = vadd.f32 0.0, %v611
  %v613 = vpop.f32.mrb[0].mxu0
  %614 = vmatprep.mubr.f32.mxu0 0.0
  %615 = vmatmul.mubr.f32.gmra.mrb[0].mxu0 %v259
  %v616 = vpop.f32.mrb[0].mxu0
  %v617 = vadd.f32 0.0, %v616
  %v618 = vpop.f32.mrb[0].mxu0
  %619 = vmatprep.mubr.f32.mxu0 0.0
  %620 = vmatmul.mubr.f32.gmra.mrb[0].mxu0 %v262
  %v621 = vpop.f32.mrb[0].mxu0
  %v622 = vadd.f32 0.0, %v621
  %v623 = vpop.f32.mrb[0].mxu0
  %624 = vmatprep.mubr.f32.mxu0 0.0
  %625 = vmatmul.mubr.f32.gmra.mrb[0].mxu0 %v265
  %v626 = vpop.f32.mrb[0].mxu0
  %v627 = vadd.f32 0.0, %v626
  %v628 = vpop.f32.mrb[0].mxu0
  %629 = vmatprep.mubr.f32.mxu0 0.0
  %630 = vmatmul.mubr.f32.gmra.mrb[0].mxu0 %v268
  %v631 = vpop.f32.mrb[0].mxu0
  %v632 = vadd.f32 0.0, %v631
  %v633 = vpop.f32.mrb[0].mxu0
  %634 = vmatprep.mubr.f32.mxu0 0.0
  %635 = vmatmul.mubr.f32.gmra.mrb[0].mxu0 %v271
  %v636 = vpop.f32.mrb[0].mxu0
  %v637 = vadd.f32 0.0, %v636
  %v638 = vpop.f32.mrb[0].mxu0
  %639 = vmatprep.mubr.f32.mxu0 0.0
  %640 = vmatmul.mubr.f32.gmra.mrb[0].mxu0 %v274
  %v641 = vpop.f32.mrb[0].mxu0
  %v642 = vadd.f32 0.0, %v641
  %v643 = vpop.f32.mrb[0].mxu0
  %644 = vmatprep.mubr.f32.mxu0 0.0
  %645 = vmatmul.mubr.f32.gmra.mrb[0].mxu0 %v277
  %v646 = vpop.f32.mrb[0].mxu0
  %v647 = vadd.f32 0.0, %v646
  %v648 = vpop.f32.mrb[0].mxu0
  %649 = vmatprep.mubr.f32.mxu0 0.0
  %650 = vmatmul.mubr.f32.gmra.mrb[0].mxu0 %v280
  %v651 = vpop.f32.mrb[0].mxu0
  %v652 = vadd.f32 0.0, %v651
  %v653 = vpop.f32.mrb[0].mxu0
  %654 = vmatprep.mubr.f32.mxu0 0.0
  %655 = vmatmul.mubr.f32.gmra.mrb[0].mxu0 %v283
  %v656 = vpop.f32.mrb[0].mxu0
  %v657 = vadd.f32 0.0, %v656
  %v658 = vpop.f32.mrb[0].mxu0
  %659 = vmatprep.mubr.f32.mxu0 0.0
  %660 = vmatmul.mubr.f32.gmra.mrb[0].mxu0 %v286
  %v661 = vpop.f32.mrb[0].mxu0
  %v662 = vadd.f32 0.0, %v661
  %v663 = vpop.f32.mrb[0].mxu0
  %664 = vmatprep.mubr.f32.mxu0 0.0
  %665 = vmatmul.mubr.f32.gmra.mrb[0].mxu0 %v289
  %v666 = vpop.f32.mrb[0].mxu0
  %v667 = vadd.f32 0.0, %v666
  %v668 = vpop.f32.mrb[0].mxu0
  %669 = vmatprep.mubr.f32.mxu0 0.0
  %670 = vmatmul.mubr.f32.gmra.mrb[0].mxu0 %v292
  %v671 = vpop.f32.mrb[0].mxu0
  %v672 = vadd.f32 0.0, %v671
  %v673 = vpop.f32.mrb[0].mxu0
  %674 = vmatprep.mubr.f32.mxu0 0.0
  %675 = vmatmul.mubr.f32.gmra.mrb[0].mxu0 %v295
  %v676 = vpop.f32.mrb[0].mxu0
  %v677 = vadd.f32 0.0, %v676
  %v678 = vpop.f32.mrb[0].mxu0
  %679 = vmatprep.mubr.f32.mxu0 0.0
  %680 = vmatmul.mubr.f32.gmra.mrb[0].mxu0 %v298
  %v681 = vpop.f32.mrb[0].mxu0
  %v682 = vadd.f32 0.0, %v681
  %v683 = vpop.f32.mrb[0].mxu0
  %684 = vmatprep.mubr.f32.mxu0 0.0
  %685 = vmatmul.mubr.f32.gmra.mrb[0].mxu0 %v301
  %v686 = vpop.f32.mrb[0].mxu0
  %v687 = vadd.f32 0.0, %v686
  %v688 = vpop.f32.mrb[0].mxu0
  %689 = vmatprep.mubr.f32.mxu0 0.0
  %690 = vmatmul.mubr.f32.gmra.mrb[0].mxu0 %v304
  %v691 = vpop.f32.mrb[0].mxu0
  %v692 = vadd.f32 0.0, %v691
  %v693 = vpop.f32.mrb[0].mxu0
  %694 = vdwg.mxu0
  %v695 = vld [vmem:[%s2] sm:$0x1]
  %v696 = vld [vmem:[%s3] sm:$0x1]
  %vm697 = vcmask 31744
  %v698 = vsel %vm697, %v377, 0.0
  %v699 = vsel %vm697, %v382, 0.0
  %v700 = vadd.f32 %v698, %v699
  %v701 = vsel %vm697, %v387, 0.0
  %v702 = vadd.f32 %v700, %v701
  %v703 = vsel %vm697, %v392, 0.0
  %v704 = vadd.f32 %v702, %v703
  %v705 = vsel %vm697, %v397, 0.0
  %v706 = vadd.f32 %v704, %v705
  %v707 = vsel %vm697, %v402, 0.0
  %v708 = vadd.f32 %v706, %v707
  %v709 = vsel %vm697, %v407, 0.0
  %v710 = vadd.f32 %v708, %v709
  %v711 = vsel %vm697, %v412, 0.0
  %v712 = vadd.f32 %v710, %v711
  %v713 = vsel %vm697, %v417, 0.0
  %v714 = vadd.f32 %v712, %v713
  %v715 = vsel %vm697, %v422, 0.0
  %v716 = vadd.f32 %v714, %v715
  %v717 = vsel %vm697, %v427, 0.0
  %v718 = vadd.f32 %v716, %v717
  %v719 = vsel %vm697, %v432, 0.0
  %v720 = vadd.f32 %v718, %v719
  %v721 = vsel %vm697, %v437, 0.0
  %v722 = vadd.f32 %v720, %v721
  %v723 = vsel %vm697, %v442, 0.0
  %v724 = vadd.f32 %v722, %v723
  %v725 = vsel %vm697, %v447, 0.0
  %v726 = vadd.f32 %v724, %v725
  %v727 = vsel %vm697, %v452, 0.0
  %v728 = vadd.f32 %v726, %v727
  %v729 = vsel %vm697, %v457, 0.0
  %v730 = vadd.f32 %v728, %v729
  %v731 = vsel %vm697, %v462, 0.0
  %v732 = vadd.f32 %v730, %v731
  %v733 = vsel %vm697, %v467, 0.0
  %v734 = vadd.f32 %v732, %v733
  %v735 = vsel %vm697, %v472, 0.0
  %v736 = vadd.f32 %v734, %v735
  %v737 = vsel %vm697, %v477, 0.0
  %v738 = vadd.f32 %v736, %v737
  %v739 = vsel %vm697, %v482, 0.0
  %v740 = vadd.f32 %v738, %v739
  %v741 = vsel %vm697, %v487, 0.0
  %v742 = vadd.f32 %v740, %v741
  %v743 = vsel %vm697, %v492, 0.0
  %v744 = vadd.f32 %v742, %v743
  %v745 = vsel %vm697, %v497, 0.0
  %v746 = vadd.f32 %v744, %v745
  %v747 = vsel %vm697, %v502, 0.0
  %v748 = vadd.f32 %v746, %v747
  %v749 = vsel %vm697, %v507, 0.0
  %v750 = vadd.f32 %v748, %v749
  %v751 = vsel %vm697, %v512, 0.0
  %v752 = vadd.f32 %v750, %v751
  %v753 = vsel %vm697, %v517, 0.0
  %v754 = vadd.f32 %v752, %v753
  %v755 = vsel %vm697, %v522, 0.0
  %v756 = vadd.f32 %v754, %v755
  %v757 = vsel %vm697, %v527, 0.0
  %v758 = vadd.f32 %v756, %v757
  %v759 = vsel %vm697, %v532, 0.0
  %v760 = vadd.f32 %v758, %v759
  %v761 = vsel %vm697, %v537, 0.0
  %v762 = vadd.f32 %v760, %v761
  %v763 = vsel %vm697, %v542, 0.0
  %v764 = vadd.f32 %v762, %v763
  %v765 = vsel %vm697, %v547, 0.0
  %v766 = vadd.f32 %v764, %v765
  %v767 = vsel %vm697, %v552, 0.0
  %v768 = vadd.f32 %v766, %v767
  %v769 = vsel %vm697, %v557, 0.0
  %v770 = vadd.f32 %v768, %v769
  %v771 = vsel %vm697, %v562, 0.0
  %v772 = vadd.f32 %v770, %v771
  %v773 = vsel %vm697, %v567, 0.0
  %v774 = vadd.f32 %v772, %v773
  %v775 = vsel %vm697, %v572, 0.0
  %v776 = vadd.f32 %v774, %v775
  %v777 = vsel %vm697, %v577, 0.0
  %v778 = vadd.f32 %v776, %v777
  %v779 = vsel %vm697, %v582, 0.0
  %v780 = vadd.f32 %v778, %v779
  %v781 = vsel %vm697, %v587, 0.0
  %v782 = vadd.f32 %v780, %v781
  %v783 = vsel %vm697, %v592, 0.0
  %v784 = vadd.f32 %v782, %v783
  %v785 = vsel %vm697, %v597, 0.0
  %v786 = vadd.f32 %v784, %v785
  %v787 = vsel %vm697, %v602, 0.0
  %v788 = vadd.f32 %v786, %v787
  %v789 = vsel %vm697, %v607, 0.0
  %v790 = vadd.f32 %v788, %v789
  %v791 = vsel %vm697, %v612, 0.0
  %v792 = vadd.f32 %v790, %v791
  %v793 = vsel %vm697, %v617, 0.0
  %v794 = vadd.f32 %v792, %v793
  %v795 = vsel %vm697, %v622, 0.0
  %v796 = vadd.f32 %v794, %v795
  %v797 = vsel %vm697, %v627, 0.0
  %v798 = vadd.f32 %v796, %v797
  %v799 = vsel %vm697, %v632, 0.0
  %v800 = vadd.f32 %v798, %v799
  %v801 = vsel %vm697, %v637, 0.0
  %v802 = vadd.f32 %v800, %v801
  %v803 = vsel %vm697, %v642, 0.0
  %v804 = vadd.f32 %v802, %v803
  %v805 = vsel %vm697, %v647, 0.0
  %v806 = vadd.f32 %v804, %v805
  %v807 = vsel %vm697, %v652, 0.0
  %v808 = vadd.f32 %v806, %v807
  %v809 = vsel %vm697, %v657, 0.0
  %v810 = vadd.f32 %v808, %v809
  %v811 = vsel %vm697, %v662, 0.0
  %v812 = vadd.f32 %v810, %v811
  %v813 = vsel %vm697, %v667, 0.0
  %v814 = vadd.f32 %v812, %v813
  %v815 = vsel %vm697, %v672, 0.0
  %v816 = vadd.f32 %v814, %v815
  %v817 = vsel %vm697, %v677, 0.0
  %v818 = vadd.f32 %v816, %v817
  %v819 = vsel %vm697, %v682, 0.0
  %v820 = vadd.f32 %v818, %v819
  %v821 = vsel %vm697, %v687, 0.0
  %v822 = vadd.f32 %v820, %v821
  %v823 = vsel %vm697, %v692, 0.0
  %v824 = vadd.f32 %v822, %v823
  %v825 = vrot.slane %v824, 4
  %v826 = vadd.f32 %v824, %v825
  %v827 = vrot.slane %v826, 2
  %v828 = vadd.f32 %v826, %v827
  %v829 = vrot.slane %v828, 1
  %v830 = vadd.f32 %v828, %v829
  %v831 = vmul.f32 %v377, %v377
  %v832 = vmul.f32 %v382, %v382
  %v833 = vmul.f32 %v387, %v387
  %v834 = vmul.f32 %v392, %v392
  %v835 = vmul.f32 %v397, %v397
  %v836 = vmul.f32 %v402, %v402
  %v837 = vmul.f32 %v407, %v407
  %v838 = vmul.f32 %v412, %v412
  %v839 = vmul.f32 %v417, %v417
  %v840 = vmul.f32 %v422, %v422
  %v841 = vmul.f32 %v427, %v427
  %v842 = vmul.f32 %v432, %v432
  %v843 = vmul.f32 %v437, %v437
  %v844 = vmul.f32 %v442, %v442
  %v845 = vmul.f32 %v447, %v447
  %v846 = vmul.f32 %v452, %v452
  %v847 = vmul.f32 %v457, %v457
  %v848 = vmul.f32 %v462, %v462
  %v849 = vmul.f32 %v467, %v467
  %v850 = vmul.f32 %v472, %v472
  %v851 = vmul.f32 %v477, %v477
  %v852 = vmul.f32 %v482, %v482
  %v853 = vmul.f32 %v487, %v487
  %v854 = vmul.f32 %v492, %v492
  %v855 = vmul.f32 %v497, %v497
  %v856 = vmul.f32 %v502, %v502
  %v857 = vmul.f32 %v507, %v507
  %v858 = vmul.f32 %v512, %v512
  %v859 = vmul.f32 %v517, %v517
  %v860 = vmul.f32 %v522, %v522
  %v861 = vmul.f32 %v527, %v527
  %v862 = vmul.f32 %v532, %v532
  %v863 = vmul.f32 %v537, %v537
  %v864 = vmul.f32 %v542, %v542
  %v865 = vmul.f32 %v547, %v547
  %v866 = vmul.f32 %v552, %v552
  %v867 = vmul.f32 %v557, %v557
  %v868 = vmul.f32 %v562, %v562
  %v869 = vmul.f32 %v567, %v567
  %v870 = vmul.f32 %v572, %v572
  %v871 = vmul.f32 %v577, %v577
  %v872 = vmul.f32 %v582, %v582
  %v873 = vmul.f32 %v587, %v587
  %v874 = vmul.f32 %v592, %v592
  %v875 = vmul.f32 %v597, %v597
  %v876 = vmul.f32 %v602, %v602
  %v877 = vmul.f32 %v607, %v607
  %v878 = vmul.f32 %v612, %v612
  %v879 = vmul.f32 %v617, %v617
  %v880 = vmul.f32 %v622, %v622
  %v881 = vmul.f32 %v627, %v627
  %v882 = vmul.f32 %v632, %v632
  %v883 = vmul.f32 %v637, %v637
  %v884 = vmul.f32 %v642, %v642
  %v885 = vmul.f32 %v647, %v647
  %v886 = vmul.f32 %v652, %v652
  %v887 = vmul.f32 %v657, %v657
  %v888 = vmul.f32 %v662, %v662
  %v889 = vmul.f32 %v667, %v667
  %v890 = vmul.f32 %v672, %v672
  %v891 = vmul.f32 %v677, %v677
  %v892 = vmul.f32 %v682, %v682
  %v893 = vmul.f32 %v687, %v687
  %v894 = vmul.f32 %v692, %v692
  %v895 = vsel %vm697, %v831, 0.0
  %v896 = vsel %vm697, %v832, 0.0
  %v897 = vadd.f32 %v895, %v896
  %v898 = vsel %vm697, %v833, 0.0
  %v899 = vadd.f32 %v897, %v898
  %v900 = vsel %vm697, %v834, 0.0
  %v901 = vadd.f32 %v899, %v900
  %v902 = vsel %vm697, %v835, 0.0
  %v903 = vadd.f32 %v901, %v902
  %v904 = vsel %vm697, %v836, 0.0
  %v905 = vadd.f32 %v903, %v904
  %v906 = vsel %vm697, %v837, 0.0
  %v907 = vadd.f32 %v905, %v906
  %v908 = vsel %vm697, %v838, 0.0
  %v909 = vadd.f32 %v907, %v908
  %v910 = vsel %vm697, %v839, 0.0
  %v911 = vadd.f32 %v909, %v910
  %v912 = vsel %vm697, %v840, 0.0
  %v913 = vadd.f32 %v911, %v912
  %v914 = vsel %vm697, %v841, 0.0
  %v915 = vadd.f32 %v913, %v914
  %v916 = vsel %vm697, %v842, 0.0
  %v917 = vadd.f32 %v915, %v916
  %v918 = vsel %vm697, %v843, 0.0
  %v919 = vadd.f32 %v917, %v918
  %v920 = vsel %vm697, %v844, 0.0
  %v921 = vadd.f32 %v919, %v920
  %v922 = vsel %vm697, %v845, 0.0
  %v923 = vadd.f32 %v921, %v922
  %v924 = vsel %vm697, %v846, 0.0
  %v925 = vadd.f32 %v923, %v924
  %v926 = vsel %vm697, %v847, 0.0
  %v927 = vadd.f32 %v925, %v926
  %v928 = vsel %vm697, %v848, 0.0
  %v929 = vadd.f32 %v927, %v928
  %v930 = vsel %vm697, %v849, 0.0
  %v931 = vadd.f32 %v929, %v930
  %v932 = vsel %vm697, %v850, 0.0
  %v933 = vadd.f32 %v931, %v932
  %v934 = vsel %vm697, %v851, 0.0
  %v935 = vadd.f32 %v933, %v934
  %v936 = vsel %vm697, %v852, 0.0
  %v937 = vadd.f32 %v935, %v936
  %v938 = vsel %vm697, %v853, 0.0
  %v939 = vadd.f32 %v937, %v938
  %v940 = vsel %vm697, %v854, 0.0
  %v941 = vadd.f32 %v939, %v940
  %v942 = vsel %vm697, %v855, 0.0
  %v943 = vadd.f32 %v941, %v942
  %v944 = vsel %vm697, %v856, 0.0
  %v945 = vadd.f32 %v943, %v944
  %v946 = vsel %vm697, %v857, 0.0
  %v947 = vadd.f32 %v945, %v946
  %v948 = vsel %vm697, %v858, 0.0
  %v949 = vadd.f32 %v947, %v948
  %v950 = vsel %vm697, %v859, 0.0
  %v951 = vadd.f32 %v949, %v950
  %v952 = vsel %vm697, %v860, 0.0
  %v953 = vadd.f32 %v951, %v952
  %v954 = vsel %vm697, %v861, 0.0
  %v955 = vadd.f32 %v953, %v954
  %v956 = vsel %vm697, %v862, 0.0
  %v957 = vadd.f32 %v955, %v956
  %v958 = vsel %vm697, %v863, 0.0
  %v959 = vadd.f32 %v957, %v958
  %v960 = vsel %vm697, %v864, 0.0
  %v961 = vadd.f32 %v959, %v960
  %v962 = vsel %vm697, %v865, 0.0
  %v963 = vadd.f32 %v961, %v962
  %v964 = vsel %vm697, %v866, 0.0
  %v965 = vadd.f32 %v963, %v964
  %v966 = vsel %vm697, %v867, 0.0
  %v967 = vadd.f32 %v965, %v966
  %v968 = vsel %vm697, %v868, 0.0
  %v969 = vadd.f32 %v967, %v968
  %v970 = vsel %vm697, %v869, 0.0
  %v971 = vadd.f32 %v969, %v970
  %v972 = vsel %vm697, %v870, 0.0
  %v973 = vadd.f32 %v971, %v972
  %v974 = vsel %vm697, %v871, 0.0
  %v975 = vadd.f32 %v973, %v974
  %v976 = vsel %vm697, %v872, 0.0
  %v977 = vadd.f32 %v975, %v976
  %v978 = vsel %vm697, %v873, 0.0
  %v979 = vadd.f32 %v977, %v978
  %v980 = vsel %vm697, %v874, 0.0
  %v981 = vadd.f32 %v979, %v980
  %v982 = vsel %vm697, %v875, 0.0
  %v983 = vadd.f32 %v981, %v982
  %v984 = vsel %vm697, %v876, 0.0
  %v985 = vadd.f32 %v983, %v984
  %v986 = vsel %vm697, %v877, 0.0
  %v987 = vadd.f32 %v985, %v986
  %v988 = vsel %vm697, %v878, 0.0
  %v989 = vadd.f32 %v987, %v988
  %v990 = vsel %vm697, %v879, 0.0
  %v991 = vadd.f32 %v989, %v990
  %v992 = vsel %vm697, %v880, 0.0
  %v993 = vadd.f32 %v991, %v992
  %v994 = vsel %vm697, %v881, 0.0
  %v995 = vadd.f32 %v993, %v994
  %v996 = vsel %vm697, %v882, 0.0
  %v997 = vadd.f32 %v995, %v996
  %v998 = vsel %vm697, %v883, 0.0
  %v999 = vadd.f32 %v997, %v998
  %v1000 = vsel %vm697, %v884, 0.0
  %v1001 = vadd.f32 %v999, %v1000
  %v1002 = vsel %vm697, %v885, 0.0
  %v1003 = vadd.f32 %v1001, %v1002
  %v1004 = vsel %vm697, %v886, 0.0
  %v1005 = vadd.f32 %v1003, %v1004
  %v1006 = vsel %vm697, %v887, 0.0
  %v1007 = vadd.f32 %v1005, %v1006
  %v1008 = vsel %vm697, %v888, 0.0
  %v1009 = vadd.f32 %v1007, %v1008
  %v1010 = vsel %vm697, %v889, 0.0
  %v1011 = vadd.f32 %v1009, %v1010
  %v1012 = vsel %vm697, %v890, 0.0
  %v1013 = vadd.f32 %v1011, %v1012
  %v1014 = vsel %vm697, %v891, 0.0
  %v1015 = vadd.f32 %v1013, %v1014
  %v1016 = vsel %vm697, %v892, 0.0
  %v1017 = vadd.f32 %v1015, %v1016
  %v1018 = vsel %vm697, %v893, 0.0
  %v1019 = vadd.f32 %v1017, %v1018
  %v1020 = vsel %vm697, %v894, 0.0
  %v1021 = vadd.f32 %v1019, %v1020
  %v1022 = vrot.slane %v1021, 4
  %v1023 = vadd.f32 %v1021, %v1022
  %v1024 = vrot.slane %v1023, 2
  %v1025 = vadd.f32 %v1023, %v1024
  %v1026 = vrot.slane %v1025, 1
  %v1027 = vadd.f32 %v1025, %v1026
  %v1028 = vmul.f32 %v830, 0.001953125
  %v1029 = vmul.f32 %v1027, 0.001953125
  %v1030 = vmul.f32 %v1028, %v1028
  %v1031 = vsub.f32 %v1029, %v1030
  %v1032 = vmax.f32 %v1031, 0.0
  %v1033 = vadd.f32 %v1032, 1e-05
  %v1034 = vrsqrt.pop %v1033
  %v1035 = vmul.f32 %v695, %v1034
  %v1036 = vmul.f32 %v1028, %v1035
  %v1037 = vsub.f32 %v696, %v1036
  %v1039 = vlaneseq
  %v1040 = vshrl.u32 %v1039, 7
  %v1041 = vsub.s32 0, %v1040
  %v1042 = vrot.slane %v1035, %v1041
  %v1044 = vmul.f32 %v377, %v1042
  %v1045 = vmul.f32 %v382, %v1042
  %v1046 = vmul.f32 %v387, %v1042
  %v1047 = vmul.f32 %v392, %v1042
  %v1048 = vmul.f32 %v397, %v1042
  %v1049 = vmul.f32 %v402, %v1042
  %v1050 = vmul.f32 %v407, %v1042
  %v1051 = vmul.f32 %v412, %v1042
  %v1052 = vmul.f32 %v417, %v1042
  %v1053 = vmul.f32 %v422, %v1042
  %v1054 = vmul.f32 %v427, %v1042
  %v1055 = vmul.f32 %v432, %v1042
  %v1056 = vmul.f32 %v437, %v1042
  %v1057 = vmul.f32 %v442, %v1042
  %v1058 = vmul.f32 %v447, %v1042
  %v1059 = vmul.f32 %v452, %v1042
  %v1060 = vmul.f32 %v457, %v1042
  %v1061 = vmul.f32 %v462, %v1042
  %v1062 = vmul.f32 %v467, %v1042
  %v1063 = vmul.f32 %v472, %v1042
  %v1064 = vmul.f32 %v477, %v1042
  %v1065 = vmul.f32 %v482, %v1042
  %v1066 = vmul.f32 %v487, %v1042
  %v1067 = vmul.f32 %v492, %v1042
  %v1068 = vmul.f32 %v497, %v1042
  %v1069 = vmul.f32 %v502, %v1042
  %v1070 = vmul.f32 %v507, %v1042
  %v1071 = vmul.f32 %v512, %v1042
  %v1072 = vmul.f32 %v517, %v1042
  %v1073 = vmul.f32 %v522, %v1042
  %v1074 = vmul.f32 %v527, %v1042
  %v1075 = vmul.f32 %v532, %v1042
  %v1076 = vmul.f32 %v537, %v1042
  %v1077 = vmul.f32 %v542, %v1042
  %v1078 = vmul.f32 %v547, %v1042
  %v1079 = vmul.f32 %v552, %v1042
  %v1080 = vmul.f32 %v557, %v1042
  %v1081 = vmul.f32 %v562, %v1042
  %v1082 = vmul.f32 %v567, %v1042
  %v1083 = vmul.f32 %v572, %v1042
  %v1084 = vmul.f32 %v577, %v1042
  %v1085 = vmul.f32 %v582, %v1042
  %v1086 = vmul.f32 %v587, %v1042
  %v1087 = vmul.f32 %v592, %v1042
  %v1088 = vmul.f32 %v597, %v1042
  %v1089 = vmul.f32 %v602, %v1042
  %v1090 = vmul.f32 %v607, %v1042
  %v1091 = vmul.f32 %v612, %v1042
  %v1092 = vmul.f32 %v617, %v1042
  %v1093 = vmul.f32 %v622, %v1042
  %v1094 = vmul.f32 %v627, %v1042
  %v1095 = vmul.f32 %v632, %v1042
  %v1096 = vmul.f32 %v637, %v1042
  %v1097 = vmul.f32 %v642, %v1042
  %v1098 = vmul.f32 %v647, %v1042
  %v1099 = vmul.f32 %v652, %v1042
  %v1100 = vmul.f32 %v657, %v1042
  %v1101 = vmul.f32 %v662, %v1042
  %v1102 = vmul.f32 %v667, %v1042
  %v1103 = vmul.f32 %v672, %v1042
  %v1104 = vmul.f32 %v677, %v1042
  %v1105 = vmul.f32 %v682, %v1042
  %v1106 = vmul.f32 %v687, %v1042
  %v1107 = vmul.f32 %v692, %v1042
  %v1109 = vlaneseq
  %v1110 = vshrl.u32 %v1109, 7
  %v1111 = vsub.s32 0, %v1110
  %v1112 = vrot.slane %v1037, %v1111
  %v1114 = vadd.f32 %v1044, %v1112
  %v1115 = vadd.f32 %v1045, %v1112
  %v1116 = vadd.f32 %v1046, %v1112
  %v1117 = vadd.f32 %v1047, %v1112
  %v1118 = vadd.f32 %v1048, %v1112
  %v1119 = vadd.f32 %v1049, %v1112
  %v1120 = vadd.f32 %v1050, %v1112
  %v1121 = vadd.f32 %v1051, %v1112
  %v1122 = vadd.f32 %v1052, %v1112
  %v1123 = vadd.f32 %v1053, %v1112
  %v1124 = vadd.f32 %v1054, %v1112
  %v1125 = vadd.f32 %v1055, %v1112
  %v1126 = vadd.f32 %v1056, %v1112
  %v1127 = vadd.f32 %v1057, %v1112
  %v1128 = vadd.f32 %v1058, %v1112
  %v1129 = vadd.f32 %v1059, %v1112
  %v1130 = vadd.f32 %v1060, %v1112
  %v1131 = vadd.f32 %v1061, %v1112
  %v1132 = vadd.f32 %v1062, %v1112
  %v1133 = vadd.f32 %v1063, %v1112
  %v1134 = vadd.f32 %v1064, %v1112
  %v1135 = vadd.f32 %v1065, %v1112
  %v1136 = vadd.f32 %v1066, %v1112
  %v1137 = vadd.f32 %v1067, %v1112
  %v1138 = vadd.f32 %v1068, %v1112
  %v1139 = vadd.f32 %v1069, %v1112
  %v1140 = vadd.f32 %v1070, %v1112
  %v1141 = vadd.f32 %v1071, %v1112
  %v1142 = vadd.f32 %v1072, %v1112
  %v1143 = vadd.f32 %v1073, %v1112
  %v1144 = vadd.f32 %v1074, %v1112
  %v1145 = vadd.f32 %v1075, %v1112
  %v1146 = vadd.f32 %v1076, %v1112
  %v1147 = vadd.f32 %v1077, %v1112
  %v1148 = vadd.f32 %v1078, %v1112
  %v1149 = vadd.f32 %v1079, %v1112
  %v1150 = vadd.f32 %v1080, %v1112
  %v1151 = vadd.f32 %v1081, %v1112
  %v1152 = vadd.f32 %v1082, %v1112
  %v1153 = vadd.f32 %v1083, %v1112
  %v1154 = vadd.f32 %v1084, %v1112
  %v1155 = vadd.f32 %v1085, %v1112
  %v1156 = vadd.f32 %v1086, %v1112
  %v1157 = vadd.f32 %v1087, %v1112
  %v1158 = vadd.f32 %v1088, %v1112
  %v1159 = vadd.f32 %v1089, %v1112
  %v1160 = vadd.f32 %v1090, %v1112
  %v1161 = vadd.f32 %v1091, %v1112
  %v1162 = vadd.f32 %v1092, %v1112
  %v1163 = vadd.f32 %v1093, %v1112
  %v1164 = vadd.f32 %v1094, %v1112
  %v1165 = vadd.f32 %v1095, %v1112
  %v1166 = vadd.f32 %v1096, %v1112
  %v1167 = vadd.f32 %v1097, %v1112
  %v1168 = vadd.f32 %v1098, %v1112
  %v1169 = vadd.f32 %v1099, %v1112
  %v1170 = vadd.f32 %v1100, %v1112
  %v1171 = vadd.f32 %v1101, %v1112
  %v1172 = vadd.f32 %v1102, %v1112
  %v1173 = vadd.f32 %v1103, %v1112
  %v1174 = vadd.f32 %v1104, %v1112
  %v1175 = vadd.f32 %v1105, %v1112
  %v1176 = vadd.f32 %v1106, %v1112
  %v1177 = vadd.f32 %v1107, %v1112
  %v1178 = vmax.f32 %v1114, 0.0
  %v1179 = vmax.f32 %v1115, 0.0
  %v1180 = vmax.f32 %v1116, 0.0
  %v1181 = vmax.f32 %v1117, 0.0
  %v1182 = vmax.f32 %v1118, 0.0
  %v1183 = vmax.f32 %v1119, 0.0
  %v1184 = vmax.f32 %v1120, 0.0
  %v1185 = vmax.f32 %v1121, 0.0
  %v1186 = vmax.f32 %v1122, 0.0
  %v1187 = vmax.f32 %v1123, 0.0
  %v1188 = vmax.f32 %v1124, 0.0
  %v1189 = vmax.f32 %v1125, 0.0
  %v1190 = vmax.f32 %v1126, 0.0
  %v1191 = vmax.f32 %v1127, 0.0
  %v1192 = vmax.f32 %v1128, 0.0
  %v1193 = vmax.f32 %v1129, 0.0
  %v1194 = vmax.f32 %v1130, 0.0
  %v1195 = vmax.f32 %v1131, 0.0
  %v1196 = vmax.f32 %v1132, 0.0
  %v1197 = vmax.f32 %v1133, 0.0
  %v1198 = vmax.f32 %v1134, 0.0
  %v1199 = vmax.f32 %v1135, 0.0
  %v1200 = vmax.f32 %v1136, 0.0
  %v1201 = vmax.f32 %v1137, 0.0
  %v1202 = vmax.f32 %v1138, 0.0
  %v1203 = vmax.f32 %v1139, 0.0
  %v1204 = vmax.f32 %v1140, 0.0
  %v1205 = vmax.f32 %v1141, 0.0
  %v1206 = vmax.f32 %v1142, 0.0
  %v1207 = vmax.f32 %v1143, 0.0
  %v1208 = vmax.f32 %v1144, 0.0
  %v1209 = vmax.f32 %v1145, 0.0
  %v1210 = vmax.f32 %v1146, 0.0
  %v1211 = vmax.f32 %v1147, 0.0
  %v1212 = vmax.f32 %v1148, 0.0
  %v1213 = vmax.f32 %v1149, 0.0
  %v1214 = vmax.f32 %v1150, 0.0
  %v1215 = vmax.f32 %v1151, 0.0
  %v1216 = vmax.f32 %v1152, 0.0
  %v1217 = vmax.f32 %v1153, 0.0
  %v1218 = vmax.f32 %v1154, 0.0
  %v1219 = vmax.f32 %v1155, 0.0
  %v1220 = vmax.f32 %v1156, 0.0
  %v1221 = vmax.f32 %v1157, 0.0
  %v1222 = vmax.f32 %v1158, 0.0
  %v1223 = vmax.f32 %v1159, 0.0
  %v1224 = vmax.f32 %v1160, 0.0
  %v1225 = vmax.f32 %v1161, 0.0
  %v1226 = vmax.f32 %v1162, 0.0
  %v1227 = vmax.f32 %v1163, 0.0
  %v1228 = vmax.f32 %v1164, 0.0
  %v1229 = vmax.f32 %v1165, 0.0
  %v1230 = vmax.f32 %v1166, 0.0
  %v1231 = vmax.f32 %v1167, 0.0
  %v1232 = vmax.f32 %v1168, 0.0
  %v1233 = vmax.f32 %v1169, 0.0
  %v1234 = vmax.f32 %v1170, 0.0
  %v1235 = vmax.f32 %v1171, 0.0
  %v1236 = vmax.f32 %v1172, 0.0
  %v1237 = vmax.f32 %v1173, 0.0
  %v1238 = vmax.f32 %v1174, 0.0
  %v1239 = vmax.f32 %v1175, 0.0
  %v1240 = vmax.f32 %v1176, 0.0
  %v1241 = vmax.f32 %v1177, 0.0
  %v1242 = vmax.f32 %v1178, %v1194
  %v1243 = vmax.f32 %v1179, %v1195
  %v1244 = vmax.f32 %v1180, %v1196
  %v1245 = vmax.f32 %v1181, %v1197
  %v1246 = vmax.f32 %v1182, %v1198
  %v1247 = vmax.f32 %v1183, %v1199
  %v1248 = vmax.f32 %v1184, %v1200
  %v1249 = vmax.f32 %v1185, %v1201
  %v1250 = vmax.f32 %v1186, %v1202
  %v1251 = vmax.f32 %v1187, %v1203
  %v1252 = vmax.f32 %v1188, %v1204
  %v1253 = vmax.f32 %v1189, %v1205
  %v1254 = vmax.f32 %v1190, %v1206
  %v1255 = vmax.f32 %v1191, %v1207
  %v1256 = vmax.f32 %v1192, %v1208
  %v1257 = vmax.f32 %v1193, %v1209
  %v1258 = vmax.f32 %v1210, %v1226
  %v1259 = vmax.f32 %v1211, %v1227
  %v1260 = vmax.f32 %v1212, %v1228
  %v1261 = vmax.f32 %v1213, %v1229
  %v1262 = vmax.f32 %v1214, %v1230
  %v1263 = vmax.f32 %v1215, %v1231
  %v1264 = vmax.f32 %v1216, %v1232
  %v1265 = vmax.f32 %v1217, %v1233
  %v1266 = vmax.f32 %v1218, %v1234
  %v1267 = vmax.f32 %v1219, %v1235
  %v1268 = vmax.f32 %v1220, %v1236
  %v1269 = vmax.f32 %v1221, %v1237
  %v1270 = vmax.f32 %v1222, %v1238
  %v1271 = vmax.f32 %v1223, %v1239
  %v1272 = vmax.f32 %v1224, %v1240
  %v1273 = vmax.f32 %v1225, %v1241
  %v1274 = vmax.f32 %v1242, %v1258
  %v1275 = vmax.f32 %v1243, %v1259
  %v1276 = vmax.f32 %v1244, %v1260
  %v1277 = vmax.f32 %v1245, %v1261
  %v1278 = vmax.f32 %v1246, %v1262
  %v1279 = vmax.f32 %v1247, %v1263
  %v1280 = vmax.f32 %v1248, %v1264
  %v1281 = vmax.f32 %v1249, %v1265
  %v1282 = vmax.f32 %v1250, %v1266
  %v1283 = vmax.f32 %v1251, %v1267
  %v1284 = vmax.f32 %v1252, %v1268
  %v1285 = vmax.f32 %v1253, %v1269
  %v1286 = vmax.f32 %v1254, %v1270
  %v1287 = vmax.f32 %v1255, %v1271
  %v1288 = vmax.f32 %v1256, %v1272
  %v1289 = vmax.f32 %v1257, %v1273
  %v1290 = vld [vmem:[%s5] sm:$0xf]
  %v1292 = vsel %vm697, %v1274, 0
  %v1295 = vsel %vm697, %v1275, 0
  %v1298 = vsel %vm697, %v1276, 0
  %v1301 = vsel %vm697, %v1277, 0
  %v1304 = vsel %vm697, %v1278, 0
  %v1307 = vsel %vm697, %v1279, 0
  %v1310 = vsel %vm697, %v1280, 0
  %v1313 = vsel %vm697, %v1281, 0
  %v1316 = vsel %vm697, %v1282, 0
  %v1319 = vsel %vm697, %v1283, 0
  %v1322 = vsel %vm697, %v1284, 0
  %v1325 = vsel %vm697, %v1285, 0
  %v1328 = vsel %vm697, %v1286, 0
  %v1331 = vsel %vm697, %v1287, 0
  %v1334 = vsel %vm697, %v1288, 0
  %v1337 = vsel %vm697, %v1289, 0
  %vm1339 = vcmask 1043456
  %v1341 = vsel %vm1339, %v1290, 0
  %1343 = vmatprep.subr.mxu0 0.0
  %1344 = vmatpush1.msra.mxu0 %v1341
  %1345 = vmatprep.subr.mxu0 0.0
  %1346 = vmatpush1.msra.mxu0 0.0
  %1347 = vmatprep.subr.mxu0 0.0
  %1348 = vmatpush1.msra.mxu0 0.0
  %1349 = vmatprep.subr.mxu0 0.0
  %1350 = vmatpush1.msra.mxu0 0.0
  %1351 = vmatprep.subr.mxu0 0.0
  %1352 = vmatpush1.msra.mxu0 0.0
  %1353 = vmatprep.subr.mxu0 0.0
  %1354 = vmatpush1.msra.mxu0 0.0
  %1355 = vmatprep.subr.mxu0 0.0
  %1356 = vmatpush1.msra.mxu0 0.0
  %1357 = vmatprep.subr.mxu0 0.0
  %1358 = vmatpush1.msra.mxu0 0.0
  %1359 = vmatprep.subr.mxu0 0.0
  %1360 = vmatpush1.msra.mxu0 0.0
  %1361 = vmatprep.subr.mxu0 0.0
  %1362 = vmatpush1.msra.mxu0 0.0
  %1363 = vmatprep.subr.mxu0 0.0
  %1364 = vmatpush1.msra.mxu0 0.0
  %1365 = vmatprep.subr.mxu0 0.0
  %1366 = vmatpush1.msra.mxu0 0.0
  %1367 = vmatprep.subr.mxu0 0.0
  %1368 = vmatpush1.msra.mxu0 0.0
  %1369 = vmatprep.subr.mxu0 0.0
  %1370 = vmatpush1.msra.mxu0 0.0
  %1371 = vmatprep.subr.mxu0 0.0
  %1372 = vmatpush1.msra.mxu0 0.0
  %1373 = vmatprep.subr.mxu0 0.0
  %1374 = vmatpush1.msra.mxu0 0.0
  %1375 = vmatprep.subr.mxu0 0.0
  %1376 = vmatpush1.msra.mxu0 0.0
  %1377 = vmatprep.subr.mxu0 0.0
  %1378 = vmatpush1.msra.mxu0 0.0
  %1379 = vmatprep.subr.mxu0 0.0
  %1380 = vmatpush1.msra.mxu0 0.0
  %1381 = vmatprep.subr.mxu0 0.0
  %1382 = vmatpush1.msra.mxu0 0.0
  %1383 = vmatprep.subr.mxu0 0.0
  %1384 = vmatpush1.msra.mxu0 0.0
  %1385 = vmatprep.subr.mxu0 0.0
  %1386 = vmatpush1.msra.mxu0 0.0
  %1387 = vmatprep.subr.mxu0 0.0
  %1388 = vmatpush1.msra.mxu0 0.0
  %1389 = vmatprep.subr.mxu0 0.0
  %1390 = vmatpush1.msra.mxu0 0.0
  %1391 = vmatprep.subr.mxu0 0.0
  %1392 = vmatpush1.msra.mxu0 0.0
  %1393 = vmatprep.subr.mxu0 0.0
  %1394 = vmatpush1.msra.mxu0 0.0
  %1395 = vmatprep.subr.mxu0 0.0
  %1396 = vmatpush1.msra.mxu0 0.0
  %1397 = vmatprep.subr.mxu0 0.0
  %1398 = vmatpush1.msra.mxu0 0.0
  %1399 = vmatprep.subr.mxu0 0.0
  %1400 = vmatpush1.msra.mxu0 0.0
  %1401 = vmatprep.subr.mxu0 0.0
  %1402 = vmatpush1.msra.mxu0 0.0
  %1403 = vmatprep.subr.mxu0 0.0
  %1404 = vmatpush1.msra.mxu0 0.0
  %1405 = vmatprep.subr.mxu0 0.0
  %1406 = vmatpush1.msra.mxu0 0.0
  %1407 = vmatprep.mubr.f32.mxu0 0.0
  %1408 = vmatmul.mubr.f32.gmra.mrb[0].mxu0 %v1292
  %v1409 = vpop.f32.mrb[0].mxu0
  %v1410 = vadd.f32 0.0, %v1409
  %v1411 = vpop.f32.mrb[0].mxu0
  %1412 = vmatprep.mubr.f32.mxu0 0.0
  %1413 = vmatmul.mubr.f32.gmra.mrb[0].mxu0 %v1295
  %v1414 = vpop.f32.mrb[0].mxu0
  %v1415 = vadd.f32 0.0, %v1414
  %v1416 = vpop.f32.mrb[0].mxu0
  %1417 = vmatprep.mubr.f32.mxu0 0.0
  %1418 = vmatmul.mubr.f32.gmra.mrb[0].mxu0 %v1298
  %v1419 = vpop.f32.mrb[0].mxu0
  %v1420 = vadd.f32 0.0, %v1419
  %v1421 = vpop.f32.mrb[0].mxu0
  %1422 = vmatprep.mubr.f32.mxu0 0.0
  %1423 = vmatmul.mubr.f32.gmra.mrb[0].mxu0 %v1301
  %v1424 = vpop.f32.mrb[0].mxu0
  %v1425 = vadd.f32 0.0, %v1424
  %v1426 = vpop.f32.mrb[0].mxu0
  %1427 = vmatprep.mubr.f32.mxu0 0.0
  %1428 = vmatmul.mubr.f32.gmra.mrb[0].mxu0 %v1304
  %v1429 = vpop.f32.mrb[0].mxu0
  %v1430 = vadd.f32 0.0, %v1429
  %v1431 = vpop.f32.mrb[0].mxu0
  %1432 = vmatprep.mubr.f32.mxu0 0.0
  %1433 = vmatmul.mubr.f32.gmra.mrb[0].mxu0 %v1307
  %v1434 = vpop.f32.mrb[0].mxu0
  %v1435 = vadd.f32 0.0, %v1434
  %v1436 = vpop.f32.mrb[0].mxu0
  %1437 = vmatprep.mubr.f32.mxu0 0.0
  %1438 = vmatmul.mubr.f32.gmra.mrb[0].mxu0 %v1310
  %v1439 = vpop.f32.mrb[0].mxu0
  %v1440 = vadd.f32 0.0, %v1439
  %v1441 = vpop.f32.mrb[0].mxu0
  %1442 = vmatprep.mubr.f32.mxu0 0.0
  %1443 = vmatmul.mubr.f32.gmra.mrb[0].mxu0 %v1313
  %v1444 = vpop.f32.mrb[0].mxu0
  %v1445 = vadd.f32 0.0, %v1444
  %v1446 = vpop.f32.mrb[0].mxu0
  %1447 = vmatprep.mubr.f32.mxu0 0.0
  %1448 = vmatmul.mubr.f32.gmra.mrb[0].mxu0 %v1316
  %v1449 = vpop.f32.mrb[0].mxu0
  %v1450 = vadd.f32 0.0, %v1449
  %v1451 = vpop.f32.mrb[0].mxu0
  %1452 = vmatprep.mubr.f32.mxu0 0.0
  %1453 = vmatmul.mubr.f32.gmra.mrb[0].mxu0 %v1319
  %v1454 = vpop.f32.mrb[0].mxu0
  %v1455 = vadd.f32 0.0, %v1454
  %v1456 = vpop.f32.mrb[0].mxu0
  %1457 = vmatprep.mubr.f32.mxu0 0.0
  %1458 = vmatmul.mubr.f32.gmra.mrb[0].mxu0 %v1322
  %v1459 = vpop.f32.mrb[0].mxu0
  %v1460 = vadd.f32 0.0, %v1459
  %v1461 = vpop.f32.mrb[0].mxu0
  %1462 = vmatprep.mubr.f32.mxu0 0.0
  %1463 = vmatmul.mubr.f32.gmra.mrb[0].mxu0 %v1325
  %v1464 = vpop.f32.mrb[0].mxu0
  %v1465 = vadd.f32 0.0, %v1464
  %v1466 = vpop.f32.mrb[0].mxu0
  %1467 = vmatprep.mubr.f32.mxu0 0.0
  %1468 = vmatmul.mubr.f32.gmra.mrb[0].mxu0 %v1328
  %v1469 = vpop.f32.mrb[0].mxu0
  %v1470 = vadd.f32 0.0, %v1469
  %v1471 = vpop.f32.mrb[0].mxu0
  %1472 = vmatprep.mubr.f32.mxu0 0.0
  %1473 = vmatmul.mubr.f32.gmra.mrb[0].mxu0 %v1331
  %v1474 = vpop.f32.mrb[0].mxu0
  %v1475 = vadd.f32 0.0, %v1474
  %v1476 = vpop.f32.mrb[0].mxu0
  %1477 = vmatprep.mubr.f32.mxu0 0.0
  %1478 = vmatmul.mubr.f32.gmra.mrb[0].mxu0 %v1334
  %v1479 = vpop.f32.mrb[0].mxu0
  %v1480 = vadd.f32 0.0, %v1479
  %v1481 = vpop.f32.mrb[0].mxu0
  %1482 = vmatprep.mubr.f32.mxu0 0.0
  %1483 = vmatmul.mubr.f32.gmra.mrb[0].mxu0 %v1337
  %v1484 = vpop.f32.mrb[0].mxu0
  %v1485 = vadd.f32 0.0, %v1484
  %v1486 = vpop.f32.mrb[0].mxu0
  %1487 = vdwg.mxu0
  %vm1488 = vcmask 64512
  %1489 = vst.msk [vmem:[#allocation2] sm:$0xff] %vm1488, %v1410
  %1490 = vst.msk [vmem:[#allocation2 + $0x8] sm:$0xff] %vm1488, %v1415
  %1491 = vst.msk [vmem:[#allocation2 + $0x10] sm:$0xff] %vm1488, %v1420
  %1492 = vst.msk [vmem:[#allocation2 + $0x18] sm:$0xff] %vm1488, %v1425
  %1493 = vst.msk [vmem:[#allocation2 + $0x20] sm:$0xff] %vm1488, %v1430
  %1494 = vst.msk [vmem:[#allocation2 + $0x28] sm:$0xff] %vm1488, %v1435
  %1495 = vst.msk [vmem:[#allocation2 + $0x30] sm:$0xff] %vm1488, %v1440
  %1496 = vst.msk [vmem:[#allocation2 + $0x38] sm:$0xff] %vm1488, %v1445
  %1497 = vst.msk [vmem:[#allocation2 + $0x40] sm:$0xff] %vm1488, %v1450
  %1498 = vst.msk [vmem:[#allocation2 + $0x48] sm:$0xff] %vm1488, %v1455
  %1499 = vst.msk [vmem:[#allocation2 + $0x50] sm:$0xff] %vm1488, %v1460
  %1500 = vst.msk [vmem:[#allocation2 + $0x58] sm:$0xff] %vm1488, %v1465
  %1501 = vst.msk [vmem:[#allocation2 + $0x60] sm:$0xff] %vm1488, %v1470
  %1502 = vst.msk [vmem:[#allocation2 + $0x68] sm:$0xff] %vm1488, %v1475
  %1503 = vst.msk [vmem:[#allocation2 + $0x70] sm:$0xff] %vm1488, %v1480
  %1504 = vst.msk [vmem:[#allocation2 + $0x78] sm:$0xff] %vm1488, %v1485
  %s1505 = scalar_lea.vmem %s5, 4
  %v1506 = vld [vmem:[%s1505] sm:$0xf]
  %v1508 = vsel %vm1339, %v1506, 0
  %1510 = vmatprep.subr.mxu0 0.0
  %1511 = vmatpush1.msra.mxu0 %v1508
  %1512 = vmatprep.subr.mxu0 0.0
  %1513 = vmatpush1.msra.mxu0 0.0
  %1514 = vmatprep.subr.mxu0 0.0
  %1515 = vmatpush1.msra.mxu0 0.0
  %1516 = vmatprep.subr.mxu0 0.0
  %1517 = vmatpush1.msra.mxu0 0.0
  %1518 = vmatprep.subr.mxu0 0.0
  %1519 = vmatpush1.msra.mxu0 0.0
  %1520 = vmatprep.subr.mxu0 0.0
  %1521 = vmatpush1.msra.mxu0 0.0
  %1522 = vmatprep.subr.mxu0 0.0
  %1523 = vmatpush1.msra.mxu0 0.0
  %1524 = vmatprep.subr.mxu0 0.0
  %1525 = vmatpush1.msra.mxu0 0.0
  %1526 = vmatprep.subr.mxu0 0.0
  %1527 = vmatpush1.msra.mxu0 0.0
  %1528 = vmatprep.subr.mxu0 0.0
  %1529 = vmatpush1.msra.mxu0 0.0
  %1530 = vmatprep.subr.mxu0 0.0
  %1531 = vmatpush1.msra.mxu0 0.0
  %1532 = vmatprep.subr.mxu0 0.0
  %1533 = vmatpush1.msra.mxu0 0.0
  %1534 = vmatprep.subr.mxu0 0.0
  %1535 = vmatpush1.msra.mxu0 0.0
  %1536 = vmatprep.subr.mxu0 0.0
  %1537 = vmatpush1.msra.mxu0 0.0
  %1538 = vmatprep.subr.mxu0 0.0
  %1539 = vmatpush1.msra.mxu0 0.0
  %1540 = vmatprep.subr.mxu0 0.0
  %1541 = vmatpush1.msra.mxu0 0.0
  %1542 = vmatprep.subr.mxu0 0.0
  %1543 = vmatpush1.msra.mxu0 0.0
  %1544 = vmatprep.subr.mxu0 0.0
  %1545 = vmatpush1.msra.mxu0 0.0
  %1546 = vmatprep.subr.mxu0 0.0
  %1547 = vmatpush1.msra.mxu0 0.0
  %1548 = vmatprep.subr.mxu0 0.0
  %1549 = vmatpush1.msra.mxu0 0.0
  %1550 = vmatprep.subr.mxu0 0.0
  %1551 = vmatpush1.msra.mxu0 0.0
  %1552 = vmatprep.subr.mxu0 0.0
  %1553 = vmatpush1.msra.mxu0 0.0
  %1554 = vmatprep.subr.mxu0 0.0
  %1555 = vmatpush1.msra.mxu0 0.0
  %1556 = vmatprep.subr.mxu0 0.0
  %1557 = vmatpush1.msra.mxu0 0.0
  %1558 = vmatprep.subr.mxu0 0.0
  %1559 = vmatpush1.msra.mxu0 0.0
  %1560 = vmatprep.subr.mxu0 0.0
  %1561 = vmatpush1.msra.mxu0 0.0
  %1562 = vmatprep.subr.mxu0 0.0
  %1563 = vmatpush1.msra.mxu0 0.0
  %1564 = vmatprep.subr.mxu0 0.0
  %1565 = vmatpush1.msra.mxu0 0.0
  %1566 = vmatprep.subr.mxu0 0.0
  %1567 = vmatpush1.msra.mxu0 0.0
  %1568 = vmatprep.subr.mxu0 0.0
  %1569 = vmatpush1.msra.mxu0 0.0
  %1570 = vmatprep.subr.mxu0 0.0
  %1571 = vmatpush1.msra.mxu0 0.0
  %1572 = vmatprep.subr.mxu0 0.0
  %1573 = vmatpush1.msra.mxu0 0.0
  %1574 = vmatprep.mubr.f32.mxu0 0.0
  %1575 = vmatmul.mubr.f32.gmra.mrb[0].mxu0 %v1292
  %v1576 = vpop.f32.mrb[0].mxu0
  %v1577 = vadd.f32 0.0, %v1576
  %v1578 = vpop.f32.mrb[0].mxu0
  %1579 = vmatprep.mubr.f32.mxu0 0.0
  %1580 = vmatmul.mubr.f32.gmra.mrb[0].mxu0 %v1295
  %v1581 = vpop.f32.mrb[0].mxu0
  %v1582 = vadd.f32 0.0, %v1581
  %v1583 = vpop.f32.mrb[0].mxu0
  %1584 = vmatprep.mubr.f32.mxu0 0.0
  %1585 = vmatmul.mubr.f32.gmra.mrb[0].mxu0 %v1298
  %v1586 = vpop.f32.mrb[0].mxu0
  %v1587 = vadd.f32 0.0, %v1586
  %v1588 = vpop.f32.mrb[0].mxu0
  %1589 = vmatprep.mubr.f32.mxu0 0.0
  %1590 = vmatmul.mubr.f32.gmra.mrb[0].mxu0 %v1301
  %v1591 = vpop.f32.mrb[0].mxu0
  %v1592 = vadd.f32 0.0, %v1591
  %v1593 = vpop.f32.mrb[0].mxu0
  %1594 = vmatprep.mubr.f32.mxu0 0.0
  %1595 = vmatmul.mubr.f32.gmra.mrb[0].mxu0 %v1304
  %v1596 = vpop.f32.mrb[0].mxu0
  %v1597 = vadd.f32 0.0, %v1596
  %v1598 = vpop.f32.mrb[0].mxu0
  %1599 = vmatprep.mubr.f32.mxu0 0.0
  %1600 = vmatmul.mubr.f32.gmra.mrb[0].mxu0 %v1307
  %v1601 = vpop.f32.mrb[0].mxu0
  %v1602 = vadd.f32 0.0, %v1601
  %v1603 = vpop.f32.mrb[0].mxu0
  %1604 = vmatprep.mubr.f32.mxu0 0.0
  %1605 = vmatmul.mubr.f32.gmra.mrb[0].mxu0 %v1310
  %v1606 = vpop.f32.mrb[0].mxu0
  %v1607 = vadd.f32 0.0, %v1606
  %v1608 = vpop.f32.mrb[0].mxu0
  %1609 = vmatprep.mubr.f32.mxu0 0.0
  %1610 = vmatmul.mubr.f32.gmra.mrb[0].mxu0 %v1313
  %v1611 = vpop.f32.mrb[0].mxu0
  %v1612 = vadd.f32 0.0, %v1611
  %v1613 = vpop.f32.mrb[0].mxu0
  %1614 = vmatprep.mubr.f32.mxu0 0.0
  %1615 = vmatmul.mubr.f32.gmra.mrb[0].mxu0 %v1316
  %v1616 = vpop.f32.mrb[0].mxu0
  %v1617 = vadd.f32 0.0, %v1616
  %v1618 = vpop.f32.mrb[0].mxu0
  %1619 = vmatprep.mubr.f32.mxu0 0.0
  %1620 = vmatmul.mubr.f32.gmra.mrb[0].mxu0 %v1319
  %v1621 = vpop.f32.mrb[0].mxu0
  %v1622 = vadd.f32 0.0, %v1621
  %v1623 = vpop.f32.mrb[0].mxu0
  %1624 = vmatprep.mubr.f32.mxu0 0.0
  %1625 = vmatmul.mubr.f32.gmra.mrb[0].mxu0 %v1322
  %v1626 = vpop.f32.mrb[0].mxu0
  %v1627 = vadd.f32 0.0, %v1626
  %v1628 = vpop.f32.mrb[0].mxu0
  %1629 = vmatprep.mubr.f32.mxu0 0.0
  %1630 = vmatmul.mubr.f32.gmra.mrb[0].mxu0 %v1325
  %v1631 = vpop.f32.mrb[0].mxu0
  %v1632 = vadd.f32 0.0, %v1631
  %v1633 = vpop.f32.mrb[0].mxu0
  %1634 = vmatprep.mubr.f32.mxu0 0.0
  %1635 = vmatmul.mubr.f32.gmra.mrb[0].mxu0 %v1328
  %v1636 = vpop.f32.mrb[0].mxu0
  %v1637 = vadd.f32 0.0, %v1636
  %v1638 = vpop.f32.mrb[0].mxu0
  %1639 = vmatprep.mubr.f32.mxu0 0.0
  %1640 = vmatmul.mubr.f32.gmra.mrb[0].mxu0 %v1331
  %v1641 = vpop.f32.mrb[0].mxu0
  %v1642 = vadd.f32 0.0, %v1641
  %v1643 = vpop.f32.mrb[0].mxu0
  %1644 = vmatprep.mubr.f32.mxu0 0.0
  %1645 = vmatmul.mubr.f32.gmra.mrb[0].mxu0 %v1334
  %v1646 = vpop.f32.mrb[0].mxu0
  %v1647 = vadd.f32 0.0, %v1646
  %v1648 = vpop.f32.mrb[0].mxu0
  %1649 = vmatprep.mubr.f32.mxu0 0.0
  %1650 = vmatmul.mubr.f32.gmra.mrb[0].mxu0 %v1337
  %v1651 = vpop.f32.mrb[0].mxu0
  %v1652 = vadd.f32 0.0, %v1651
  %v1653 = vpop.f32.mrb[0].mxu0
  %1654 = vdwg.mxu0
  %1655 = vst.msk [vmem:[#allocation2 + $0x80] sm:$0xff] %vm1488, %v1577
  %1656 = vst.msk [vmem:[#allocation2 + $0x88] sm:$0xff] %vm1488, %v1582
  %1657 = vst.msk [vmem:[#allocation2 + $0x90] sm:$0xff] %vm1488, %v1587
  %1658 = vst.msk [vmem:[#allocation2 + $0x98] sm:$0xff] %vm1488, %v1592
  %1659 = vst.msk [vmem:[#allocation2 + $0xa0] sm:$0xff] %vm1488, %v1597
  %1660 = vst.msk [vmem:[#allocation2 + $0xa8] sm:$0xff] %vm1488, %v1602
  %1661 = vst.msk [vmem:[#allocation2 + $0xb0] sm:$0xff] %vm1488, %v1607
  %1662 = vst.msk [vmem:[#allocation2 + $0xb8] sm:$0xff] %vm1488, %v1612
  %1663 = vst.msk [vmem:[#allocation2 + $0xc0] sm:$0xff] %vm1488, %v1617
  %1664 = vst.msk [vmem:[#allocation2 + $0xc8] sm:$0xff] %vm1488, %v1622
  %1665 = vst.msk [vmem:[#allocation2 + $0xd0] sm:$0xff] %vm1488, %v1627
  %1666 = vst.msk [vmem:[#allocation2 + $0xd8] sm:$0xff] %vm1488, %v1632
  %1667 = vst.msk [vmem:[#allocation2 + $0xe0] sm:$0xff] %vm1488, %v1637
  %1668 = vst.msk [vmem:[#allocation2 + $0xe8] sm:$0xff] %vm1488, %v1642
  %1669 = vst.msk [vmem:[#allocation2 + $0xf0] sm:$0xff] %vm1488, %v1647
  %1670 = vst.msk [vmem:[#allocation2 + $0xf8] sm:$0xff] %vm1488, %v1652
  %s1671 = scalar_lea.vmem %s5, 8
  %v1672 = vld [vmem:[%s1671] sm:$0xf]
  %v1674 = vsel %vm1339, %v1672, 0
  %1676 = vmatprep.subr.mxu0 0.0
  %1677 = vmatpush1.msra.mxu0 %v1674
  %1678 = vmatprep.subr.mxu0 0.0
  %1679 = vmatpush1.msra.mxu0 0.0
  %1680 = vmatprep.subr.mxu0 0.0
  %1681 = vmatpush1.msra.mxu0 0.0
  %1682 = vmatprep.subr.mxu0 0.0
  %1683 = vmatpush1.msra.mxu0 0.0
  %1684 = vmatprep.subr.mxu0 0.0
  %1685 = vmatpush1.msra.mxu0 0.0
  %1686 = vmatprep.subr.mxu0 0.0
  %1687 = vmatpush1.msra.mxu0 0.0
  %1688 = vmatprep.subr.mxu0 0.0
  %1689 = vmatpush1.msra.mxu0 0.0
  %1690 = vmatprep.subr.mxu0 0.0
  %1691 = vmatpush1.msra.mxu0 0.0
  %1692 = vmatprep.subr.mxu0 0.0
  %1693 = vmatpush1.msra.mxu0 0.0
  %1694 = vmatprep.subr.mxu0 0.0
  %1695 = vmatpush1.msra.mxu0 0.0
  %1696 = vmatprep.subr.mxu0 0.0
  %1697 = vmatpush1.msra.mxu0 0.0
  %1698 = vmatprep.subr.mxu0 0.0
  %1699 = vmatpush1.msra.mxu0 0.0
  %1700 = vmatprep.subr.mxu0 0.0
  %1701 = vmatpush1.msra.mxu0 0.0
  %1702 = vmatprep.subr.mxu0 0.0
  %1703 = vmatpush1.msra.mxu0 0.0
  %1704 = vmatprep.subr.mxu0 0.0
  %1705 = vmatpush1.msra.mxu0 0.0
  %1706 = vmatprep.subr.mxu0 0.0
  %1707 = vmatpush1.msra.mxu0 0.0
  %1708 = vmatprep.subr.mxu0 0.0
  %1709 = vmatpush1.msra.mxu0 0.0
  %1710 = vmatprep.subr.mxu0 0.0
  %1711 = vmatpush1.msra.mxu0 0.0
  %1712 = vmatprep.subr.mxu0 0.0
  %1713 = vmatpush1.msra.mxu0 0.0
  %1714 = vmatprep.subr.mxu0 0.0
  %1715 = vmatpush1.msra.mxu0 0.0
  %1716 = vmatprep.subr.mxu0 0.0
  %1717 = vmatpush1.msra.mxu0 0.0
  %1718 = vmatprep.subr.mxu0 0.0
  %1719 = vmatpush1.msra.mxu0 0.0
  %1720 = vmatprep.subr.mxu0 0.0
  %1721 = vmatpush1.msra.mxu0 0.0
  %1722 = vmatprep.subr.mxu0 0.0
  %1723 = vmatpush1.msra.mxu0 0.0
  %1724 = vmatprep.subr.mxu0 0.0
  %1725 = vmatpush1.msra.mxu0 0.0
  %1726 = vmatprep.subr.mxu0 0.0
  %1727 = vmatpush1.msra.mxu0 0.0
  %1728 = vmatprep.subr.mxu0 0.0
  %1729 = vmatpush1.msra.mxu0 0.0
  %1730 = vmatprep.subr.mxu0 0.0
  %1731 = vmatpush1.msra.mxu0 0.0
  %1732 = vmatprep.subr.mxu0 0.0
  %1733 = vmatpush1.msra.mxu0 0.0
  %1734 = vmatprep.subr.mxu0 0.0
  %1735 = vmatpush1.msra.mxu0 0.0
  %1736 = vmatprep.subr.mxu0 0.0
  %1737 = vmatpush1.msra.mxu0 0.0
  %1738 = vmatprep.subr.mxu0 0.0
  %1739 = vmatpush1.msra.mxu0 0.0
  %1740 = vmatprep.mubr.f32.mxu0 0.0
  %1741 = vmatmul.mubr.f32.gmra.mrb[0].mxu0 %v1292
  %v1742 = vpop.f32.mrb[0].mxu0
  %v1743 = vadd.f32 0.0, %v1742
  %v1744 = vpop.f32.mrb[0].mxu0
  %1745 = vmatprep.mubr.f32.mxu0 0.0
  %1746 = vmatmul.mubr.f32.gmra.mrb[0].mxu0 %v1295
  %v1747 = vpop.f32.mrb[0].mxu0
  %v1748 = vadd.f32 0.0, %v1747
  %v1749 = vpop.f32.mrb[0].mxu0
  %1750 = vmatprep.mubr.f32.mxu0 0.0
  %1751 = vmatmul.mubr.f32.gmra.mrb[0].mxu0 %v1298
  %v1752 = vpop.f32.mrb[0].mxu0
  %v1753 = vadd.f32 0.0, %v1752
  %v1754 = vpop.f32.mrb[0].mxu0
  %1755 = vmatprep.mubr.f32.mxu0 0.0
  %1756 = vmatmul.mubr.f32.gmra.mrb[0].mxu0 %v1301
  %v1757 = vpop.f32.mrb[0].mxu0
  %v1758 = vadd.f32 0.0, %v1757
  %v1759 = vpop.f32.mrb[0].mxu0
  %1760 = vmatprep.mubr.f32.mxu0 0.0
  %1761 = vmatmul.mubr.f32.gmra.mrb[0].mxu0 %v1304
  %v1762 = vpop.f32.mrb[0].mxu0
  %v1763 = vadd.f32 0.0, %v1762
  %v1764 = vpop.f32.mrb[0].mxu0
  %1765 = vmatprep.mubr.f32.mxu0 0.0
  %1766 = vmatmul.mubr.f32.gmra.mrb[0].mxu0 %v1307
  %v1767 = vpop.f32.mrb[0].mxu0
  %v1768 = vadd.f32 0.0, %v1767
  %v1769 = vpop.f32.mrb[0].mxu0
  %1770 = vmatprep.mubr.f32.mxu0 0.0
  %1771 = vmatmul.mubr.f32.gmra.mrb[0].mxu0 %v1310
  %v1772 = vpop.f32.mrb[0].mxu0
  %v1773 = vadd.f32 0.0, %v1772
  %v1774 = vpop.f32.mrb[0].mxu0
  %1775 = vmatprep.mubr.f32.mxu0 0.0
  %1776 = vmatmul.mubr.f32.gmra.mrb[0].mxu0 %v1313
  %v1777 = vpop.f32.mrb[0].mxu0
  %v1778 = vadd.f32 0.0, %v1777
  %v1779 = vpop.f32.mrb[0].mxu0
  %1780 = vmatprep.mubr.f32.mxu0 0.0
  %1781 = vmatmul.mubr.f32.gmra.mrb[0].mxu0 %v1316
  %v1782 = vpop.f32.mrb[0].mxu0
  %v1783 = vadd.f32 0.0, %v1782
  %v1784 = vpop.f32.mrb[0].mxu0
  %1785 = vmatprep.mubr.f32.mxu0 0.0
  %1786 = vmatmul.mubr.f32.gmra.mrb[0].mxu0 %v1319
  %v1787 = vpop.f32.mrb[0].mxu0
  %v1788 = vadd.f32 0.0, %v1787
  %v1789 = vpop.f32.mrb[0].mxu0
  %1790 = vmatprep.mubr.f32.mxu0 0.0
  %1791 = vmatmul.mubr.f32.gmra.mrb[0].mxu0 %v1322
  %v1792 = vpop.f32.mrb[0].mxu0
  %v1793 = vadd.f32 0.0, %v1792
  %v1794 = vpop.f32.mrb[0].mxu0
  %1795 = vmatprep.mubr.f32.mxu0 0.0
  %1796 = vmatmul.mubr.f32.gmra.mrb[0].mxu0 %v1325
  %v1797 = vpop.f32.mrb[0].mxu0
  %v1798 = vadd.f32 0.0, %v1797
  %v1799 = vpop.f32.mrb[0].mxu0
  %1800 = vmatprep.mubr.f32.mxu0 0.0
  %1801 = vmatmul.mubr.f32.gmra.mrb[0].mxu0 %v1328
  %v1802 = vpop.f32.mrb[0].mxu0
  %v1803 = vadd.f32 0.0, %v1802
  %v1804 = vpop.f32.mrb[0].mxu0
  %1805 = vmatprep.mubr.f32.mxu0 0.0
  %1806 = vmatmul.mubr.f32.gmra.mrb[0].mxu0 %v1331
  %v1807 = vpop.f32.mrb[0].mxu0
  %v1808 = vadd.f32 0.0, %v1807
  %v1809 = vpop.f32.mrb[0].mxu0
  %1810 = vmatprep.mubr.f32.mxu0 0.0
  %1811 = vmatmul.mubr.f32.gmra.mrb[0].mxu0 %v1334
  %v1812 = vpop.f32.mrb[0].mxu0
  %v1813 = vadd.f32 0.0, %v1812
  %v1814 = vpop.f32.mrb[0].mxu0
  %1815 = vmatprep.mubr.f32.mxu0 0.0
  %1816 = vmatmul.mubr.f32.gmra.mrb[0].mxu0 %v1337
  %v1817 = vpop.f32.mrb[0].mxu0
  %v1818 = vadd.f32 0.0, %v1817
  %v1819 = vpop.f32.mrb[0].mxu0
  %1820 = vdwg.mxu0
  %1821 = vst.msk [vmem:[#allocation2 + $0x100] sm:$0xff] %vm1488, %v1743
  %1822 = vst.msk [vmem:[#allocation2 + $0x108] sm:$0xff] %vm1488, %v1748
  %1823 = vst.msk [vmem:[#allocation2 + $0x110] sm:$0xff] %vm1488, %v1753
  %1824 = vst.msk [vmem:[#allocation2 + $0x118] sm:$0xff] %vm1488, %v1758
  %1825 = vst.msk [vmem:[#allocation2 + $0x120] sm:$0xff] %vm1488, %v1763
  %1826 = vst.msk [vmem:[#allocation2 + $0x128] sm:$0xff] %vm1488, %v1768
  %1827 = vst.msk [vmem:[#allocation2 + $0x130] sm:$0xff] %vm1488, %v1773
  %1828 = vst.msk [vmem:[#allocation2 + $0x138] sm:$0xff] %vm1488, %v1778
  %1829 = vst.msk [vmem:[#allocation2 + $0x140] sm:$0xff] %vm1488, %v1783
  %1830 = vst.msk [vmem:[#allocation2 + $0x148] sm:$0xff] %vm1488, %v1788
  %1831 = vst.msk [vmem:[#allocation2 + $0x150] sm:$0xff] %vm1488, %v1793
  %1832 = vst.msk [vmem:[#allocation2 + $0x158] sm:$0xff] %vm1488, %v1798
  %1833 = vst.msk [vmem:[#allocation2 + $0x160] sm:$0xff] %vm1488, %v1803
  %1834 = vst.msk [vmem:[#allocation2 + $0x168] sm:$0xff] %vm1488, %v1808
  %1835 = vst.msk [vmem:[#allocation2 + $0x170] sm:$0xff] %vm1488, %v1813
  %1836 = vst.msk [vmem:[#allocation2 + $0x178] sm:$0xff] %vm1488, %v1818
  %s1837 = scalar_lea.vmem %s5, 12
  %v1838 = vld [vmem:[%s1837] sm:$0xf]
  %v1840 = vsel %vm1339, %v1838, 0
  %1842 = vmatprep.subr.mxu0 0.0
  %1843 = vmatpush1.msra.mxu0 %v1840
  %1844 = vmatprep.subr.mxu0 0.0
  %1845 = vmatpush1.msra.mxu0 0.0
  %1846 = vmatprep.subr.mxu0 0.0
  %1847 = vmatpush1.msra.mxu0 0.0
  %1848 = vmatprep.subr.mxu0 0.0
  %1849 = vmatpush1.msra.mxu0 0.0
  %1850 = vmatprep.subr.mxu0 0.0
  %1851 = vmatpush1.msra.mxu0 0.0
  %1852 = vmatprep.subr.mxu0 0.0
  %1853 = vmatpush1.msra.mxu0 0.0
  %1854 = vmatprep.subr.mxu0 0.0
  %1855 = vmatpush1.msra.mxu0 0.0
  %1856 = vmatprep.subr.mxu0 0.0
  %1857 = vmatpush1.msra.mxu0 0.0
  %1858 = vmatprep.subr.mxu0 0.0
  %1859 = vmatpush1.msra.mxu0 0.0
  %1860 = vmatprep.subr.mxu0 0.0
  %1861 = vmatpush1.msra.mxu0 0.0
  %1862 = vmatprep.subr.mxu0 0.0
  %1863 = vmatpush1.msra.mxu0 0.0
  %1864 = vmatprep.subr.mxu0 0.0
  %1865 = vmatpush1.msra.mxu0 0.0
  %1866 = vmatprep.subr.mxu0 0.0
  %1867 = vmatpush1.msra.mxu0 0.0
  %1868 = vmatprep.subr.mxu0 0.0
  %1869 = vmatpush1.msra.mxu0 0.0
  %1870 = vmatprep.subr.mxu0 0.0
  %1871 = vmatpush1.msra.mxu0 0.0
  %1872 = vmatprep.subr.mxu0 0.0
  %1873 = vmatpush1.msra.mxu0 0.0
  %1874 = vmatprep.subr.mxu0 0.0
  %1875 = vmatpush1.msra.mxu0 0.0
  %1876 = vmatprep.subr.mxu0 0.0
  %1877 = vmatpush1.msra.mxu0 0.0
  %1878 = vmatprep.subr.mxu0 0.0
  %1879 = vmatpush1.msra.mxu0 0.0
  %1880 = vmatprep.subr.mxu0 0.0
  %1881 = vmatpush1.msra.mxu0 0.0
  %1882 = vmatprep.subr.mxu0 0.0
  %1883 = vmatpush1.msra.mxu0 0.0
  %1884 = vmatprep.subr.mxu0 0.0
  %1885 = vmatpush1.msra.mxu0 0.0
  %1886 = vmatprep.subr.mxu0 0.0
  %1887 = vmatpush1.msra.mxu0 0.0
  %1888 = vmatprep.subr.mxu0 0.0
  %1889 = vmatpush1.msra.mxu0 0.0
  %1890 = vmatprep.subr.mxu0 0.0
  %1891 = vmatpush1.msra.mxu0 0.0
  %1892 = vmatprep.subr.mxu0 0.0
  %1893 = vmatpush1.msra.mxu0 0.0
  %1894 = vmatprep.subr.mxu0 0.0
  %1895 = vmatpush1.msra.mxu0 0.0
  %1896 = vmatprep.subr.mxu0 0.0
  %1897 = vmatpush1.msra.mxu0 0.0
  %1898 = vmatprep.subr.mxu0 0.0
  %1899 = vmatpush1.msra.mxu0 0.0
  %1900 = vmatprep.subr.mxu0 0.0
  %1901 = vmatpush1.msra.mxu0 0.0
  %1902 = vmatprep.subr.mxu0 0.0
  %1903 = vmatpush1.msra.mxu0 0.0
  %1904 = vmatprep.subr.mxu0 0.0
  %1905 = vmatpush1.msra.mxu0 0.0
  %1906 = vmatprep.mubr.f32.mxu0 0.0
  %1907 = vmatmul.mubr.f32.gmra.mrb[0].mxu0 %v1292
  %v1908 = vpop.f32.mrb[0].mxu0
  %v1909 = vadd.f32 0.0, %v1908
  %v1910 = vpop.f32.mrb[0].mxu0
  %1911 = vmatprep.mubr.f32.mxu0 0.0
  %1912 = vmatmul.mubr.f32.gmra.mrb[0].mxu0 %v1295
  %v1913 = vpop.f32.mrb[0].mxu0
  %v1914 = vadd.f32 0.0, %v1913
  %v1915 = vpop.f32.mrb[0].mxu0
  %1916 = vmatprep.mubr.f32.mxu0 0.0
  %1917 = vmatmul.mubr.f32.gmra.mrb[0].mxu0 %v1298
  %v1918 = vpop.f32.mrb[0].mxu0
  %v1919 = vadd.f32 0.0, %v1918
  %v1920 = vpop.f32.mrb[0].mxu0
  %1921 = vmatprep.mubr.f32.mxu0 0.0
  %1922 = vmatmul.mubr.f32.gmra.mrb[0].mxu0 %v1301
  %v1923 = vpop.f32.mrb[0].mxu0
  %v1924 = vadd.f32 0.0, %v1923
  %v1925 = vpop.f32.mrb[0].mxu0
  %1926 = vmatprep.mubr.f32.mxu0 0.0
  %1927 = vmatmul.mubr.f32.gmra.mrb[0].mxu0 %v1304
  %v1928 = vpop.f32.mrb[0].mxu0
  %v1929 = vadd.f32 0.0, %v1928
  %v1930 = vpop.f32.mrb[0].mxu0
  %1931 = vmatprep.mubr.f32.mxu0 0.0
  %1932 = vmatmul.mubr.f32.gmra.mrb[0].mxu0 %v1307
  %v1933 = vpop.f32.mrb[0].mxu0
  %v1934 = vadd.f32 0.0, %v1933
  %v1935 = vpop.f32.mrb[0].mxu0
  %1936 = vmatprep.mubr.f32.mxu0 0.0
  %1937 = vmatmul.mubr.f32.gmra.mrb[0].mxu0 %v1310
  %v1938 = vpop.f32.mrb[0].mxu0
  %v1939 = vadd.f32 0.0, %v1938
  %v1940 = vpop.f32.mrb[0].mxu0
  %1941 = vmatprep.mubr.f32.mxu0 0.0
  %1942 = vmatmul.mubr.f32.gmra.mrb[0].mxu0 %v1313
  %v1943 = vpop.f32.mrb[0].mxu0
  %v1944 = vadd.f32 0.0, %v1943
  %v1945 = vpop.f32.mrb[0].mxu0
  %1946 = vmatprep.mubr.f32.mxu0 0.0
  %1947 = vmatmul.mubr.f32.gmra.mrb[0].mxu0 %v1316
  %v1948 = vpop.f32.mrb[0].mxu0
  %v1949 = vadd.f32 0.0, %v1948
  %v1950 = vpop.f32.mrb[0].mxu0
  %1951 = vmatprep.mubr.f32.mxu0 0.0
  %1952 = vmatmul.mubr.f32.gmra.mrb[0].mxu0 %v1319
  %v1953 = vpop.f32.mrb[0].mxu0
  %v1954 = vadd.f32 0.0, %v1953
  %v1955 = vpop.f32.mrb[0].mxu0
  %1956 = vmatprep.mubr.f32.mxu0 0.0
  %1957 = vmatmul.mubr.f32.gmra.mrb[0].mxu0 %v1322
  %v1958 = vpop.f32.mrb[0].mxu0
  %v1959 = vadd.f32 0.0, %v1958
  %v1960 = vpop.f32.mrb[0].mxu0
  %1961 = vmatprep.mubr.f32.mxu0 0.0
  %1962 = vmatmul.mubr.f32.gmra.mrb[0].mxu0 %v1325
  %v1963 = vpop.f32.mrb[0].mxu0
  %v1964 = vadd.f32 0.0, %v1963
  %v1965 = vpop.f32.mrb[0].mxu0
  %1966 = vmatprep.mubr.f32.mxu0 0.0
  %1967 = vmatmul.mubr.f32.gmra.mrb[0].mxu0 %v1328
  %v1968 = vpop.f32.mrb[0].mxu0
  %v1969 = vadd.f32 0.0, %v1968
  %v1970 = vpop.f32.mrb[0].mxu0
  %1971 = vmatprep.mubr.f32.mxu0 0.0
  %1972 = vmatmul.mubr.f32.gmra.mrb[0].mxu0 %v1331
  %v1973 = vpop.f32.mrb[0].mxu0
  %v1974 = vadd.f32 0.0, %v1973
  %v1975 = vpop.f32.mrb[0].mxu0
  %1976 = vmatprep.mubr.f32.mxu0 0.0
  %1977 = vmatmul.mubr.f32.gmra.mrb[0].mxu0 %v1334
  %v1978 = vpop.f32.mrb[0].mxu0
  %v1979 = vadd.f32 0.0, %v1978
  %v1980 = vpop.f32.mrb[0].mxu0
  %1981 = vmatprep.mubr.f32.mxu0 0.0
  %1982 = vmatmul.mubr.f32.gmra.mrb[0].mxu0 %v1337
  %v1983 = vpop.f32.mrb[0].mxu0
  %v1984 = vadd.f32 0.0, %v1983
  %v1985 = vpop.f32.mrb[0].mxu0
  %1986 = vdwg.mxu0
  %1987 = vst.msk [vmem:[#allocation2 + $0x180] sm:$0xff] %vm1488, %v1909
  %1988 = vst.msk [vmem:[#allocation2 + $0x188] sm:$0xff] %vm1488, %v1914
  %1989 = vst.msk [vmem:[#allocation2 + $0x190] sm:$0xff] %vm1488, %v1919
  %1990 = vst.msk [vmem:[#allocation2 + $0x198] sm:$0xff] %vm1488, %v1924
  %1991 = vst.msk [vmem:[#allocation2 + $0x1a0] sm:$0xff] %vm1488, %v1929
  %1992 = vst.msk [vmem:[#allocation2 + $0x1a8] sm:$0xff] %vm1488, %v1934
  %1993 = vst.msk [vmem:[#allocation2 + $0x1b0] sm:$0xff] %vm1488, %v1939
  %1994 = vst.msk [vmem:[#allocation2 + $0x1b8] sm:$0xff] %vm1488, %v1944
  %1995 = vst.msk [vmem:[#allocation2 + $0x1c0] sm:$0xff] %vm1488, %v1949
  %1996 = vst.msk [vmem:[#allocation2 + $0x1c8] sm:$0xff] %vm1488, %v1954
  %1997 = vst.msk [vmem:[#allocation2 + $0x1d0] sm:$0xff] %vm1488, %v1959
  %1998 = vst.msk [vmem:[#allocation2 + $0x1d8] sm:$0xff] %vm1488, %v1964
  %1999 = vst.msk [vmem:[#allocation2 + $0x1e0] sm:$0xff] %vm1488, %v1969
  %2000 = vst.msk [vmem:[#allocation2 + $0x1e8] sm:$0xff] %vm1488, %v1974
  %2001 = vst.msk [vmem:[#allocation2 + $0x1f0] sm:$0xff] %vm1488, %v1979
  %2002 = vst.msk [vmem:[#allocation2 + $0x1f8] sm:$0xff] %vm1488, %v1984
  %s2003 = scalar_lea.vmem %s5, 16
  %v2004 = vld [vmem:[%s2003] sm:$0xf]
  %v2006 = vsel %vm1339, %v2004, 0
  %2008 = vmatprep.subr.mxu0 0.0
  %2009 = vmatpush1.msra.mxu0 %v2006
  %2010 = vmatprep.subr.mxu0 0.0
  %2011 = vmatpush1.msra.mxu0 0.0
  %2012 = vmatprep.subr.mxu0 0.0
  %2013 = vmatpush1.msra.mxu0 0.0
  %2014 = vmatprep.subr.mxu0 0.0
  %2015 = vmatpush1.msra.mxu0 0.0
  %2016 = vmatprep.subr.mxu0 0.0
  %2017 = vmatpush1.msra.mxu0 0.0
  %2018 = vmatprep.subr.mxu0 0.0
  %2019 = vmatpush1.msra.mxu0 0.0
  %2020 = vmatprep.subr.mxu0 0.0
  %2021 = vmatpush1.msra.mxu0 0.0
  %2022 = vmatprep.subr.mxu0 0.0
  %2023 = vmatpush1.msra.mxu0 0.0
  %2024 = vmatprep.subr.mxu0 0.0
  %2025 = vmatpush1.msra.mxu0 0.0
  %2026 = vmatprep.subr.mxu0 0.0
  %2027 = vmatpush1.msra.mxu0 0.0
  %2028 = vmatprep.subr.mxu0 0.0
  %2029 = vmatpush1.msra.mxu0 0.0
  %2030 = vmatprep.subr.mxu0 0.0
  %2031 = vmatpush1.msra.mxu0 0.0
  %2032 = vmatprep.subr.mxu0 0.0
  %2033 = vmatpush1.msra.mxu0 0.0
  %2034 = vmatprep.subr.mxu0 0.0
  %2035 = vmatpush1.msra.mxu0 0.0
  %2036 = vmatprep.subr.mxu0 0.0
  %2037 = vmatpush1.msra.mxu0 0.0
  %2038 = vmatprep.subr.mxu0 0.0
  %2039 = vmatpush1.msra.mxu0 0.0
  %2040 = vmatprep.subr.mxu0 0.0
  %2041 = vmatpush1.msra.mxu0 0.0
  %2042 = vmatprep.subr.mxu0 0.0
  %2043 = vmatpush1.msra.mxu0 0.0
  %2044 = vmatprep.subr.mxu0 0.0
  %2045 = vmatpush1.msra.mxu0 0.0
  %2046 = vmatprep.subr.mxu0 0.0
  %2047 = vmatpush1.msra.mxu0 0.0
  %2048 = vmatprep.subr.mxu0 0.0
  %2049 = vmatpush1.msra.mxu0 0.0
  %2050 = vmatprep.subr.mxu0 0.0
  %2051 = vmatpush1.msra.mxu0 0.0
  %2052 = vmatprep.subr.mxu0 0.0
  %2053 = vmatpush1.msra.mxu0 0.0
  %2054 = vmatprep.subr.mxu0 0.0
  %2055 = vmatpush1.msra.mxu0 0.0
  %2056 = vmatprep.subr.mxu0 0.0
  %2057 = vmatpush1.msra.mxu0 0.0
  %2058 = vmatprep.subr.mxu0 0.0
  %2059 = vmatpush1.msra.mxu0 0.0
  %2060 = vmatprep.subr.mxu0 0.0
  %2061 = vmatpush1.msra.mxu0 0.0
  %2062 = vmatprep.subr.mxu0 0.0
  %2063 = vmatpush1.msra.mxu0 0.0
  %2064 = vmatprep.subr.mxu0 0.0
  %2065 = vmatpush1.msra.mxu0 0.0
  %2066 = vmatprep.subr.mxu0 0.0
  %2067 = vmatpush1.msra.mxu0 0.0
  %2068 = vmatprep.subr.mxu0 0.0
  %2069 = vmatpush1.msra.mxu0 0.0
  %2070 = vmatprep.subr.mxu0 0.0
  %2071 = vmatpush1.msra.mxu0 0.0
  %2072 = vmatprep.mubr.f32.mxu0 0.0
  %2073 = vmatmul.mubr.f32.gmra.mrb[0].mxu0 %v1292
  %v2074 = vpop.f32.mrb[0].mxu0
  %v2075 = vadd.f32 0.0, %v2074
  %v2076 = vpop.f32.mrb[0].mxu0
  %2077 = vmatprep.mubr.f32.mxu0 0.0
  %2078 = vmatmul.mubr.f32.gmra.mrb[0].mxu0 %v1295
  %v2079 = vpop.f32.mrb[0].mxu0
  %v2080 = vadd.f32 0.0, %v2079
  %v2081 = vpop.f32.mrb[0].mxu0
  %2082 = vmatprep.mubr.f32.mxu0 0.0
  %2083 = vmatmul.mubr.f32.gmra.mrb[0].mxu0 %v1298
  %v2084 = vpop.f32.mrb[0].mxu0
  %v2085 = vadd.f32 0.0, %v2084
  %v2086 = vpop.f32.mrb[0].mxu0
  %2087 = vmatprep.mubr.f32.mxu0 0.0
  %2088 = vmatmul.mubr.f32.gmra.mrb[0].mxu0 %v1301
  %v2089 = vpop.f32.mrb[0].mxu0
  %v2090 = vadd.f32 0.0, %v2089
  %v2091 = vpop.f32.mrb[0].mxu0
  %2092 = vmatprep.mubr.f32.mxu0 0.0
  %2093 = vmatmul.mubr.f32.gmra.mrb[0].mxu0 %v1304
  %v2094 = vpop.f32.mrb[0].mxu0
  %v2095 = vadd.f32 0.0, %v2094
  %v2096 = vpop.f32.mrb[0].mxu0
  %2097 = vmatprep.mubr.f32.mxu0 0.0
  %2098 = vmatmul.mubr.f32.gmra.mrb[0].mxu0 %v1307
  %v2099 = vpop.f32.mrb[0].mxu0
  %v2100 = vadd.f32 0.0, %v2099
  %v2101 = vpop.f32.mrb[0].mxu0
  %2102 = vmatprep.mubr.f32.mxu0 0.0
  %2103 = vmatmul.mubr.f32.gmra.mrb[0].mxu0 %v1310
  %v2104 = vpop.f32.mrb[0].mxu0
  %v2105 = vadd.f32 0.0, %v2104
  %v2106 = vpop.f32.mrb[0].mxu0
  %2107 = vmatprep.mubr.f32.mxu0 0.0
  %2108 = vmatmul.mubr.f32.gmra.mrb[0].mxu0 %v1313
  %v2109 = vpop.f32.mrb[0].mxu0
  %v2110 = vadd.f32 0.0, %v2109
  %v2111 = vpop.f32.mrb[0].mxu0
  %2112 = vmatprep.mubr.f32.mxu0 0.0
  %2113 = vmatmul.mubr.f32.gmra.mrb[0].mxu0 %v1316
  %v2114 = vpop.f32.mrb[0].mxu0
  %v2115 = vadd.f32 0.0, %v2114
  %v2116 = vpop.f32.mrb[0].mxu0
  %2117 = vmatprep.mubr.f32.mxu0 0.0
  %2118 = vmatmul.mubr.f32.gmra.mrb[0].mxu0 %v1319
  %v2119 = vpop.f32.mrb[0].mxu0
  %v2120 = vadd.f32 0.0, %v2119
  %v2121 = vpop.f32.mrb[0].mxu0
  %2122 = vmatprep.mubr.f32.mxu0 0.0
  %2123 = vmatmul.mubr.f32.gmra.mrb[0].mxu0 %v1322
  %v2124 = vpop.f32.mrb[0].mxu0
  %v2125 = vadd.f32 0.0, %v2124
  %v2126 = vpop.f32.mrb[0].mxu0
  %2127 = vmatprep.mubr.f32.mxu0 0.0
  %2128 = vmatmul.mubr.f32.gmra.mrb[0].mxu0 %v1325
  %v2129 = vpop.f32.mrb[0].mxu0
  %v2130 = vadd.f32 0.0, %v2129
  %v2131 = vpop.f32.mrb[0].mxu0
  %2132 = vmatprep.mubr.f32.mxu0 0.0
  %2133 = vmatmul.mubr.f32.gmra.mrb[0].mxu0 %v1328
  %v2134 = vpop.f32.mrb[0].mxu0
  %v2135 = vadd.f32 0.0, %v2134
  %v2136 = vpop.f32.mrb[0].mxu0
  %2137 = vmatprep.mubr.f32.mxu0 0.0
  %2138 = vmatmul.mubr.f32.gmra.mrb[0].mxu0 %v1331
  %v2139 = vpop.f32.mrb[0].mxu0
  %v2140 = vadd.f32 0.0, %v2139
  %v2141 = vpop.f32.mrb[0].mxu0
  %2142 = vmatprep.mubr.f32.mxu0 0.0
  %2143 = vmatmul.mubr.f32.gmra.mrb[0].mxu0 %v1334
  %v2144 = vpop.f32.mrb[0].mxu0
  %v2145 = vadd.f32 0.0, %v2144
  %v2146 = vpop.f32.mrb[0].mxu0
  %2147 = vmatprep.mubr.f32.mxu0 0.0
  %2148 = vmatmul.mubr.f32.gmra.mrb[0].mxu0 %v1337
  %v2149 = vpop.f32.mrb[0].mxu0
  %v2150 = vadd.f32 0.0, %v2149
  %v2151 = vpop.f32.mrb[0].mxu0
  %2152 = vdwg.mxu0
  %2153 = vst.msk [vmem:[#allocation2 + $0x200] sm:$0xff] %vm1488, %v2075
  %2154 = vst.msk [vmem:[#allocation2 + $0x208] sm:$0xff] %vm1488, %v2080
  %2155 = vst.msk [vmem:[#allocation2 + $0x210] sm:$0xff] %vm1488, %v2085
  %2156 = vst.msk [vmem:[#allocation2 + $0x218] sm:$0xff] %vm1488, %v2090
  %2157 = vst.msk [vmem:[#allocation2 + $0x220] sm:$0xff] %vm1488, %v2095
  %2158 = vst.msk [vmem:[#allocation2 + $0x228] sm:$0xff] %vm1488, %v2100
  %2159 = vst.msk [vmem:[#allocation2 + $0x230] sm:$0xff] %vm1488, %v2105
  %2160 = vst.msk [vmem:[#allocation2 + $0x238] sm:$0xff] %vm1488, %v2110
  %2161 = vst.msk [vmem:[#allocation2 + $0x240] sm:$0xff] %vm1488, %v2115
  %2162 = vst.msk [vmem:[#allocation2 + $0x248] sm:$0xff] %vm1488, %v2120
  %2163 = vst.msk [vmem:[#allocation2 + $0x250] sm:$0xff] %vm1488, %v2125
  %2164 = vst.msk [vmem:[#allocation2 + $0x258] sm:$0xff] %vm1488, %v2130
  %2165 = vst.msk [vmem:[#allocation2 + $0x260] sm:$0xff] %vm1488, %v2135
  %2166 = vst.msk [vmem:[#allocation2 + $0x268] sm:$0xff] %vm1488, %v2140
  %2167 = vst.msk [vmem:[#allocation2 + $0x270] sm:$0xff] %vm1488, %v2145
  %2168 = vst.msk [vmem:[#allocation2 + $0x278] sm:$0xff] %vm1488, %v2150
  %s2169 = scalar_lea.vmem %s5, 20
  %v2170 = vld [vmem:[%s2169] sm:$0xf]
  %v2172 = vsel %vm1339, %v2170, 0
  %2174 = vmatprep.subr.mxu0 0.0
  %2175 = vmatpush1.msra.mxu0 %v2172
  %2176 = vmatprep.subr.mxu0 0.0
  %2177 = vmatpush1.msra.mxu0 0.0
  %2178 = vmatprep.subr.mxu0 0.0
  %2179 = vmatpush1.msra.mxu0 0.0
  %2180 = vmatprep.subr.mxu0 0.0
  %2181 = vmatpush1.msra.mxu0 0.0
  %2182 = vmatprep.subr.mxu0 0.0
  %2183 = vmatpush1.msra.mxu0 0.0
  %2184 = vmatprep.subr.mxu0 0.0
  %2185 = vmatpush1.msra.mxu0 0.0
  %2186 = vmatprep.subr.mxu0 0.0
  %2187 = vmatpush1.msra.mxu0 0.0
  %2188 = vmatprep.subr.mxu0 0.0
  %2189 = vmatpush1.msra.mxu0 0.0
  %2190 = vmatprep.subr.mxu0 0.0
  %2191 = vmatpush1.msra.mxu0 0.0
  %2192 = vmatprep.subr.mxu0 0.0
  %2193 = vmatpush1.msra.mxu0 0.0
  %2194 = vmatprep.subr.mxu0 0.0
  %2195 = vmatpush1.msra.mxu0 0.0
  %2196 = vmatprep.subr.mxu0 0.0
  %2197 = vmatpush1.msra.mxu0 0.0
  %2198 = vmatprep.subr.mxu0 0.0
  %2199 = vmatpush1.msra.mxu0 0.0
  %2200 = vmatprep.subr.mxu0 0.0
  %2201 = vmatpush1.msra.mxu0 0.0
  %2202 = vmatprep.subr.mxu0 0.0
  %2203 = vmatpush1.msra.mxu0 0.0
  %2204 = vmatprep.subr.mxu0 0.0
  %2205 = vmatpush1.msra.mxu0 0.0
  %2206 = vmatprep.subr.mxu0 0.0
  %2207 = vmatpush1.msra.mxu0 0.0
  %2208 = vmatprep.subr.mxu0 0.0
  %2209 = vmatpush1.msra.mxu0 0.0
  %2210 = vmatprep.subr.mxu0 0.0
  %2211 = vmatpush1.msra.mxu0 0.0
  %2212 = vmatprep.subr.mxu0 0.0
  %2213 = vmatpush1.msra.mxu0 0.0
  %2214 = vmatprep.subr.mxu0 0.0
  %2215 = vmatpush1.msra.mxu0 0.0
  %2216 = vmatprep.subr.mxu0 0.0
  %2217 = vmatpush1.msra.mxu0 0.0
  %2218 = vmatprep.subr.mxu0 0.0
  %2219 = vmatpush1.msra.mxu0 0.0
  %2220 = vmatprep.subr.mxu0 0.0
  %2221 = vmatpush1.msra.mxu0 0.0
  %2222 = vmatprep.subr.mxu0 0.0
  %2223 = vmatpush1.msra.mxu0 0.0
  %2224 = vmatprep.subr.mxu0 0.0
  %2225 = vmatpush1.msra.mxu0 0.0
  %2226 = vmatprep.subr.mxu0 0.0
  %2227 = vmatpush1.msra.mxu0 0.0
  %2228 = vmatprep.subr.mxu0 0.0
  %2229 = vmatpush1.msra.mxu0 0.0
  %2230 = vmatprep.subr.mxu0 0.0
  %2231 = vmatpush1.msra.mxu0 0.0
  %2232 = vmatprep.subr.mxu0 0.0
  %2233 = vmatpush1.msra.mxu0 0.0
  %2234 = vmatprep.subr.mxu0 0.0
  %2235 = vmatpush1.msra.mxu0 0.0
  %2236 = vmatprep.subr.mxu0 0.0
  %2237 = vmatpush1.msra.mxu0 0.0
  %2238 = vmatprep.mubr.f32.mxu0 0.0
  %2239 = vmatmul.mubr.f32.gmra.mrb[0].mxu0 %v1292
  %v2240 = vpop.f32.mrb[0].mxu0
  %v2241 = vadd.f32 0.0, %v2240
  %v2242 = vpop.f32.mrb[0].mxu0
  %2243 = vmatprep.mubr.f32.mxu0 0.0
  %2244 = vmatmul.mubr.f32.gmra.mrb[0].mxu0 %v1295
  %v2245 = vpop.f32.mrb[0].mxu0
  %v2246 = vadd.f32 0.0, %v2245
  %v2247 = vpop.f32.mrb[0].mxu0
  %2248 = vmatprep.mubr.f32.mxu0 0.0
  %2249 = vmatmul.mubr.f32.gmra.mrb[0].mxu0 %v1298
  %v2250 = vpop.f32.mrb[0].mxu0
  %v2251 = vadd.f32 0.0, %v2250
  %v2252 = vpop.f32.mrb[0].mxu0
  %2253 = vmatprep.mubr.f32.mxu0 0.0
  %2254 = vmatmul.mubr.f32.gmra.mrb[0].mxu0 %v1301
  %v2255 = vpop.f32.mrb[0].mxu0
  %v2256 = vadd.f32 0.0, %v2255
  %v2257 = vpop.f32.mrb[0].mxu0
  %2258 = vmatprep.mubr.f32.mxu0 0.0
  %2259 = vmatmul.mubr.f32.gmra.mrb[0].mxu0 %v1304
  %v2260 = vpop.f32.mrb[0].mxu0
  %v2261 = vadd.f32 0.0, %v2260
  %v2262 = vpop.f32.mrb[0].mxu0
  %2263 = vmatprep.mubr.f32.mxu0 0.0
  %2264 = vmatmul.mubr.f32.gmra.mrb[0].mxu0 %v1307
  %v2265 = vpop.f32.mrb[0].mxu0
  %v2266 = vadd.f32 0.0, %v2265
  %v2267 = vpop.f32.mrb[0].mxu0
  %2268 = vmatprep.mubr.f32.mxu0 0.0
  %2269 = vmatmul.mubr.f32.gmra.mrb[0].mxu0 %v1310
  %v2270 = vpop.f32.mrb[0].mxu0
  %v2271 = vadd.f32 0.0, %v2270
  %v2272 = vpop.f32.mrb[0].mxu0
  %2273 = vmatprep.mubr.f32.mxu0 0.0
  %2274 = vmatmul.mubr.f32.gmra.mrb[0].mxu0 %v1313
  %v2275 = vpop.f32.mrb[0].mxu0
  %v2276 = vadd.f32 0.0, %v2275
  %v2277 = vpop.f32.mrb[0].mxu0
  %2278 = vmatprep.mubr.f32.mxu0 0.0
  %2279 = vmatmul.mubr.f32.gmra.mrb[0].mxu0 %v1316
  %v2280 = vpop.f32.mrb[0].mxu0
  %v2281 = vadd.f32 0.0, %v2280
  %v2282 = vpop.f32.mrb[0].mxu0
  %2283 = vmatprep.mubr.f32.mxu0 0.0
  %2284 = vmatmul.mubr.f32.gmra.mrb[0].mxu0 %v1319
  %v2285 = vpop.f32.mrb[0].mxu0
  %v2286 = vadd.f32 0.0, %v2285
  %v2287 = vpop.f32.mrb[0].mxu0
  %2288 = vmatprep.mubr.f32.mxu0 0.0
  %2289 = vmatmul.mubr.f32.gmra.mrb[0].mxu0 %v1322
  %v2290 = vpop.f32.mrb[0].mxu0
  %v2291 = vadd.f32 0.0, %v2290
  %v2292 = vpop.f32.mrb[0].mxu0
  %2293 = vmatprep.mubr.f32.mxu0 0.0
  %2294 = vmatmul.mubr.f32.gmra.mrb[0].mxu0 %v1325
  %v2295 = vpop.f32.mrb[0].mxu0
  %v2296 = vadd.f32 0.0, %v2295
  %v2297 = vpop.f32.mrb[0].mxu0
  %2298 = vmatprep.mubr.f32.mxu0 0.0
  %2299 = vmatmul.mubr.f32.gmra.mrb[0].mxu0 %v1328
  %v2300 = vpop.f32.mrb[0].mxu0
  %v2301 = vadd.f32 0.0, %v2300
  %v2302 = vpop.f32.mrb[0].mxu0
  %2303 = vmatprep.mubr.f32.mxu0 0.0
  %2304 = vmatmul.mubr.f32.gmra.mrb[0].mxu0 %v1331
  %v2305 = vpop.f32.mrb[0].mxu0
  %v2306 = vadd.f32 0.0, %v2305
  %v2307 = vpop.f32.mrb[0].mxu0
  %2308 = vmatprep.mubr.f32.mxu0 0.0
  %2309 = vmatmul.mubr.f32.gmra.mrb[0].mxu0 %v1334
  %v2310 = vpop.f32.mrb[0].mxu0
  %v2311 = vadd.f32 0.0, %v2310
  %v2312 = vpop.f32.mrb[0].mxu0
  %2313 = vmatprep.mubr.f32.mxu0 0.0
  %2314 = vmatmul.mubr.f32.gmra.mrb[0].mxu0 %v1337
  %v2315 = vpop.f32.mrb[0].mxu0
  %v2316 = vadd.f32 0.0, %v2315
  %v2317 = vpop.f32.mrb[0].mxu0
  %2318 = vdwg.mxu0
  %2319 = vst.msk [vmem:[#allocation2 + $0x280] sm:$0xff] %vm1488, %v2241
  %2320 = vst.msk [vmem:[#allocation2 + $0x288] sm:$0xff] %vm1488, %v2246
  %2321 = vst.msk [vmem:[#allocation2 + $0x290] sm:$0xff] %vm1488, %v2251
  %2322 = vst.msk [vmem:[#allocation2 + $0x298] sm:$0xff] %vm1488, %v2256
  %2323 = vst.msk [vmem:[#allocation2 + $0x2a0] sm:$0xff] %vm1488, %v2261
  %2324 = vst.msk [vmem:[#allocation2 + $0x2a8] sm:$0xff] %vm1488, %v2266
  %2325 = vst.msk [vmem:[#allocation2 + $0x2b0] sm:$0xff] %vm1488, %v2271
  %2326 = vst.msk [vmem:[#allocation2 + $0x2b8] sm:$0xff] %vm1488, %v2276
  %2327 = vst.msk [vmem:[#allocation2 + $0x2c0] sm:$0xff] %vm1488, %v2281
  %2328 = vst.msk [vmem:[#allocation2 + $0x2c8] sm:$0xff] %vm1488, %v2286
  %2329 = vst.msk [vmem:[#allocation2 + $0x2d0] sm:$0xff] %vm1488, %v2291
  %2330 = vst.msk [vmem:[#allocation2 + $0x2d8] sm:$0xff] %vm1488, %v2296
  %2331 = vst.msk [vmem:[#allocation2 + $0x2e0] sm:$0xff] %vm1488, %v2301
  %2332 = vst.msk [vmem:[#allocation2 + $0x2e8] sm:$0xff] %vm1488, %v2306
  %2333 = vst.msk [vmem:[#allocation2 + $0x2f0] sm:$0xff] %vm1488, %v2311
  %2334 = vst.msk [vmem:[#allocation2 + $0x2f8] sm:$0xff] %vm1488, %v2316
  %s2335 = scalar_lea.vmem %s5, 24
  %v2336 = vld [vmem:[%s2335] sm:$0xf]
  %v2338 = vsel %vm1339, %v2336, 0
  %2340 = vmatprep.subr.mxu0 0.0
  %2341 = vmatpush1.msra.mxu0 %v2338
  %2342 = vmatprep.subr.mxu0 0.0
  %2343 = vmatpush1.msra.mxu0 0.0
  %2344 = vmatprep.subr.mxu0 0.0
  %2345 = vmatpush1.msra.mxu0 0.0
  %2346 = vmatprep.subr.mxu0 0.0
  %2347 = vmatpush1.msra.mxu0 0.0
  %2348 = vmatprep.subr.mxu0 0.0
  %2349 = vmatpush1.msra.mxu0 0.0
  %2350 = vmatprep.subr.mxu0 0.0
  %2351 = vmatpush1.msra.mxu0 0.0
  %2352 = vmatprep.subr.mxu0 0.0
  %2353 = vmatpush1.msra.mxu0 0.0
  %2354 = vmatprep.subr.mxu0 0.0
  %2355 = vmatpush1.msra.mxu0 0.0
  %2356 = vmatprep.subr.mxu0 0.0
  %2357 = vmatpush1.msra.mxu0 0.0
  %2358 = vmatprep.subr.mxu0 0.0
  %2359 = vmatpush1.msra.mxu0 0.0
  %2360 = vmatprep.subr.mxu0 0.0
  %2361 = vmatpush1.msra.mxu0 0.0
  %2362 = vmatprep.subr.mxu0 0.0
  %2363 = vmatpush1.msra.mxu0 0.0
  %2364 = vmatprep.subr.mxu0 0.0
  %2365 = vmatpush1.msra.mxu0 0.0
  %2366 = vmatprep.subr.mxu0 0.0
  %2367 = vmatpush1.msra.mxu0 0.0
  %2368 = vmatprep.subr.mxu0 0.0
  %2369 = vmatpush1.msra.mxu0 0.0
  %2370 = vmatprep.subr.mxu0 0.0
  %2371 = vmatpush1.msra.mxu0 0.0
  %2372 = vmatprep.subr.mxu0 0.0
  %2373 = vmatpush1.msra.mxu0 0.0
  %2374 = vmatprep.subr.mxu0 0.0
  %2375 = vmatpush1.msra.mxu0 0.0
  %2376 = vmatprep.subr.mxu0 0.0
  %2377 = vmatpush1.msra.mxu0 0.0
  %2378 = vmatprep.subr.mxu0 0.0
  %2379 = vmatpush1.msra.mxu0 0.0
  %2380 = vmatprep.subr.mxu0 0.0
  %2381 = vmatpush1.msra.mxu0 0.0
  %2382 = vmatprep.subr.mxu0 0.0
  %2383 = vmatpush1.msra.mxu0 0.0
  %2384 = vmatprep.subr.mxu0 0.0
  %2385 = vmatpush1.msra.mxu0 0.0
  %2386 = vmatprep.subr.mxu0 0.0
  %2387 = vmatpush1.msra.mxu0 0.0
  %2388 = vmatprep.subr.mxu0 0.0
  %2389 = vmatpush1.msra.mxu0 0.0
  %2390 = vmatprep.subr.mxu0 0.0
  %2391 = vmatpush1.msra.mxu0 0.0
  %2392 = vmatprep.subr.mxu0 0.0
  %2393 = vmatpush1.msra.mxu0 0.0
  %2394 = vmatprep.subr.mxu0 0.0
  %2395 = vmatpush1.msra.mxu0 0.0
  %2396 = vmatprep.subr.mxu0 0.0
  %2397 = vmatpush1.msra.mxu0 0.0
  %2398 = vmatprep.subr.mxu0 0.0
  %2399 = vmatpush1.msra.mxu0 0.0
  %2400 = vmatprep.subr.mxu0 0.0
  %2401 = vmatpush1.msra.mxu0 0.0
  %2402 = vmatprep.subr.mxu0 0.0
  %2403 = vmatpush1.msra.mxu0 0.0
  %2404 = vmatprep.mubr.f32.mxu0 0.0
  %2405 = vmatmul.mubr.f32.gmra.mrb[0].mxu0 %v1292
  %v2406 = vpop.f32.mrb[0].mxu0
  %v2407 = vadd.f32 0.0, %v2406
  %v2408 = vpop.f32.mrb[0].mxu0
  %2409 = vmatprep.mubr.f32.mxu0 0.0
  %2410 = vmatmul.mubr.f32.gmra.mrb[0].mxu0 %v1295
  %v2411 = vpop.f32.mrb[0].mxu0
  %v2412 = vadd.f32 0.0, %v2411
  %v2413 = vpop.f32.mrb[0].mxu0
  %2414 = vmatprep.mubr.f32.mxu0 0.0
  %2415 = vmatmul.mubr.f32.gmra.mrb[0].mxu0 %v1298
  %v2416 = vpop.f32.mrb[0].mxu0
  %v2417 = vadd.f32 0.0, %v2416
  %v2418 = vpop.f32.mrb[0].mxu0
  %2419 = vmatprep.mubr.f32.mxu0 0.0
  %2420 = vmatmul.mubr.f32.gmra.mrb[0].mxu0 %v1301
  %v2421 = vpop.f32.mrb[0].mxu0
  %v2422 = vadd.f32 0.0, %v2421
  %v2423 = vpop.f32.mrb[0].mxu0
  %2424 = vmatprep.mubr.f32.mxu0 0.0
  %2425 = vmatmul.mubr.f32.gmra.mrb[0].mxu0 %v1304
  %v2426 = vpop.f32.mrb[0].mxu0
  %v2427 = vadd.f32 0.0, %v2426
  %v2428 = vpop.f32.mrb[0].mxu0
  %2429 = vmatprep.mubr.f32.mxu0 0.0
  %2430 = vmatmul.mubr.f32.gmra.mrb[0].mxu0 %v1307
  %v2431 = vpop.f32.mrb[0].mxu0
  %v2432 = vadd.f32 0.0, %v2431
  %v2433 = vpop.f32.mrb[0].mxu0
  %2434 = vmatprep.mubr.f32.mxu0 0.0
  %2435 = vmatmul.mubr.f32.gmra.mrb[0].mxu0 %v1310
  %v2436 = vpop.f32.mrb[0].mxu0
  %v2437 = vadd.f32 0.0, %v2436
  %v2438 = vpop.f32.mrb[0].mxu0
  %2439 = vmatprep.mubr.f32.mxu0 0.0
  %2440 = vmatmul.mubr.f32.gmra.mrb[0].mxu0 %v1313
  %v2441 = vpop.f32.mrb[0].mxu0
  %v2442 = vadd.f32 0.0, %v2441
  %v2443 = vpop.f32.mrb[0].mxu0
  %2444 = vmatprep.mubr.f32.mxu0 0.0
  %2445 = vmatmul.mubr.f32.gmra.mrb[0].mxu0 %v1316
  %v2446 = vpop.f32.mrb[0].mxu0
  %v2447 = vadd.f32 0.0, %v2446
  %v2448 = vpop.f32.mrb[0].mxu0
  %2449 = vmatprep.mubr.f32.mxu0 0.0
  %2450 = vmatmul.mubr.f32.gmra.mrb[0].mxu0 %v1319
  %v2451 = vpop.f32.mrb[0].mxu0
  %v2452 = vadd.f32 0.0, %v2451
  %v2453 = vpop.f32.mrb[0].mxu0
  %2454 = vmatprep.mubr.f32.mxu0 0.0
  %2455 = vmatmul.mubr.f32.gmra.mrb[0].mxu0 %v1322
  %v2456 = vpop.f32.mrb[0].mxu0
  %v2457 = vadd.f32 0.0, %v2456
  %v2458 = vpop.f32.mrb[0].mxu0
  %2459 = vmatprep.mubr.f32.mxu0 0.0
  %2460 = vmatmul.mubr.f32.gmra.mrb[0].mxu0 %v1325
  %v2461 = vpop.f32.mrb[0].mxu0
  %v2462 = vadd.f32 0.0, %v2461
  %v2463 = vpop.f32.mrb[0].mxu0
  %2464 = vmatprep.mubr.f32.mxu0 0.0
  %2465 = vmatmul.mubr.f32.gmra.mrb[0].mxu0 %v1328
  %v2466 = vpop.f32.mrb[0].mxu0
  %v2467 = vadd.f32 0.0, %v2466
  %v2468 = vpop.f32.mrb[0].mxu0
  %2469 = vmatprep.mubr.f32.mxu0 0.0
  %2470 = vmatmul.mubr.f32.gmra.mrb[0].mxu0 %v1331
  %v2471 = vpop.f32.mrb[0].mxu0
  %v2472 = vadd.f32 0.0, %v2471
  %v2473 = vpop.f32.mrb[0].mxu0
  %2474 = vmatprep.mubr.f32.mxu0 0.0
  %2475 = vmatmul.mubr.f32.gmra.mrb[0].mxu0 %v1334
  %v2476 = vpop.f32.mrb[0].mxu0
  %v2477 = vadd.f32 0.0, %v2476
  %v2478 = vpop.f32.mrb[0].mxu0
  %2479 = vmatprep.mubr.f32.mxu0 0.0
  %2480 = vmatmul.mubr.f32.gmra.mrb[0].mxu0 %v1337
  %v2481 = vpop.f32.mrb[0].mxu0
  %v2482 = vadd.f32 0.0, %v2481
  %v2483 = vpop.f32.mrb[0].mxu0
  %2484 = vdwg.mxu0
  %2485 = vst.msk [vmem:[#allocation2 + $0x300] sm:$0xff] %vm1488, %v2407
  %2486 = vst.msk [vmem:[#allocation2 + $0x308] sm:$0xff] %vm1488, %v2412
  %2487 = vst.msk [vmem:[#allocation2 + $0x310] sm:$0xff] %vm1488, %v2417
  %2488 = vst.msk [vmem:[#allocation2 + $0x318] sm:$0xff] %vm1488, %v2422
  %2489 = vst.msk [vmem:[#allocation2 + $0x320] sm:$0xff] %vm1488, %v2427
  %2490 = vst.msk [vmem:[#allocation2 + $0x328] sm:$0xff] %vm1488, %v2432
  %2491 = vst.msk [vmem:[#allocation2 + $0x330] sm:$0xff] %vm1488, %v2437
  %2492 = vst.msk [vmem:[#allocation2 + $0x338] sm:$0xff] %vm1488, %v2442
  %2493 = vst.msk [vmem:[#allocation2 + $0x340] sm:$0xff] %vm1488, %v2447
  %2494 = vst.msk [vmem:[#allocation2 + $0x348] sm:$0xff] %vm1488, %v2452
  %2495 = vst.msk [vmem:[#allocation2 + $0x350] sm:$0xff] %vm1488, %v2457
  %2496 = vst.msk [vmem:[#allocation2 + $0x358] sm:$0xff] %vm1488, %v2462
  %2497 = vst.msk [vmem:[#allocation2 + $0x360] sm:$0xff] %vm1488, %v2467
  %2498 = vst.msk [vmem:[#allocation2 + $0x368] sm:$0xff] %vm1488, %v2472
  %2499 = vst.msk [vmem:[#allocation2 + $0x370] sm:$0xff] %vm1488, %v2477
  %2500 = vst.msk [vmem:[#allocation2 + $0x378] sm:$0xff] %vm1488, %v2482
  %s2501 = scalar_lea.vmem %s5, 28
  %v2502 = vld [vmem:[%s2501] sm:$0xf]
  %v2504 = vsel %vm1339, %v2502, 0
  %2506 = vmatprep.subr.mxu0 0.0
  %2507 = vmatpush1.msra.mxu0 %v2504
  %2508 = vmatprep.subr.mxu0 0.0
  %2509 = vmatpush1.msra.mxu0 0.0
  %2510 = vmatprep.subr.mxu0 0.0
  %2511 = vmatpush1.msra.mxu0 0.0
  %2512 = vmatprep.subr.mxu0 0.0
  %2513 = vmatpush1.msra.mxu0 0.0
  %2514 = vmatprep.subr.mxu0 0.0
  %2515 = vmatpush1.msra.mxu0 0.0
  %2516 = vmatprep.subr.mxu0 0.0
  %2517 = vmatpush1.msra.mxu0 0.0
  %2518 = vmatprep.subr.mxu0 0.0
  %2519 = vmatpush1.msra.mxu0 0.0
  %2520 = vmatprep.subr.mxu0 0.0
  %2521 = vmatpush1.msra.mxu0 0.0
  %2522 = vmatprep.subr.mxu0 0.0
  %2523 = vmatpush1.msra.mxu0 0.0
  %2524 = vmatprep.subr.mxu0 0.0
  %2525 = vmatpush1.msra.mxu0 0.0
  %2526 = vmatprep.subr.mxu0 0.0
  %2527 = vmatpush1.msra.mxu0 0.0
  %2528 = vmatprep.subr.mxu0 0.0
  %2529 = vmatpush1.msra.mxu0 0.0
  %2530 = vmatprep.subr.mxu0 0.0
  %2531 = vmatpush1.msra.mxu0 0.0
  %2532 = vmatprep.subr.mxu0 0.0
  %2533 = vmatpush1.msra.mxu0 0.0
  %2534 = vmatprep.subr.mxu0 0.0
  %2535 = vmatpush1.msra.mxu0 0.0
  %2536 = vmatprep.subr.mxu0 0.0
  %2537 = vmatpush1.msra.mxu0 0.0
  %2538 = vmatprep.subr.mxu0 0.0
  %2539 = vmatpush1.msra.mxu0 0.0
  %2540 = vmatprep.subr.mxu0 0.0
  %2541 = vmatpush1.msra.mxu0 0.0
  %2542 = vmatprep.subr.mxu0 0.0
  %2543 = vmatpush1.msra.mxu0 0.0
  %2544 = vmatprep.subr.mxu0 0.0
  %2545 = vmatpush1.msra.mxu0 0.0
  %2546 = vmatprep.subr.mxu0 0.0
  %2547 = vmatpush1.msra.mxu0 0.0
  %2548 = vmatprep.subr.mxu0 0.0
  %2549 = vmatpush1.msra.mxu0 0.0
  %2550 = vmatprep.subr.mxu0 0.0
  %2551 = vmatpush1.msra.mxu0 0.0
  %2552 = vmatprep.subr.mxu0 0.0
  %2553 = vmatpush1.msra.mxu0 0.0
  %2554 = vmatprep.subr.mxu0 0.0
  %2555 = vmatpush1.msra.mxu0 0.0
  %2556 = vmatprep.subr.mxu0 0.0
  %2557 = vmatpush1.msra.mxu0 0.0
  %2558 = vmatprep.subr.mxu0 0.0
  %2559 = vmatpush1.msra.mxu0 0.0
  %2560 = vmatprep.subr.mxu0 0.0
  %2561 = vmatpush1.msra.mxu0 0.0
  %2562 = vmatprep.subr.mxu0 0.0
  %2563 = vmatpush1.msra.mxu0 0.0
  %2564 = vmatprep.subr.mxu0 0.0
  %2565 = vmatpush1.msra.mxu0 0.0
  %2566 = vmatprep.subr.mxu0 0.0
  %2567 = vmatpush1.msra.mxu0 0.0
  %2568 = vmatprep.subr.mxu0 0.0
  %2569 = vmatpush1.msra.mxu0 0.0
  %2570 = vmatprep.mubr.f32.mxu0 0.0
  %2571 = vmatmul.mubr.f32.gmra.mrb[0].mxu0 %v1292
  %v2572 = vpop.f32.mrb[0].mxu0
  %v2573 = vadd.f32 0.0, %v2572
  %v2574 = vpop.f32.mrb[0].mxu0
  %2575 = vmatprep.mubr.f32.mxu0 0.0
  %2576 = vmatmul.mubr.f32.gmra.mrb[0].mxu0 %v1295
  %v2577 = vpop.f32.mrb[0].mxu0
  %v2578 = vadd.f32 0.0, %v2577
  %v2579 = vpop.f32.mrb[0].mxu0
  %2580 = vmatprep.mubr.f32.mxu0 0.0
  %2581 = vmatmul.mubr.f32.gmra.mrb[0].mxu0 %v1298
  %v2582 = vpop.f32.mrb[0].mxu0
  %v2583 = vadd.f32 0.0, %v2582
  %v2584 = vpop.f32.mrb[0].mxu0
  %2585 = vmatprep.mubr.f32.mxu0 0.0
  %2586 = vmatmul.mubr.f32.gmra.mrb[0].mxu0 %v1301
  %v2587 = vpop.f32.mrb[0].mxu0
  %v2588 = vadd.f32 0.0, %v2587
  %v2589 = vpop.f32.mrb[0].mxu0
  %2590 = vmatprep.mubr.f32.mxu0 0.0
  %2591 = vmatmul.mubr.f32.gmra.mrb[0].mxu0 %v1304
  %v2592 = vpop.f32.mrb[0].mxu0
  %v2593 = vadd.f32 0.0, %v2592
  %v2594 = vpop.f32.mrb[0].mxu0
  %2595 = vmatprep.mubr.f32.mxu0 0.0
  %2596 = vmatmul.mubr.f32.gmra.mrb[0].mxu0 %v1307
  %v2597 = vpop.f32.mrb[0].mxu0
  %v2598 = vadd.f32 0.0, %v2597
  %v2599 = vpop.f32.mrb[0].mxu0
  %2600 = vmatprep.mubr.f32.mxu0 0.0
  %2601 = vmatmul.mubr.f32.gmra.mrb[0].mxu0 %v1310
  %v2602 = vpop.f32.mrb[0].mxu0
  %v2603 = vadd.f32 0.0, %v2602
  %v2604 = vpop.f32.mrb[0].mxu0
  %2605 = vmatprep.mubr.f32.mxu0 0.0
  %2606 = vmatmul.mubr.f32.gmra.mrb[0].mxu0 %v1313
  %v2607 = vpop.f32.mrb[0].mxu0
  %v2608 = vadd.f32 0.0, %v2607
  %v2609 = vpop.f32.mrb[0].mxu0
  %2610 = vmatprep.mubr.f32.mxu0 0.0
  %2611 = vmatmul.mubr.f32.gmra.mrb[0].mxu0 %v1316
  %v2612 = vpop.f32.mrb[0].mxu0
  %v2613 = vadd.f32 0.0, %v2612
  %v2614 = vpop.f32.mrb[0].mxu0
  %2615 = vmatprep.mubr.f32.mxu0 0.0
  %2616 = vmatmul.mubr.f32.gmra.mrb[0].mxu0 %v1319
  %v2617 = vpop.f32.mrb[0].mxu0
  %v2618 = vadd.f32 0.0, %v2617
  %v2619 = vpop.f32.mrb[0].mxu0
  %2620 = vmatprep.mubr.f32.mxu0 0.0
  %2621 = vmatmul.mubr.f32.gmra.mrb[0].mxu0 %v1322
  %v2622 = vpop.f32.mrb[0].mxu0
  %v2623 = vadd.f32 0.0, %v2622
  %v2624 = vpop.f32.mrb[0].mxu0
  %2625 = vmatprep.mubr.f32.mxu0 0.0
  %2626 = vmatmul.mubr.f32.gmra.mrb[0].mxu0 %v1325
  %v2627 = vpop.f32.mrb[0].mxu0
  %v2628 = vadd.f32 0.0, %v2627
  %v2629 = vpop.f32.mrb[0].mxu0
  %2630 = vmatprep.mubr.f32.mxu0 0.0
  %2631 = vmatmul.mubr.f32.gmra.mrb[0].mxu0 %v1328
  %v2632 = vpop.f32.mrb[0].mxu0
  %v2633 = vadd.f32 0.0, %v2632
  %v2634 = vpop.f32.mrb[0].mxu0
  %2635 = vmatprep.mubr.f32.mxu0 0.0
  %2636 = vmatmul.mubr.f32.gmra.mrb[0].mxu0 %v1331
  %v2637 = vpop.f32.mrb[0].mxu0
  %v2638 = vadd.f32 0.0, %v2637
  %v2639 = vpop.f32.mrb[0].mxu0
  %2640 = vmatprep.mubr.f32.mxu0 0.0
  %2641 = vmatmul.mubr.f32.gmra.mrb[0].mxu0 %v1334
  %v2642 = vpop.f32.mrb[0].mxu0
  %v2643 = vadd.f32 0.0, %v2642
  %v2644 = vpop.f32.mrb[0].mxu0
  %2645 = vmatprep.mubr.f32.mxu0 0.0
  %2646 = vmatmul.mubr.f32.gmra.mrb[0].mxu0 %v1337
  %v2647 = vpop.f32.mrb[0].mxu0
  %v2648 = vadd.f32 0.0, %v2647
  %v2649 = vpop.f32.mrb[0].mxu0
  %2650 = vdwg.mxu0
  %2651 = vst.msk [vmem:[#allocation2 + $0x380] sm:$0xff] %vm1488, %v2573
  %2652 = vst.msk [vmem:[#allocation2 + $0x388] sm:$0xff] %vm1488, %v2578
  %2653 = vst.msk [vmem:[#allocation2 + $0x390] sm:$0xff] %vm1488, %v2583
  %2654 = vst.msk [vmem:[#allocation2 + $0x398] sm:$0xff] %vm1488, %v2588
  %2655 = vst.msk [vmem:[#allocation2 + $0x3a0] sm:$0xff] %vm1488, %v2593
  %2656 = vst.msk [vmem:[#allocation2 + $0x3a8] sm:$0xff] %vm1488, %v2598
  %2657 = vst.msk [vmem:[#allocation2 + $0x3b0] sm:$0xff] %vm1488, %v2603
  %2658 = vst.msk [vmem:[#allocation2 + $0x3b8] sm:$0xff] %vm1488, %v2608
  %2659 = vst.msk [vmem:[#allocation2 + $0x3c0] sm:$0xff] %vm1488, %v2613
  %2660 = vst.msk [vmem:[#allocation2 + $0x3c8] sm:$0xff] %vm1488, %v2618
  %2661 = vst.msk [vmem:[#allocation2 + $0x3d0] sm:$0xff] %vm1488, %v2623
  %2662 = vst.msk [vmem:[#allocation2 + $0x3d8] sm:$0xff] %vm1488, %v2628
  %2663 = vst.msk [vmem:[#allocation2 + $0x3e0] sm:$0xff] %vm1488, %v2633
  %2664 = vst.msk [vmem:[#allocation2 + $0x3e8] sm:$0xff] %vm1488, %v2638
  %2665 = vst.msk [vmem:[#allocation2 + $0x3f0] sm:$0xff] %vm1488, %v2643
  %2666 = vst.msk [vmem:[#allocation2 + $0x3f8] sm:$0xff] %vm1488, %v2648
  %s2667 = scalar_lea.vmem %s5, 32
  %v2668 = vld [vmem:[%s2667] sm:$0xf]
  %v2670 = vsel %vm1339, %v2668, 0
  %2672 = vmatprep.subr.mxu0 0.0
  %2673 = vmatpush1.msra.mxu0 %v2670
  %2674 = vmatprep.subr.mxu0 0.0
  %2675 = vmatpush1.msra.mxu0 0.0
  %2676 = vmatprep.subr.mxu0 0.0
  %2677 = vmatpush1.msra.mxu0 0.0
  %2678 = vmatprep.subr.mxu0 0.0
  %2679 = vmatpush1.msra.mxu0 0.0
  %2680 = vmatprep.subr.mxu0 0.0
  %2681 = vmatpush1.msra.mxu0 0.0
  %2682 = vmatprep.subr.mxu0 0.0
  %2683 = vmatpush1.msra.mxu0 0.0
  %2684 = vmatprep.subr.mxu0 0.0
  %2685 = vmatpush1.msra.mxu0 0.0
  %2686 = vmatprep.subr.mxu0 0.0
  %2687 = vmatpush1.msra.mxu0 0.0
  %2688 = vmatprep.subr.mxu0 0.0
  %2689 = vmatpush1.msra.mxu0 0.0
  %2690 = vmatprep.subr.mxu0 0.0
  %2691 = vmatpush1.msra.mxu0 0.0
  %2692 = vmatprep.subr.mxu0 0.0
  %2693 = vmatpush1.msra.mxu0 0.0
  %2694 = vmatprep.subr.mxu0 0.0
  %2695 = vmatpush1.msra.mxu0 0.0
  %2696 = vmatprep.subr.mxu0 0.0
  %2697 = vmatpush1.msra.mxu0 0.0
  %2698 = vmatprep.subr.mxu0 0.0
  %2699 = vmatpush1.msra.mxu0 0.0
  %2700 = vmatprep.subr.mxu0 0.0
  %2701 = vmatpush1.msra.mxu0 0.0
  %2702 = vmatprep.subr.mxu0 0.0
  %2703 = vmatpush1.msra.mxu0 0.0
  %2704 = vmatprep.subr.mxu0 0.0
  %2705 = vmatpush1.msra.mxu0 0.0
  %2706 = vmatprep.subr.mxu0 0.0
  %2707 = vmatpush1.msra.mxu0 0.0
  %2708 = vmatprep.subr.mxu0 0.0
  %2709 = vmatpush1.msra.mxu0 0.0
  %2710 = vmatprep.subr.mxu0 0.0
  %2711 = vmatpush1.msra.mxu0 0.0
  %2712 = vmatprep.subr.mxu0 0.0
  %2713 = vmatpush1.msra.mxu0 0.0
  %2714 = vmatprep.subr.mxu0 0.0
  %2715 = vmatpush1.msra.mxu0 0.0
  %2716 = vmatprep.subr.mxu0 0.0
  %2717 = vmatpush1.msra.mxu0 0.0
  %2718 = vmatprep.subr.mxu0 0.0
  %2719 = vmatpush1.msra.mxu0 0.0
  %2720 = vmatprep.subr.mxu0 0.0
  %2721 = vmatpush1.msra.mxu0 0.0
  %2722 = vmatprep.subr.mxu0 0.0
  %2723 = vmatpush1.msra.mxu0 0.0
  %2724 = vmatprep.subr.mxu0 0.0
  %2725 = vmatpush1.msra.mxu0 0.0
  %2726 = vmatprep.subr.mxu0 0.0
  %2727 = vmatpush1.msra.mxu0 0.0
  %2728 = vmatprep.subr.mxu0 0.0
  %2729 = vmatpush1.msra.mxu0 0.0
  %2730 = vmatprep.subr.mxu0 0.0
  %2731 = vmatpush1.msra.mxu0 0.0
  %2732 = vmatprep.subr.mxu0 0.0
  %2733 = vmatpush1.msra.mxu0 0.0
  %2734 = vmatprep.subr.mxu0 0.0
  %2735 = vmatpush1.msra.mxu0 0.0
  %2736 = vmatprep.mubr.f32.mxu0 0.0
  %2737 = vmatmul.mubr.f32.gmra.mrb[0].mxu0 %v1292
  %v2738 = vpop.f32.mrb[0].mxu0
  %v2739 = vadd.f32 0.0, %v2738
  %v2740 = vpop.f32.mrb[0].mxu0
  %2741 = vmatprep.mubr.f32.mxu0 0.0
  %2742 = vmatmul.mubr.f32.gmra.mrb[0].mxu0 %v1295
  %v2743 = vpop.f32.mrb[0].mxu0
  %v2744 = vadd.f32 0.0, %v2743
  %v2745 = vpop.f32.mrb[0].mxu0
  %2746 = vmatprep.mubr.f32.mxu0 0.0
  %2747 = vmatmul.mubr.f32.gmra.mrb[0].mxu0 %v1298
  %v2748 = vpop.f32.mrb[0].mxu0
  %v2749 = vadd.f32 0.0, %v2748
  %v2750 = vpop.f32.mrb[0].mxu0
  %2751 = vmatprep.mubr.f32.mxu0 0.0
  %2752 = vmatmul.mubr.f32.gmra.mrb[0].mxu0 %v1301
  %v2753 = vpop.f32.mrb[0].mxu0
  %v2754 = vadd.f32 0.0, %v2753
  %v2755 = vpop.f32.mrb[0].mxu0
  %2756 = vmatprep.mubr.f32.mxu0 0.0
  %2757 = vmatmul.mubr.f32.gmra.mrb[0].mxu0 %v1304
  %v2758 = vpop.f32.mrb[0].mxu0
  %v2759 = vadd.f32 0.0, %v2758
  %v2760 = vpop.f32.mrb[0].mxu0
  %2761 = vmatprep.mubr.f32.mxu0 0.0
  %2762 = vmatmul.mubr.f32.gmra.mrb[0].mxu0 %v1307
  %v2763 = vpop.f32.mrb[0].mxu0
  %v2764 = vadd.f32 0.0, %v2763
  %v2765 = vpop.f32.mrb[0].mxu0
  %2766 = vmatprep.mubr.f32.mxu0 0.0
  %2767 = vmatmul.mubr.f32.gmra.mrb[0].mxu0 %v1310
  %v2768 = vpop.f32.mrb[0].mxu0
  %v2769 = vadd.f32 0.0, %v2768
  %v2770 = vpop.f32.mrb[0].mxu0
  %2771 = vmatprep.mubr.f32.mxu0 0.0
  %2772 = vmatmul.mubr.f32.gmra.mrb[0].mxu0 %v1313
  %v2773 = vpop.f32.mrb[0].mxu0
  %v2774 = vadd.f32 0.0, %v2773
  %v2775 = vpop.f32.mrb[0].mxu0
  %2776 = vmatprep.mubr.f32.mxu0 0.0
  %2777 = vmatmul.mubr.f32.gmra.mrb[0].mxu0 %v1316
  %v2778 = vpop.f32.mrb[0].mxu0
  %v2779 = vadd.f32 0.0, %v2778
  %v2780 = vpop.f32.mrb[0].mxu0
  %2781 = vmatprep.mubr.f32.mxu0 0.0
  %2782 = vmatmul.mubr.f32.gmra.mrb[0].mxu0 %v1319
  %v2783 = vpop.f32.mrb[0].mxu0
  %v2784 = vadd.f32 0.0, %v2783
  %v2785 = vpop.f32.mrb[0].mxu0
  %2786 = vmatprep.mubr.f32.mxu0 0.0
  %2787 = vmatmul.mubr.f32.gmra.mrb[0].mxu0 %v1322
  %v2788 = vpop.f32.mrb[0].mxu0
  %v2789 = vadd.f32 0.0, %v2788
  %v2790 = vpop.f32.mrb[0].mxu0
  %2791 = vmatprep.mubr.f32.mxu0 0.0
  %2792 = vmatmul.mubr.f32.gmra.mrb[0].mxu0 %v1325
  %v2793 = vpop.f32.mrb[0].mxu0
  %v2794 = vadd.f32 0.0, %v2793
  %v2795 = vpop.f32.mrb[0].mxu0
  %2796 = vmatprep.mubr.f32.mxu0 0.0
  %2797 = vmatmul.mubr.f32.gmra.mrb[0].mxu0 %v1328
  %v2798 = vpop.f32.mrb[0].mxu0
  %v2799 = vadd.f32 0.0, %v2798
  %v2800 = vpop.f32.mrb[0].mxu0
  %2801 = vmatprep.mubr.f32.mxu0 0.0
  %2802 = vmatmul.mubr.f32.gmra.mrb[0].mxu0 %v1331
  %v2803 = vpop.f32.mrb[0].mxu0
  %v2804 = vadd.f32 0.0, %v2803
  %v2805 = vpop.f32.mrb[0].mxu0
  %2806 = vmatprep.mubr.f32.mxu0 0.0
  %2807 = vmatmul.mubr.f32.gmra.mrb[0].mxu0 %v1334
  %v2808 = vpop.f32.mrb[0].mxu0
  %v2809 = vadd.f32 0.0, %v2808
  %v2810 = vpop.f32.mrb[0].mxu0
  %2811 = vmatprep.mubr.f32.mxu0 0.0
  %2812 = vmatmul.mubr.f32.gmra.mrb[0].mxu0 %v1337
  %v2813 = vpop.f32.mrb[0].mxu0
  %v2814 = vadd.f32 0.0, %v2813
  %v2815 = vpop.f32.mrb[0].mxu0
  %2816 = vdwg.mxu0
  %2817 = vst.msk [vmem:[#allocation2 + $0x400] sm:$0xff] %vm1488, %v2739
  %2818 = vst.msk [vmem:[#allocation2 + $0x408] sm:$0xff] %vm1488, %v2744
  %2819 = vst.msk [vmem:[#allocation2 + $0x410] sm:$0xff] %vm1488, %v2749
  %2820 = vst.msk [vmem:[#allocation2 + $0x418] sm:$0xff] %vm1488, %v2754
  %2821 = vst.msk [vmem:[#allocation2 + $0x420] sm:$0xff] %vm1488, %v2759
  %2822 = vst.msk [vmem:[#allocation2 + $0x428] sm:$0xff] %vm1488, %v2764
  %2823 = vst.msk [vmem:[#allocation2 + $0x430] sm:$0xff] %vm1488, %v2769
  %2824 = vst.msk [vmem:[#allocation2 + $0x438] sm:$0xff] %vm1488, %v2774
  %2825 = vst.msk [vmem:[#allocation2 + $0x440] sm:$0xff] %vm1488, %v2779
  %2826 = vst.msk [vmem:[#allocation2 + $0x448] sm:$0xff] %vm1488, %v2784
  %2827 = vst.msk [vmem:[#allocation2 + $0x450] sm:$0xff] %vm1488, %v2789
  %2828 = vst.msk [vmem:[#allocation2 + $0x458] sm:$0xff] %vm1488, %v2794
  %2829 = vst.msk [vmem:[#allocation2 + $0x460] sm:$0xff] %vm1488, %v2799
  %2830 = vst.msk [vmem:[#allocation2 + $0x468] sm:$0xff] %vm1488, %v2804
  %2831 = vst.msk [vmem:[#allocation2 + $0x470] sm:$0xff] %vm1488, %v2809
  %2832 = vst.msk [vmem:[#allocation2 + $0x478] sm:$0xff] %vm1488, %v2814
  %v2833 = vld [vmem:[%s4] sm:$0xff]
  %v2834 = vld [vmem:[%s4 + $0x8] sm:$0xff]
  %v2835 = vld [vmem:[%s4 + $0x10] sm:$0xff]
  %v2836 = vld [vmem:[%s4 + $0x18] sm:$0xff]
  %v2837 = vld [vmem:[%s4 + $0x20] sm:$0xff]
  %v2838 = vld [vmem:[%s4 + $0x28] sm:$0xff]
  %v2839 = vld [vmem:[%s4 + $0x30] sm:$0xff]
  %v2840 = vld [vmem:[%s4 + $0x38] sm:$0xff]
  %v2841 = vld [vmem:[%s4 + $0x40] sm:$0xff]
  %v2842 = vld [vmem:[%s4 + $0x48] sm:$0xff]
  %v2843 = vld [vmem:[%s4 + $0x50] sm:$0xff]
  %v2844 = vld [vmem:[%s4 + $0x58] sm:$0xff]
  %v2845 = vld [vmem:[%s4 + $0x60] sm:$0xff]
  %v2846 = vld [vmem:[%s4 + $0x68] sm:$0xff]
  %v2847 = vld [vmem:[%s4 + $0x70] sm:$0xff]
  %v2848 = vld [vmem:[%s4 + $0x78] sm:$0xff]
  %v2849 = vld [vmem:[%s4 + $0x80] sm:$0xff]
  %v2850 = vld [vmem:[%s4 + $0x88] sm:$0xff]
  %v2851 = vld [vmem:[%s4 + $0x90] sm:$0xff]
  %v2852 = vld [vmem:[%s4 + $0x98] sm:$0xff]
  %v2853 = vld [vmem:[%s4 + $0xa0] sm:$0xff]
  %v2854 = vld [vmem:[%s4 + $0xa8] sm:$0xff]
  %v2855 = vld [vmem:[%s4 + $0xb0] sm:$0xff]
  %v2856 = vld [vmem:[%s4 + $0xb8] sm:$0xff]
  %v2857 = vld [vmem:[%s4 + $0xc0] sm:$0xff]
  %v2858 = vld [vmem:[%s4 + $0xc8] sm:$0xff]
  %v2859 = vld [vmem:[%s4 + $0xd0] sm:$0xff]
  %v2860 = vld [vmem:[%s4 + $0xd8] sm:$0xff]
  %v2861 = vld [vmem:[%s4 + $0xe0] sm:$0xff]
  %v2862 = vld [vmem:[%s4 + $0xe8] sm:$0xff]
  %v2863 = vld [vmem:[%s4 + $0xf0] sm:$0xff]
  %v2864 = vld [vmem:[%s4 + $0xf8] sm:$0xff]
  %v2865 = vld [vmem:[%s4 + $0x100] sm:$0xff]
  %v2866 = vld [vmem:[%s4 + $0x108] sm:$0xff]
  %v2867 = vld [vmem:[%s4 + $0x110] sm:$0xff]
  %v2868 = vld [vmem:[%s4 + $0x118] sm:$0xff]
  %v2869 = vld [vmem:[%s4 + $0x120] sm:$0xff]
  %v2870 = vld [vmem:[%s4 + $0x128] sm:$0xff]
  %v2871 = vld [vmem:[%s4 + $0x130] sm:$0xff]
  %v2872 = vld [vmem:[%s4 + $0x138] sm:$0xff]
  %v2873 = vld [vmem:[%s4 + $0x140] sm:$0xff]
  %v2874 = vld [vmem:[%s4 + $0x148] sm:$0xff]
  %v2875 = vld [vmem:[%s4 + $0x150] sm:$0xff]
  %v2876 = vld [vmem:[%s4 + $0x158] sm:$0xff]
  %v2877 = vld [vmem:[%s4 + $0x160] sm:$0xff]
  %v2878 = vld [vmem:[%s4 + $0x168] sm:$0xff]
  %v2879 = vld [vmem:[%s4 + $0x170] sm:$0xff]
  %v2880 = vld [vmem:[%s4 + $0x178] sm:$0xff]
  %v2881 = vld [vmem:[%s4 + $0x180] sm:$0xff]
  %v2882 = vld [vmem:[%s4 + $0x188] sm:$0xff]
  %v2883 = vld [vmem:[%s4 + $0x190] sm:$0xff]
  %v2884 = vld [vmem:[%s4 + $0x198] sm:$0xff]
  %v2885 = vld [vmem:[%s4 + $0x1a0] sm:$0xff]
  %v2886 = vld [vmem:[%s4 + $0x1a8] sm:$0xff]
  %v2887 = vld [vmem:[%s4 + $0x1b0] sm:$0xff]
  %v2888 = vld [vmem:[%s4 + $0x1b8] sm:$0xff]
  %v2889 = vld [vmem:[%s4 + $0x1c0] sm:$0xff]
  %v2890 = vld [vmem:[%s4 + $0x1c8] sm:$0xff]
  %v2891 = vld [vmem:[%s4 + $0x1d0] sm:$0xff]
  %v2892 = vld [vmem:[%s4 + $0x1d8] sm:$0xff]
  %v2893 = vld [vmem:[%s4 + $0x1e0] sm:$0xff]
  %v2894 = vld [vmem:[%s4 + $0x1e8] sm:$0xff]
  %v2895 = vld [vmem:[%s4 + $0x1f0] sm:$0xff]
  %v2896 = vld [vmem:[%s4 + $0x1f8] sm:$0xff]
  %v2897 = vld [vmem:[%s4 + $0x200] sm:$0xff]
  %v2898 = vld [vmem:[%s4 + $0x208] sm:$0xff]
  %v2899 = vld [vmem:[%s4 + $0x210] sm:$0xff]
  %v2900 = vld [vmem:[%s4 + $0x218] sm:$0xff]
  %v2901 = vld [vmem:[%s4 + $0x220] sm:$0xff]
  %v2902 = vld [vmem:[%s4 + $0x228] sm:$0xff]
  %v2903 = vld [vmem:[%s4 + $0x230] sm:$0xff]
  %v2904 = vld [vmem:[%s4 + $0x238] sm:$0xff]
  %v2905 = vld [vmem:[%s4 + $0x240] sm:$0xff]
  %v2906 = vld [vmem:[%s4 + $0x248] sm:$0xff]
  %v2907 = vld [vmem:[%s4 + $0x250] sm:$0xff]
  %v2908 = vld [vmem:[%s4 + $0x258] sm:$0xff]
  %v2909 = vld [vmem:[%s4 + $0x260] sm:$0xff]
  %v2910 = vld [vmem:[%s4 + $0x268] sm:$0xff]
  %v2911 = vld [vmem:[%s4 + $0x270] sm:$0xff]
  %v2912 = vld [vmem:[%s4 + $0x278] sm:$0xff]
  %v2913 = vld [vmem:[%s4 + $0x280] sm:$0xff]
  %v2914 = vld [vmem:[%s4 + $0x288] sm:$0xff]
  %v2915 = vld [vmem:[%s4 + $0x290] sm:$0xff]
  %v2916 = vld [vmem:[%s4 + $0x298] sm:$0xff]
  %v2917 = vld [vmem:[%s4 + $0x2a0] sm:$0xff]
  %v2918 = vld [vmem:[%s4 + $0x2a8] sm:$0xff]
  %v2919 = vld [vmem:[%s4 + $0x2b0] sm:$0xff]
  %v2920 = vld [vmem:[%s4 + $0x2b8] sm:$0xff]
  %v2921 = vld [vmem:[%s4 + $0x2c0] sm:$0xff]
  %v2922 = vld [vmem:[%s4 + $0x2c8] sm:$0xff]
  %v2923 = vld [vmem:[%s4 + $0x2d0] sm:$0xff]
  %v2924 = vld [vmem:[%s4 + $0x2d8] sm:$0xff]
  %v2925 = vld [vmem:[%s4 + $0x2e0] sm:$0xff]
  %v2926 = vld [vmem:[%s4 + $0x2e8] sm:$0xff]
  %v2927 = vld [vmem:[%s4 + $0x2f0] sm:$0xff]
  %v2928 = vld [vmem:[%s4 + $0x2f8] sm:$0xff]
  %v2929 = vld [vmem:[%s4 + $0x300] sm:$0xff]
  %v2930 = vld [vmem:[%s4 + $0x308] sm:$0xff]
  %v2931 = vld [vmem:[%s4 + $0x310] sm:$0xff]
  %v2932 = vld [vmem:[%s4 + $0x318] sm:$0xff]
  %v2933 = vld [vmem:[%s4 + $0x320] sm:$0xff]
  %v2934 = vld [vmem:[%s4 + $0x328] sm:$0xff]
  %v2935 = vld [vmem:[%s4 + $0x330] sm:$0xff]
  %v2936 = vld [vmem:[%s4 + $0x338] sm:$0xff]
  %v2937 = vld [vmem:[%s4 + $0x340] sm:$0xff]
  %v2938 = vld [vmem:[%s4 + $0x348] sm:$0xff]
  %v2939 = vld [vmem:[%s4 + $0x350] sm:$0xff]
  %v2940 = vld [vmem:[%s4 + $0x358] sm:$0xff]
  %v2941 = vld [vmem:[%s4 + $0x360] sm:$0xff]
  %v2942 = vld [vmem:[%s4 + $0x368] sm:$0xff]
  %v2943 = vld [vmem:[%s4 + $0x370] sm:$0xff]
  %v2944 = vld [vmem:[%s4 + $0x378] sm:$0xff]
  %v2945 = vld [vmem:[%s4 + $0x380] sm:$0xff]
  %v2946 = vld [vmem:[%s4 + $0x388] sm:$0xff]
  %v2947 = vld [vmem:[%s4 + $0x390] sm:$0xff]
  %v2948 = vld [vmem:[%s4 + $0x398] sm:$0xff]
  %v2949 = vld [vmem:[%s4 + $0x3a0] sm:$0xff]
  %v2950 = vld [vmem:[%s4 + $0x3a8] sm:$0xff]
  %v2951 = vld [vmem:[%s4 + $0x3b0] sm:$0xff]
  %v2952 = vld [vmem:[%s4 + $0x3b8] sm:$0xff]
  %v2953 = vld [vmem:[%s4 + $0x3c0] sm:$0xff]
  %v2954 = vld [vmem:[%s4 + $0x3c8] sm:$0xff]
  %v2955 = vld [vmem:[%s4 + $0x3d0] sm:$0xff]
  %v2956 = vld [vmem:[%s4 + $0x3d8] sm:$0xff]
  %v2957 = vld [vmem:[%s4 + $0x3e0] sm:$0xff]
  %v2958 = vld [vmem:[%s4 + $0x3e8] sm:$0xff]
  %v2959 = vld [vmem:[%s4 + $0x3f0] sm:$0xff]
  %v2960 = vld [vmem:[%s4 + $0x3f8] sm:$0xff]
  %v2961 = vld [vmem:[%s4 + $0x400] sm:$0xff]
  %v2962 = vld [vmem:[%s4 + $0x408] sm:$0xff]
  %v2963 = vld [vmem:[%s4 + $0x410] sm:$0xff]
  %v2964 = vld [vmem:[%s4 + $0x418] sm:$0xff]
  %v2965 = vld [vmem:[%s4 + $0x420] sm:$0xff]
  %v2966 = vld [vmem:[%s4 + $0x428] sm:$0xff]
  %v2967 = vld [vmem:[%s4 + $0x430] sm:$0xff]
  %v2968 = vld [vmem:[%s4 + $0x438] sm:$0xff]
  %v2969 = vld [vmem:[%s4 + $0x440] sm:$0xff]
  %v2970 = vld [vmem:[%s4 + $0x448] sm:$0xff]
  %v2971 = vld [vmem:[%s4 + $0x450] sm:$0xff]
  %v2972 = vld [vmem:[%s4 + $0x458] sm:$0xff]
  %v2973 = vld [vmem:[%s4 + $0x460] sm:$0xff]
  %v2974 = vld [vmem:[%s4 + $0x468] sm:$0xff]
  %v2975 = vld [vmem:[%s4 + $0x470] sm:$0xff]
  %v2976 = vld [vmem:[%s4 + $0x478] sm:$0xff]
  %v2977 = vld [vmem:[#allocation2] sm:$0xff]
  %v2978 = vld [vmem:[#allocation2 + $0x8] sm:$0xff]
  %v2979 = vld [vmem:[#allocation2 + $0x10] sm:$0xff]
  %v2980 = vld [vmem:[#allocation2 + $0x18] sm:$0xff]
  %v2981 = vld [vmem:[#allocation2 + $0x20] sm:$0xff]
  %v2982 = vld [vmem:[#allocation2 + $0x28] sm:$0xff]
  %v2983 = vld [vmem:[#allocation2 + $0x30] sm:$0xff]
  %v2984 = vld [vmem:[#allocation2 + $0x38] sm:$0xff]
  %v2985 = vld [vmem:[#allocation2 + $0x40] sm:$0xff]
  %v2986 = vld [vmem:[#allocation2 + $0x48] sm:$0xff]
  %v2987 = vld [vmem:[#allocation2 + $0x50] sm:$0xff]
  %v2988 = vld [vmem:[#allocation2 + $0x58] sm:$0xff]
  %v2989 = vld [vmem:[#allocation2 + $0x60] sm:$0xff]
  %v2990 = vld [vmem:[#allocation2 + $0x68] sm:$0xff]
  %v2991 = vld [vmem:[#allocation2 + $0x70] sm:$0xff]
  %v2992 = vld [vmem:[#allocation2 + $0x78] sm:$0xff]
  %v2993 = vld [vmem:[#allocation2 + $0x80] sm:$0xff]
  %v2994 = vld [vmem:[#allocation2 + $0x88] sm:$0xff]
  %v2995 = vld [vmem:[#allocation2 + $0x90] sm:$0xff]
  %v2996 = vld [vmem:[#allocation2 + $0x98] sm:$0xff]
  %v2997 = vld [vmem:[#allocation2 + $0xa0] sm:$0xff]
  %v2998 = vld [vmem:[#allocation2 + $0xa8] sm:$0xff]
  %v2999 = vld [vmem:[#allocation2 + $0xb0] sm:$0xff]
  %v3000 = vld [vmem:[#allocation2 + $0xb8] sm:$0xff]
  %v3001 = vld [vmem:[#allocation2 + $0xc0] sm:$0xff]
  %v3002 = vld [vmem:[#allocation2 + $0xc8] sm:$0xff]
  %v3003 = vld [vmem:[#allocation2 + $0xd0] sm:$0xff]
  %v3004 = vld [vmem:[#allocation2 + $0xd8] sm:$0xff]
  %v3005 = vld [vmem:[#allocation2 + $0xe0] sm:$0xff]
  %v3006 = vld [vmem:[#allocation2 + $0xe8] sm:$0xff]
  %v3007 = vld [vmem:[#allocation2 + $0xf0] sm:$0xff]
  %v3008 = vld [vmem:[#allocation2 + $0xf8] sm:$0xff]
  %v3009 = vld [vmem:[#allocation2 + $0x100] sm:$0xff]
  %v3010 = vld [vmem:[#allocation2 + $0x108] sm:$0xff]
  %v3011 = vld [vmem:[#allocation2 + $0x110] sm:$0xff]
  %v3012 = vld [vmem:[#allocation2 + $0x118] sm:$0xff]
  %v3013 = vld [vmem:[#allocation2 + $0x120] sm:$0xff]
  %v3014 = vld [vmem:[#allocation2 + $0x128] sm:$0xff]
  %v3015 = vld [vmem:[#allocation2 + $0x130] sm:$0xff]
  %v3016 = vld [vmem:[#allocation2 + $0x138] sm:$0xff]
  %v3017 = vld [vmem:[#allocation2 + $0x140] sm:$0xff]
  %v3018 = vld [vmem:[#allocation2 + $0x148] sm:$0xff]
  %v3019 = vld [vmem:[#allocation2 + $0x150] sm:$0xff]
  %v3020 = vld [vmem:[#allocation2 + $0x158] sm:$0xff]
  %v3021 = vld [vmem:[#allocation2 + $0x160] sm:$0xff]
  %v3022 = vld [vmem:[#allocation2 + $0x168] sm:$0xff]
  %v3023 = vld [vmem:[#allocation2 + $0x170] sm:$0xff]
  %v3024 = vld [vmem:[#allocation2 + $0x178] sm:$0xff]
  %v3025 = vld [vmem:[#allocation2 + $0x180] sm:$0xff]
  %v3026 = vld [vmem:[#allocation2 + $0x188] sm:$0xff]
  %v3027 = vld [vmem:[#allocation2 + $0x190] sm:$0xff]
  %v3028 = vld [vmem:[#allocation2 + $0x198] sm:$0xff]
  %v3029 = vld [vmem:[#allocation2 + $0x1a0] sm:$0xff]
  %v3030 = vld [vmem:[#allocation2 + $0x1a8] sm:$0xff]
  %v3031 = vld [vmem:[#allocation2 + $0x1b0] sm:$0xff]
  %v3032 = vld [vmem:[#allocation2 + $0x1b8] sm:$0xff]
  %v3033 = vld [vmem:[#allocation2 + $0x1c0] sm:$0xff]
  %v3034 = vld [vmem:[#allocation2 + $0x1c8] sm:$0xff]
  %v3035 = vld [vmem:[#allocation2 + $0x1d0] sm:$0xff]
  %v3036 = vld [vmem:[#allocation2 + $0x1d8] sm:$0xff]
  %v3037 = vld [vmem:[#allocation2 + $0x1e0] sm:$0xff]
  %v3038 = vld [vmem:[#allocation2 + $0x1e8] sm:$0xff]
  %v3039 = vld [vmem:[#allocation2 + $0x1f0] sm:$0xff]
  %v3040 = vld [vmem:[#allocation2 + $0x1f8] sm:$0xff]
  %v3041 = vld [vmem:[#allocation2 + $0x200] sm:$0xff]
  %v3042 = vld [vmem:[#allocation2 + $0x208] sm:$0xff]
  %v3043 = vld [vmem:[#allocation2 + $0x210] sm:$0xff]
  %v3044 = vld [vmem:[#allocation2 + $0x218] sm:$0xff]
  %v3045 = vld [vmem:[#allocation2 + $0x220] sm:$0xff]
  %v3046 = vld [vmem:[#allocation2 + $0x228] sm:$0xff]
  %v3047 = vld [vmem:[#allocation2 + $0x230] sm:$0xff]
  %v3048 = vld [vmem:[#allocation2 + $0x238] sm:$0xff]
  %v3049 = vld [vmem:[#allocation2 + $0x240] sm:$0xff]
  %v3050 = vld [vmem:[#allocation2 + $0x248] sm:$0xff]
  %v3051 = vld [vmem:[#allocation2 + $0x250] sm:$0xff]
  %v3052 = vld [vmem:[#allocation2 + $0x258] sm:$0xff]
  %v3053 = vld [vmem:[#allocation2 + $0x260] sm:$0xff]
  %v3054 = vld [vmem:[#allocation2 + $0x268] sm:$0xff]
  %v3055 = vld [vmem:[#allocation2 + $0x270] sm:$0xff]
  %v3056 = vld [vmem:[#allocation2 + $0x278] sm:$0xff]
  %v3057 = vld [vmem:[#allocation2 + $0x280] sm:$0xff]
  %v3058 = vld [vmem:[#allocation2 + $0x288] sm:$0xff]
  %v3059 = vld [vmem:[#allocation2 + $0x290] sm:$0xff]
  %v3060 = vld [vmem:[#allocation2 + $0x298] sm:$0xff]
  %v3061 = vld [vmem:[#allocation2 + $0x2a0] sm:$0xff]
  %v3062 = vld [vmem:[#allocation2 + $0x2a8] sm:$0xff]
  %v3063 = vld [vmem:[#allocation2 + $0x2b0] sm:$0xff]
  %v3064 = vld [vmem:[#allocation2 + $0x2b8] sm:$0xff]
  %v3065 = vld [vmem:[#allocation2 + $0x2c0] sm:$0xff]
  %v3066 = vld [vmem:[#allocation2 + $0x2c8] sm:$0xff]
  %v3067 = vld [vmem:[#allocation2 + $0x2d0] sm:$0xff]
  %v3068 = vld [vmem:[#allocation2 + $0x2d8] sm:$0xff]
  %v3069 = vld [vmem:[#allocation2 + $0x2e0] sm:$0xff]
  %v3070 = vld [vmem:[#allocation2 + $0x2e8] sm:$0xff]
  %v3071 = vld [vmem:[#allocation2 + $0x2f0] sm:$0xff]
  %v3072 = vld [vmem:[#allocation2 + $0x2f8] sm:$0xff]
  %v3073 = vld [vmem:[#allocation2 + $0x300] sm:$0xff]
  %v3074 = vld [vmem:[#allocation2 + $0x308] sm:$0xff]
  %v3075 = vld [vmem:[#allocation2 + $0x310] sm:$0xff]
  %v3076 = vld [vmem:[#allocation2 + $0x318] sm:$0xff]
  %v3077 = vld [vmem:[#allocation2 + $0x320] sm:$0xff]
  %v3078 = vld [vmem:[#allocation2 + $0x328] sm:$0xff]
  %v3079 = vld [vmem:[#allocation2 + $0x330] sm:$0xff]
  %v3080 = vld [vmem:[#allocation2 + $0x338] sm:$0xff]
  %v3081 = vld [vmem:[#allocation2 + $0x340] sm:$0xff]
  %v3082 = vld [vmem:[#allocation2 + $0x348] sm:$0xff]
  %v3083 = vld [vmem:[#allocation2 + $0x350] sm:$0xff]
  %v3084 = vld [vmem:[#allocation2 + $0x358] sm:$0xff]
  %v3085 = vld [vmem:[#allocation2 + $0x360] sm:$0xff]
  %v3086 = vld [vmem:[#allocation2 + $0x368] sm:$0xff]
  %v3087 = vld [vmem:[#allocation2 + $0x370] sm:$0xff]
  %v3088 = vld [vmem:[#allocation2 + $0x378] sm:$0xff]
  %v3089 = vld [vmem:[#allocation2 + $0x380] sm:$0xff]
  %v3090 = vld [vmem:[#allocation2 + $0x388] sm:$0xff]
  %v3091 = vld [vmem:[#allocation2 + $0x390] sm:$0xff]
  %v3092 = vld [vmem:[#allocation2 + $0x398] sm:$0xff]
  %v3093 = vld [vmem:[#allocation2 + $0x3a0] sm:$0xff]
  %v3094 = vld [vmem:[#allocation2 + $0x3a8] sm:$0xff]
  %v3095 = vld [vmem:[#allocation2 + $0x3b0] sm:$0xff]
  %v3096 = vld [vmem:[#allocation2 + $0x3b8] sm:$0xff]
  %v3097 = vld [vmem:[#allocation2 + $0x3c0] sm:$0xff]
  %v3098 = vld [vmem:[#allocation2 + $0x3c8] sm:$0xff]
  %v3099 = vld [vmem:[#allocation2 + $0x3d0] sm:$0xff]
  %v3100 = vld [vmem:[#allocation2 + $0x3d8] sm:$0xff]
  %v3101 = vld [vmem:[#allocation2 + $0x3e0] sm:$0xff]
  %v3102 = vld [vmem:[#allocation2 + $0x3e8] sm:$0xff]
  %v3103 = vld [vmem:[#allocation2 + $0x3f0] sm:$0xff]
  %v3104 = vld [vmem:[#allocation2 + $0x3f8] sm:$0xff]
  %v3105 = vld [vmem:[#allocation2 + $0x400] sm:$0xff]
  %v3106 = vld [vmem:[#allocation2 + $0x408] sm:$0xff]
  %v3107 = vld [vmem:[#allocation2 + $0x410] sm:$0xff]
  %v3108 = vld [vmem:[#allocation2 + $0x418] sm:$0xff]
  %v3109 = vld [vmem:[#allocation2 + $0x420] sm:$0xff]
  %v3110 = vld [vmem:[#allocation2 + $0x428] sm:$0xff]
  %v3111 = vld [vmem:[#allocation2 + $0x430] sm:$0xff]
  %v3112 = vld [vmem:[#allocation2 + $0x438] sm:$0xff]
  %v3113 = vld [vmem:[#allocation2 + $0x440] sm:$0xff]
  %v3114 = vld [vmem:[#allocation2 + $0x448] sm:$0xff]
  %v3115 = vld [vmem:[#allocation2 + $0x450] sm:$0xff]
  %v3116 = vld [vmem:[#allocation2 + $0x458] sm:$0xff]
  %v3117 = vld [vmem:[#allocation2 + $0x460] sm:$0xff]
  %v3118 = vld [vmem:[#allocation2 + $0x468] sm:$0xff]
  %v3119 = vld [vmem:[#allocation2 + $0x470] sm:$0xff]
  %v3120 = vld [vmem:[#allocation2 + $0x478] sm:$0xff]
  %3121 = vmatprep.subr.mxu0 0.0
  %3122 = vmatpush1.msra.mxu0 %v2977
  %3123 = vmatprep.subr.mxu0 0.0
  %3124 = vmatpush1.msra.mxu0 %v2978
  %3125 = vmatprep.subr.mxu0 0.0
  %3126 = vmatpush1.msra.mxu0 %v2979
  %3127 = vmatprep.subr.mxu0 0.0
  %3128 = vmatpush1.msra.mxu0 %v2980
  %3129 = vmatprep.subr.mxu0 0.0
  %3130 = vmatpush1.msra.mxu0 %v2981
  %3131 = vmatprep.subr.mxu0 0.0
  %3132 = vmatpush1.msra.mxu0 %v2982
  %3133 = vmatprep.subr.mxu0 0.0
  %3134 = vmatpush1.msra.mxu0 %v2983
  %3135 = vmatprep.subr.mxu0 0.0
  %3136 = vmatpush1.msra.mxu0 %v2984
  %3137 = vmatprep.subr.mxu0 0.0
  %3138 = vmatpush1.msra.mxu0 %v2985
  %3139 = vmatprep.subr.mxu0 0.0
  %3140 = vmatpush1.msra.mxu0 %v2986
  %3141 = vmatprep.subr.mxu0 0.0
  %3142 = vmatpush1.msra.mxu0 %v2987
  %3143 = vmatprep.subr.mxu0 0.0
  %3144 = vmatpush1.msra.mxu0 %v2988
  %3145 = vmatprep.subr.mxu0 0.0
  %3146 = vmatpush1.msra.mxu0 %v2989
  %3147 = vmatprep.subr.mxu0 0.0
  %3148 = vmatpush1.msra.mxu0 %v2990
  %3149 = vmatprep.subr.mxu0 0.0
  %3150 = vmatpush1.msra.mxu0 %v2991
  %3151 = vmatprep.subr.mxu0 0.0
  %3152 = vmatpush1.msra.mxu0 %v2992
  %3153 = vmatprep.subr.mxu0 0.0
  %3154 = vmatpush1.msra.mxu0 %v2993
  %3155 = vmatprep.subr.mxu0 0.0
  %3156 = vmatpush1.msra.mxu0 %v2994
  %3157 = vmatprep.subr.mxu0 0.0
  %3158 = vmatpush1.msra.mxu0 %v2995
  %3159 = vmatprep.subr.mxu0 0.0
  %3160 = vmatpush1.msra.mxu0 %v2996
  %3161 = vmatprep.subr.mxu0 0.0
  %3162 = vmatpush1.msra.mxu0 %v2997
  %3163 = vmatprep.subr.mxu0 0.0
  %3164 = vmatpush1.msra.mxu0 %v2998
  %3165 = vmatprep.subr.mxu0 0.0
  %3166 = vmatpush1.msra.mxu0 %v2999
  %3167 = vmatprep.subr.mxu0 0.0
  %3168 = vmatpush1.msra.mxu0 %v3000
  %3169 = vmatprep.subr.mxu0 0.0
  %3170 = vmatpush1.msra.mxu0 %v3001
  %3171 = vmatprep.subr.mxu0 0.0
  %3172 = vmatpush1.msra.mxu0 %v3002
  %3173 = vmatprep.subr.mxu0 0.0
  %3174 = vmatpush1.msra.mxu0 %v3003
  %3175 = vmatprep.subr.mxu0 0.0
  %3176 = vmatpush1.msra.mxu0 %v3004
  %3177 = vmatprep.subr.mxu0 0.0
  %3178 = vmatpush1.msra.mxu0 %v3005
  %3179 = vmatprep.subr.mxu0 0.0
  %3180 = vmatpush1.msra.mxu0 %v3006
  %3181 = vmatprep.subr.mxu0 0.0
  %3182 = vmatpush1.msra.mxu0 %v3007
  %3183 = vmatprep.subr.mxu0 0.0
  %3184 = vmatpush1.msra.mxu0 %v3008
  %3185 = vmatprep.mubr.f32.mxu0 %v2834
  %3186 = vmatmul.mubr.f32.gmra.mrb[0].mxu0 %v2833
  %v3187 = vpop.f32.mrb[0].mxu0
  %v3188 = vadd.f32 0.0, %v3187
  %v3189 = vpop.f32.mrb[0].mxu0
  %3190 = vmatprep.mubr.f32.mxu0 %v2843
  %3191 = vmatmul.mubr.f32.gmra.mrb[0].mxu0 %v2842
  %v3192 = vpop.f32.mrb[0].mxu0
  %v3193 = vadd.f32 0.0, %v3192
  %v3194 = vpop.f32.mrb[0].mxu0
  %3195 = vmatprep.mubr.f32.mxu0 %v2852
  %3196 = vmatmul.mubr.f32.gmra.mrb[0].mxu0 %v2851
  %v3197 = vpop.f32.mrb[0].mxu0
  %v3198 = vadd.f32 0.0, %v3197
  %v3199 = vpop.f32.mrb[0].mxu0
  %3200 = vmatprep.mubr.f32.mxu0 %v2861
  %3201 = vmatmul.mubr.f32.gmra.mrb[0].mxu0 %v2860
  %v3202 = vpop.f32.mrb[0].mxu0
  %v3203 = vadd.f32 0.0, %v3202
  %v3204 = vpop.f32.mrb[0].mxu0
  %3205 = vmatprep.mubr.f32.mxu0 %v2870
  %3206 = vmatmul.mubr.f32.gmra.mrb[0].mxu0 %v2869
  %v3207 = vpop.f32.mrb[0].mxu0
  %v3208 = vadd.f32 0.0, %v3207
  %v3209 = vpop.f32.mrb[0].mxu0
  %3210 = vmatprep.mubr.f32.mxu0 %v2879
  %3211 = vmatmul.mubr.f32.gmra.mrb[0].mxu0 %v2878
  %v3212 = vpop.f32.mrb[0].mxu0
  %v3213 = vadd.f32 0.0, %v3212
  %v3214 = vpop.f32.mrb[0].mxu0
  %3215 = vmatprep.mubr.f32.mxu0 %v2888
  %3216 = vmatmul.mubr.f32.gmra.mrb[0].mxu0 %v2887
  %v3217 = vpop.f32.mrb[0].mxu0
  %v3218 = vadd.f32 0.0, %v3217
  %v3219 = vpop.f32.mrb[0].mxu0
  %3220 = vmatprep.mubr.f32.mxu0 %v2897
  %3221 = vmatmul.mubr.f32.gmra.mrb[0].mxu0 %v2896
  %v3222 = vpop.f32.mrb[0].mxu0
  %v3223 = vadd.f32 0.0, %v3222
  %v3224 = vpop.f32.mrb[0].mxu0
  %3225 = vmatprep.mubr.f32.mxu0 %v2906
  %3226 = vmatmul.mubr.f32.gmra.mrb[0].mxu0 %v2905
  %v3227 = vpop.f32.mrb[0].mxu0
  %v3228 = vadd.f32 0.0, %v3227
  %v3229 = vpop.f32.mrb[0].mxu0
  %3230 = vmatprep.mubr.f32.mxu0 %v2915
  %3231 = vmatmul.mubr.f32.gmra.mrb[0].mxu0 %v2914
  %v3232 = vpop.f32.mrb[0].mxu0
  %v3233 = vadd.f32 0.0, %v3232
  %v3234 = vpop.f32.mrb[0].mxu0
  %3235 = vmatprep.mubr.f32.mxu0 %v2924
  %3236 = vmatmul.mubr.f32.gmra.mrb[0].mxu0 %v2923
  %v3237 = vpop.f32.mrb[0].mxu0
  %v3238 = vadd.f32 0.0, %v3237
  %v3239 = vpop.f32.mrb[0].mxu0
  %3240 = vmatprep.mubr.f32.mxu0 %v2933
  %3241 = vmatmul.mubr.f32.gmra.mrb[0].mxu0 %v2932
  %v3242 = vpop.f32.mrb[0].mxu0
  %v3243 = vadd.f32 0.0, %v3242
  %v3244 = vpop.f32.mrb[0].mxu0
  %3245 = vmatprep.mubr.f32.mxu0 %v2942
  %3246 = vmatmul.mubr.f32.gmra.mrb[0].mxu0 %v2941
  %v3247 = vpop.f32.mrb[0].mxu0
  %v3248 = vadd.f32 0.0, %v3247
  %v3249 = vpop.f32.mrb[0].mxu0
  %3250 = vmatprep.mubr.f32.mxu0 %v2951
  %3251 = vmatmul.mubr.f32.gmra.mrb[0].mxu0 %v2950
  %v3252 = vpop.f32.mrb[0].mxu0
  %v3253 = vadd.f32 0.0, %v3252
  %v3254 = vpop.f32.mrb[0].mxu0
  %3255 = vmatprep.mubr.f32.mxu0 %v2960
  %3256 = vmatmul.mubr.f32.gmra.mrb[0].mxu0 %v2959
  %v3257 = vpop.f32.mrb[0].mxu0
  %v3258 = vadd.f32 0.0, %v3257
  %v3259 = vpop.f32.mrb[0].mxu0
  %3260 = vmatprep.mubr.f32.mxu0 %v2969
  %3261 = vmatmul.mubr.f32.gmra.mrb[0].mxu0 %v2968
  %v3262 = vpop.f32.mrb[0].mxu0
  %v3263 = vadd.f32 0.0, %v3262
  %v3264 = vpop.f32.mrb[0].mxu0
  %3265 = vdwg.mxu0
  %3266 = vmatprep.subr.mxu0 0.0
  %3267 = vmatpush1.msra.mxu0 %v3009
  %3268 = vmatprep.subr.mxu0 0.0
  %3269 = vmatpush1.msra.mxu0 %v3010
  %3270 = vmatprep.subr.mxu0 0.0
  %3271 = vmatpush1.msra.mxu0 %v3011
  %3272 = vmatprep.subr.mxu0 0.0
  %3273 = vmatpush1.msra.mxu0 %v3012
  %3274 = vmatprep.subr.mxu0 0.0
  %3275 = vmatpush1.msra.mxu0 %v3013
  %3276 = vmatprep.subr.mxu0 0.0
  %3277 = vmatpush1.msra.mxu0 %v3014
  %3278 = vmatprep.subr.mxu0 0.0
  %3279 = vmatpush1.msra.mxu0 %v3015
  %3280 = vmatprep.subr.mxu0 0.0
  %3281 = vmatpush1.msra.mxu0 %v3016
  %3282 = vmatprep.subr.mxu0 0.0
  %3283 = vmatpush1.msra.mxu0 %v3017
  %3284 = vmatprep.subr.mxu0 0.0
  %3285 = vmatpush1.msra.mxu0 %v3018
  %3286 = vmatprep.subr.mxu0 0.0
  %3287 = vmatpush1.msra.mxu0 %v3019
  %3288 = vmatprep.subr.mxu0 0.0
  %3289 = vmatpush1.msra.mxu0 %v3020
  %3290 = vmatprep.subr.mxu0 0.0
  %3291 = vmatpush1.msra.mxu0 %v3021
  %3292 = vmatprep.subr.mxu0 0.0
  %3293 = vmatpush1.msra.mxu0 %v3022
  %3294 = vmatprep.subr.mxu0 0.0
  %3295 = vmatpush1.msra.mxu0 %v3023
  %3296 = vmatprep.subr.mxu0 0.0
  %3297 = vmatpush1.msra.mxu0 %v3024
  %3298 = vmatprep.subr.mxu0 0.0
  %3299 = vmatpush1.msra.mxu0 %v3025
  %3300 = vmatprep.subr.mxu0 0.0
  %3301 = vmatpush1.msra.mxu0 %v3026
  %3302 = vmatprep.subr.mxu0 0.0
  %3303 = vmatpush1.msra.mxu0 %v3027
  %3304 = vmatprep.subr.mxu0 0.0
  %3305 = vmatpush1.msra.mxu0 %v3028
  %3306 = vmatprep.subr.mxu0 0.0
  %3307 = vmatpush1.msra.mxu0 %v3029
  %3308 = vmatprep.subr.mxu0 0.0
  %3309 = vmatpush1.msra.mxu0 %v3030
  %3310 = vmatprep.subr.mxu0 0.0
  %3311 = vmatpush1.msra.mxu0 %v3031
  %3312 = vmatprep.subr.mxu0 0.0
  %3313 = vmatpush1.msra.mxu0 %v3032
  %3314 = vmatprep.subr.mxu0 0.0
  %3315 = vmatpush1.msra.mxu0 %v3033
  %3316 = vmatprep.subr.mxu0 0.0
  %3317 = vmatpush1.msra.mxu0 %v3034
  %3318 = vmatprep.subr.mxu0 0.0
  %3319 = vmatpush1.msra.mxu0 %v3035
  %3320 = vmatprep.subr.mxu0 0.0
  %3321 = vmatpush1.msra.mxu0 %v3036
  %3322 = vmatprep.subr.mxu0 0.0
  %3323 = vmatpush1.msra.mxu0 %v3037
  %3324 = vmatprep.subr.mxu0 0.0
  %3325 = vmatpush1.msra.mxu0 %v3038
  %3326 = vmatprep.subr.mxu0 0.0
  %3327 = vmatpush1.msra.mxu0 %v3039
  %3328 = vmatprep.subr.mxu0 0.0
  %3329 = vmatpush1.msra.mxu0 %v3040
  %3330 = vmatprep.mubr.f32.mxu0 %v2836
  %3331 = vmatmul.mubr.f32.gmra.mrb[0].mxu0 %v2835
  %v3332 = vpop.f32.mrb[0].mxu0
  %v3333 = vadd.f32 %v3188, %v3332
  %v3334 = vpop.f32.mrb[0].mxu0
  %3335 = vmatprep.mubr.f32.mxu0 %v2845
  %3336 = vmatmul.mubr.f32.gmra.mrb[0].mxu0 %v2844
  %v3337 = vpop.f32.mrb[0].mxu0
  %v3338 = vadd.f32 %v3193, %v3337
  %v3339 = vpop.f32.mrb[0].mxu0
  %3340 = vmatprep.mubr.f32.mxu0 %v2854
  %3341 = vmatmul.mubr.f32.gmra.mrb[0].mxu0 %v2853
  %v3342 = vpop.f32.mrb[0].mxu0
  %v3343 = vadd.f32 %v3198, %v3342
  %v3344 = vpop.f32.mrb[0].mxu0
  %3345 = vmatprep.mubr.f32.mxu0 %v2863
  %3346 = vmatmul.mubr.f32.gmra.mrb[0].mxu0 %v2862
  %v3347 = vpop.f32.mrb[0].mxu0
  %v3348 = vadd.f32 %v3203, %v3347
  %v3349 = vpop.f32.mrb[0].mxu0
  %3350 = vmatprep.mubr.f32.mxu0 %v2872
  %3351 = vmatmul.mubr.f32.gmra.mrb[0].mxu0 %v2871
  %v3352 = vpop.f32.mrb[0].mxu0
  %v3353 = vadd.f32 %v3208, %v3352
  %v3354 = vpop.f32.mrb[0].mxu0
  %3355 = vmatprep.mubr.f32.mxu0 %v2881
  %3356 = vmatmul.mubr.f32.gmra.mrb[0].mxu0 %v2880
  %v3357 = vpop.f32.mrb[0].mxu0
  %v3358 = vadd.f32 %v3213, %v3357
  %v3359 = vpop.f32.mrb[0].mxu0
  %3360 = vmatprep.mubr.f32.mxu0 %v2890
  %3361 = vmatmul.mubr.f32.gmra.mrb[0].mxu0 %v2889
  %v3362 = vpop.f32.mrb[0].mxu0
  %v3363 = vadd.f32 %v3218, %v3362
  %v3364 = vpop.f32.mrb[0].mxu0
  %3365 = vmatprep.mubr.f32.mxu0 %v2899
  %3366 = vmatmul.mubr.f32.gmra.mrb[0].mxu0 %v2898
  %v3367 = vpop.f32.mrb[0].mxu0
  %v3368 = vadd.f32 %v3223, %v3367
  %v3369 = vpop.f32.mrb[0].mxu0
  %3370 = vmatprep.mubr.f32.mxu0 %v2908
  %3371 = vmatmul.mubr.f32.gmra.mrb[0].mxu0 %v2907
  %v3372 = vpop.f32.mrb[0].mxu0
  %v3373 = vadd.f32 %v3228, %v3372
  %v3374 = vpop.f32.mrb[0].mxu0
  %3375 = vmatprep.mubr.f32.mxu0 %v2917
  %3376 = vmatmul.mubr.f32.gmra.mrb[0].mxu0 %v2916
  %v3377 = vpop.f32.mrb[0].mxu0
  %v3378 = vadd.f32 %v3233, %v3377
  %v3379 = vpop.f32.mrb[0].mxu0
  %3380 = vmatprep.mubr.f32.mxu0 %v2926
  %3381 = vmatmul.mubr.f32.gmra.mrb[0].mxu0 %v2925
  %v3382 = vpop.f32.mrb[0].mxu0
  %v3383 = vadd.f32 %v3238, %v3382
  %v3384 = vpop.f32.mrb[0].mxu0
  %3385 = vmatprep.mubr.f32.mxu0 %v2935
  %3386 = vmatmul.mubr.f32.gmra.mrb[0].mxu0 %v2934
  %v3387 = vpop.f32.mrb[0].mxu0
  %v3388 = vadd.f32 %v3243, %v3387
  %v3389 = vpop.f32.mrb[0].mxu0
  %3390 = vmatprep.mubr.f32.mxu0 %v2944
  %3391 = vmatmul.mubr.f32.gmra.mrb[0].mxu0 %v2943
  %v3392 = vpop.f32.mrb[0].mxu0
  %v3393 = vadd.f32 %v3248, %v3392
  %v3394 = vpop.f32.mrb[0].mxu0
  %3395 = vmatprep.mubr.f32.mxu0 %v2953
  %3396 = vmatmul.mubr.f32.gmra.mrb[0].mxu0 %v2952
  %v3397 = vpop.f32.mrb[0].mxu0
  %v3398 = vadd.f32 %v3253, %v3397
  %v3399 = vpop.f32.mrb[0].mxu0
  %3400 = vmatprep.mubr.f32.mxu0 %v2962
  %3401 = vmatmul.mubr.f32.gmra.mrb[0].mxu0 %v2961
  %v3402 = vpop.f32.mrb[0].mxu0
  %v3403 = vadd.f32 %v3258, %v3402
  %v3404 = vpop.f32.mrb[0].mxu0
  %3405 = vmatprep.mubr.f32.mxu0 %v2971
  %3406 = vmatmul.mubr.f32.gmra.mrb[0].mxu0 %v2970
  %v3407 = vpop.f32.mrb[0].mxu0
  %v3408 = vadd.f32 %v3263, %v3407
  %v3409 = vpop.f32.mrb[0].mxu0
  %3410 = vdwg.mxu0
  %3411 = vmatprep.subr.mxu0 0.0
  %3412 = vmatpush1.msra.mxu0 %v3041
  %3413 = vmatprep.subr.mxu0 0.0
  %3414 = vmatpush1.msra.mxu0 %v3042
  %3415 = vmatprep.subr.mxu0 0.0
  %3416 = vmatpush1.msra.mxu0 %v3043
  %3417 = vmatprep.subr.mxu0 0.0
  %3418 = vmatpush1.msra.mxu0 %v3044
  %3419 = vmatprep.subr.mxu0 0.0
  %3420 = vmatpush1.msra.mxu0 %v3045
  %3421 = vmatprep.subr.mxu0 0.0
  %3422 = vmatpush1.msra.mxu0 %v3046
  %3423 = vmatprep.subr.mxu0 0.0
  %3424 = vmatpush1.msra.mxu0 %v3047
  %3425 = vmatprep.subr.mxu0 0.0
  %3426 = vmatpush1.msra.mxu0 %v3048
  %3427 = vmatprep.subr.mxu0 0.0
  %3428 = vmatpush1.msra.mxu0 %v3049
  %3429 = vmatprep.subr.mxu0 0.0
  %3430 = vmatpush1.msra.mxu0 %v3050
  %3431 = vmatprep.subr.mxu0 0.0
  %3432 = vmatpush1.msra.mxu0 %v3051
  %3433 = vmatprep.subr.mxu0 0.0
  %3434 = vmatpush1.msra.mxu0 %v3052
  %3435 = vmatprep.subr.mxu0 0.0
  %3436 = vmatpush1.msra.mxu0 %v3053
  %3437 = vmatprep.subr.mxu0 0.0
  %3438 = vmatpush1.msra.mxu0 %v3054
  %3439 = vmatprep.subr.mxu0 0.0
  %3440 = vmatpush1.msra.mxu0 %v3055
  %3441 = vmatprep.subr.mxu0 0.0
  %3442 = vmatpush1.msra.mxu0 %v3056
  %3443 = vmatprep.subr.mxu0 0.0
  %3444 = vmatpush1.msra.mxu0 %v3057
  %3445 = vmatprep.subr.mxu0 0.0
  %3446 = vmatpush1.msra.mxu0 %v3058
  %3447 = vmatprep.subr.mxu0 0.0
  %3448 = vmatpush1.msra.mxu0 %v3059
  %3449 = vmatprep.subr.mxu0 0.0
  %3450 = vmatpush1.msra.mxu0 %v3060
  %3451 = vmatprep.subr.mxu0 0.0
  %3452 = vmatpush1.msra.mxu0 %v3061
  %3453 = vmatprep.subr.mxu0 0.0
  %3454 = vmatpush1.msra.mxu0 %v3062
  %3455 = vmatprep.subr.mxu0 0.0
  %3456 = vmatpush1.msra.mxu0 %v3063
  %3457 = vmatprep.subr.mxu0 0.0
  %3458 = vmatpush1.msra.mxu0 %v3064
  %3459 = vmatprep.subr.mxu0 0.0
  %3460 = vmatpush1.msra.mxu0 %v3065
  %3461 = vmatprep.subr.mxu0 0.0
  %3462 = vmatpush1.msra.mxu0 %v3066
  %3463 = vmatprep.subr.mxu0 0.0
  %3464 = vmatpush1.msra.mxu0 %v3067
  %3465 = vmatprep.subr.mxu0 0.0
  %3466 = vmatpush1.msra.mxu0 %v3068
  %3467 = vmatprep.subr.mxu0 0.0
  %3468 = vmatpush1.msra.mxu0 %v3069
  %3469 = vmatprep.subr.mxu0 0.0
  %3470 = vmatpush1.msra.mxu0 %v3070
  %3471 = vmatprep.subr.mxu0 0.0
  %3472 = vmatpush1.msra.mxu0 %v3071
  %3473 = vmatprep.subr.mxu0 0.0
  %3474 = vmatpush1.msra.mxu0 %v3072
  %3475 = vmatprep.mubr.f32.mxu0 %v2838
  %3476 = vmatmul.mubr.f32.gmra.mrb[0].mxu0 %v2837
  %v3477 = vpop.f32.mrb[0].mxu0
  %v3478 = vadd.f32 %v3333, %v3477
  %v3479 = vpop.f32.mrb[0].mxu0
  %3480 = vmatprep.mubr.f32.mxu0 %v2847
  %3481 = vmatmul.mubr.f32.gmra.mrb[0].mxu0 %v2846
  %v3482 = vpop.f32.mrb[0].mxu0
  %v3483 = vadd.f32 %v3338, %v3482
  %v3484 = vpop.f32.mrb[0].mxu0
  %3485 = vmatprep.mubr.f32.mxu0 %v2856
  %3486 = vmatmul.mubr.f32.gmra.mrb[0].mxu0 %v2855
  %v3487 = vpop.f32.mrb[0].mxu0
  %v3488 = vadd.f32 %v3343, %v3487
  %v3489 = vpop.f32.mrb[0].mxu0
  %3490 = vmatprep.mubr.f32.mxu0 %v2865
  %3491 = vmatmul.mubr.f32.gmra.mrb[0].mxu0 %v2864
  %v3492 = vpop.f32.mrb[0].mxu0
  %v3493 = vadd.f32 %v3348, %v3492
  %v3494 = vpop.f32.mrb[0].mxu0
  %3495 = vmatprep.mubr.f32.mxu0 %v2874
  %3496 = vmatmul.mubr.f32.gmra.mrb[0].mxu0 %v2873
  %v3497 = vpop.f32.mrb[0].mxu0
  %v3498 = vadd.f32 %v3353, %v3497
  %v3499 = vpop.f32.mrb[0].mxu0
  %3500 = vmatprep.mubr.f32.mxu0 %v2883
  %3501 = vmatmul.mubr.f32.gmra.mrb[0].mxu0 %v2882
  %v3502 = vpop.f32.mrb[0].mxu0
  %v3503 = vadd.f32 %v3358, %v3502
  %v3504 = vpop.f32.mrb[0].mxu0
  %3505 = vmatprep.mubr.f32.mxu0 %v2892
  %3506 = vmatmul.mubr.f32.gmra.mrb[0].mxu0 %v2891
  %v3507 = vpop.f32.mrb[0].mxu0
  %v3508 = vadd.f32 %v3363, %v3507
  %v3509 = vpop.f32.mrb[0].mxu0
  %3510 = vmatprep.mubr.f32.mxu0 %v2901
  %3511 = vmatmul.mubr.f32.gmra.mrb[0].mxu0 %v2900
  %v3512 = vpop.f32.mrb[0].mxu0
  %v3513 = vadd.f32 %v3368, %v3512
  %v3514 = vpop.f32.mrb[0].mxu0
  %3515 = vmatprep.mubr.f32.mxu0 %v2910
  %3516 = vmatmul.mubr.f32.gmra.mrb[0].mxu0 %v2909
  %v3517 = vpop.f32.mrb[0].mxu0
  %v3518 = vadd.f32 %v3373, %v3517
  %v3519 = vpop.f32.mrb[0].mxu0
  %3520 = vmatprep.mubr.f32.mxu0 %v2919
  %3521 = vmatmul.mubr.f32.gmra.mrb[0].mxu0 %v2918
  %v3522 = vpop.f32.mrb[0].mxu0
  %v3523 = vadd.f32 %v3378, %v3522
  %v3524 = vpop.f32.mrb[0].mxu0
  %3525 = vmatprep.mubr.f32.mxu0 %v2928
  %3526 = vmatmul.mubr.f32.gmra.mrb[0].mxu0 %v2927
  %v3527 = vpop.f32.mrb[0].mxu0
  %v3528 = vadd.f32 %v3383, %v3527
  %v3529 = vpop.f32.mrb[0].mxu0
  %3530 = vmatprep.mubr.f32.mxu0 %v2937
  %3531 = vmatmul.mubr.f32.gmra.mrb[0].mxu0 %v2936
  %v3532 = vpop.f32.mrb[0].mxu0
  %v3533 = vadd.f32 %v3388, %v3532
  %v3534 = vpop.f32.mrb[0].mxu0
  %3535 = vmatprep.mubr.f32.mxu0 %v2946
  %3536 = vmatmul.mubr.f32.gmra.mrb[0].mxu0 %v2945
  %v3537 = vpop.f32.mrb[0].mxu0
  %v3538 = vadd.f32 %v3393, %v3537
  %v3539 = vpop.f32.mrb[0].mxu0
  %3540 = vmatprep.mubr.f32.mxu0 %v2955
  %3541 = vmatmul.mubr.f32.gmra.mrb[0].mxu0 %v2954
  %v3542 = vpop.f32.mrb[0].mxu0
  %v3543 = vadd.f32 %v3398, %v3542
  %v3544 = vpop.f32.mrb[0].mxu0
  %3545 = vmatprep.mubr.f32.mxu0 %v2964
  %3546 = vmatmul.mubr.f32.gmra.mrb[0].mxu0 %v2963
  %v3547 = vpop.f32.mrb[0].mxu0
  %v3548 = vadd.f32 %v3403, %v3547
  %v3549 = vpop.f32.mrb[0].mxu0
  %3550 = vmatprep.mubr.f32.mxu0 %v2973
  %3551 = vmatmul.mubr.f32.gmra.mrb[0].mxu0 %v2972
  %v3552 = vpop.f32.mrb[0].mxu0
  %v3553 = vadd.f32 %v3408, %v3552
  %v3554 = vpop.f32.mrb[0].mxu0
  %3555 = vdwg.mxu0
  %3556 = vmatprep.subr.mxu0 0.0
  %3557 = vmatpush1.msra.mxu0 %v3073
  %3558 = vmatprep.subr.mxu0 0.0
  %3559 = vmatpush1.msra.mxu0 %v3074
  %3560 = vmatprep.subr.mxu0 0.0
  %3561 = vmatpush1.msra.mxu0 %v3075
  %3562 = vmatprep.subr.mxu0 0.0
  %3563 = vmatpush1.msra.mxu0 %v3076
  %3564 = vmatprep.subr.mxu0 0.0
  %3565 = vmatpush1.msra.mxu0 %v3077
  %3566 = vmatprep.subr.mxu0 0.0
  %3567 = vmatpush1.msra.mxu0 %v3078
  %3568 = vmatprep.subr.mxu0 0.0
  %3569 = vmatpush1.msra.mxu0 %v3079
  %3570 = vmatprep.subr.mxu0 0.0
  %3571 = vmatpush1.msra.mxu0 %v3080
  %3572 = vmatprep.subr.mxu0 0.0
  %3573 = vmatpush1.msra.mxu0 %v3081
  %3574 = vmatprep.subr.mxu0 0.0
  %3575 = vmatpush1.msra.mxu0 %v3082
  %3576 = vmatprep.subr.mxu0 0.0
  %3577 = vmatpush1.msra.mxu0 %v3083
  %3578 = vmatprep.subr.mxu0 0.0
  %3579 = vmatpush1.msra.mxu0 %v3084
  %3580 = vmatprep.subr.mxu0 0.0
  %3581 = vmatpush1.msra.mxu0 %v3085
  %3582 = vmatprep.subr.mxu0 0.0
  %3583 = vmatpush1.msra.mxu0 %v3086
  %3584 = vmatprep.subr.mxu0 0.0
  %3585 = vmatpush1.msra.mxu0 %v3087
  %3586 = vmatprep.subr.mxu0 0.0
  %3587 = vmatpush1.msra.mxu0 %v3088
  %3588 = vmatprep.subr.mxu0 0.0
  %3589 = vmatpush1.msra.mxu0 %v3089
  %3590 = vmatprep.subr.mxu0 0.0
  %3591 = vmatpush1.msra.mxu0 %v3090
  %3592 = vmatprep.subr.mxu0 0.0
  %3593 = vmatpush1.msra.mxu0 %v3091
  %3594 = vmatprep.subr.mxu0 0.0
  %3595 = vmatpush1.msra.mxu0 %v3092
  %3596 = vmatprep.subr.mxu0 0.0
  %3597 = vmatpush1.msra.mxu0 %v3093
  %3598 = vmatprep.subr.mxu0 0.0
  %3599 = vmatpush1.msra.mxu0 %v3094
  %3600 = vmatprep.subr.mxu0 0.0
  %3601 = vmatpush1.msra.mxu0 %v3095
  %3602 = vmatprep.subr.mxu0 0.0
  %3603 = vmatpush1.msra.mxu0 %v3096
  %3604 = vmatprep.subr.mxu0 0.0
  %3605 = vmatpush1.msra.mxu0 %v3097
  %3606 = vmatprep.subr.mxu0 0.0
  %3607 = vmatpush1.msra.mxu0 %v3098
  %3608 = vmatprep.subr.mxu0 0.0
  %3609 = vmatpush1.msra.mxu0 %v3099
  %3610 = vmatprep.subr.mxu0 0.0
  %3611 = vmatpush1.msra.mxu0 %v3100
  %3612 = vmatprep.subr.mxu0 0.0
  %3613 = vmatpush1.msra.mxu0 %v3101
  %3614 = vmatprep.subr.mxu0 0.0
  %3615 = vmatpush1.msra.mxu0 %v3102
  %3616 = vmatprep.subr.mxu0 0.0
  %3617 = vmatpush1.msra.mxu0 %v3103
  %3618 = vmatprep.subr.mxu0 0.0
  %3619 = vmatpush1.msra.mxu0 %v3104
  %3620 = vmatprep.mubr.f32.mxu0 %v2840
  %3621 = vmatmul.mubr.f32.gmra.mrb[0].mxu0 %v2839
  %v3622 = vpop.f32.mrb[0].mxu0
  %v3623 = vadd.f32 %v3478, %v3622
  %v3624 = vpop.f32.mrb[0].mxu0
  %3625 = vmatprep.mubr.f32.mxu0 %v2849
  %3626 = vmatmul.mubr.f32.gmra.mrb[0].mxu0 %v2848
  %v3627 = vpop.f32.mrb[0].mxu0
  %v3628 = vadd.f32 %v3483, %v3627
  %v3629 = vpop.f32.mrb[0].mxu0
  %3630 = vmatprep.mubr.f32.mxu0 %v2858
  %3631 = vmatmul.mubr.f32.gmra.mrb[0].mxu0 %v2857
  %v3632 = vpop.f32.mrb[0].mxu0
  %v3633 = vadd.f32 %v3488, %v3632
  %v3634 = vpop.f32.mrb[0].mxu0
  %3635 = vmatprep.mubr.f32.mxu0 %v2867
  %3636 = vmatmul.mubr.f32.gmra.mrb[0].mxu0 %v2866
  %v3637 = vpop.f32.mrb[0].mxu0
  %v3638 = vadd.f32 %v3493, %v3637
  %v3639 = vpop.f32.mrb[0].mxu0
  %3640 = vmatprep.mubr.f32.mxu0 %v2876
  %3641 = vmatmul.mubr.f32.gmra.mrb[0].mxu0 %v2875
  %v3642 = vpop.f32.mrb[0].mxu0
  %v3643 = vadd.f32 %v3498, %v3642
  %v3644 = vpop.f32.mrb[0].mxu0
  %3645 = vmatprep.mubr.f32.mxu0 %v2885
  %3646 = vmatmul.mubr.f32.gmra.mrb[0].mxu0 %v2884
  %v3647 = vpop.f32.mrb[0].mxu0
  %v3648 = vadd.f32 %v3503, %v3647
  %v3649 = vpop.f32.mrb[0].mxu0
  %3650 = vmatprep.mubr.f32.mxu0 %v2894
  %3651 = vmatmul.mubr.f32.gmra.mrb[0].mxu0 %v2893
  %v3652 = vpop.f32.mrb[0].mxu0
  %v3653 = vadd.f32 %v3508, %v3652
  %v3654 = vpop.f32.mrb[0].mxu0
  %3655 = vmatprep.mubr.f32.mxu0 %v2903
  %3656 = vmatmul.mubr.f32.gmra.mrb[0].mxu0 %v2902
  %v3657 = vpop.f32.mrb[0].mxu0
  %v3658 = vadd.f32 %v3513, %v3657
  %v3659 = vpop.f32.mrb[0].mxu0
  %3660 = vmatprep.mubr.f32.mxu0 %v2912
  %3661 = vmatmul.mubr.f32.gmra.mrb[0].mxu0 %v2911
  %v3662 = vpop.f32.mrb[0].mxu0
  %v3663 = vadd.f32 %v3518, %v3662
  %v3664 = vpop.f32.mrb[0].mxu0
  %3665 = vmatprep.mubr.f32.mxu0 %v2921
  %3666 = vmatmul.mubr.f32.gmra.mrb[0].mxu0 %v2920
  %v3667 = vpop.f32.mrb[0].mxu0
  %v3668 = vadd.f32 %v3523, %v3667
  %v3669 = vpop.f32.mrb[0].mxu0
  %3670 = vmatprep.mubr.f32.mxu0 %v2930
  %3671 = vmatmul.mubr.f32.gmra.mrb[0].mxu0 %v2929
  %v3672 = vpop.f32.mrb[0].mxu0
  %v3673 = vadd.f32 %v3528, %v3672
  %v3674 = vpop.f32.mrb[0].mxu0
  %3675 = vmatprep.mubr.f32.mxu0 %v2939
  %3676 = vmatmul.mubr.f32.gmra.mrb[0].mxu0 %v2938
  %v3677 = vpop.f32.mrb[0].mxu0
  %v3678 = vadd.f32 %v3533, %v3677
  %v3679 = vpop.f32.mrb[0].mxu0
  %3680 = vmatprep.mubr.f32.mxu0 %v2948
  %3681 = vmatmul.mubr.f32.gmra.mrb[0].mxu0 %v2947
  %v3682 = vpop.f32.mrb[0].mxu0
  %v3683 = vadd.f32 %v3538, %v3682
  %v3684 = vpop.f32.mrb[0].mxu0
  %3685 = vmatprep.mubr.f32.mxu0 %v2957
  %3686 = vmatmul.mubr.f32.gmra.mrb[0].mxu0 %v2956
  %v3687 = vpop.f32.mrb[0].mxu0
  %v3688 = vadd.f32 %v3543, %v3687
  %v3689 = vpop.f32.mrb[0].mxu0
  %3690 = vmatprep.mubr.f32.mxu0 %v2966
  %3691 = vmatmul.mubr.f32.gmra.mrb[0].mxu0 %v2965
  %v3692 = vpop.f32.mrb[0].mxu0
  %v3693 = vadd.f32 %v3548, %v3692
  %v3694 = vpop.f32.mrb[0].mxu0
  %3695 = vmatprep.mubr.f32.mxu0 %v2975
  %3696 = vmatmul.mubr.f32.gmra.mrb[0].mxu0 %v2974
  %v3697 = vpop.f32.mrb[0].mxu0
  %v3698 = vadd.f32 %v3553, %v3697
  %v3699 = vpop.f32.mrb[0].mxu0
  %3700 = vdwg.mxu0
  %3701 = vmatprep.subr.mxu0 0.0
  %3702 = vmatpush1.msra.mxu0 %v3105
  %3703 = vmatprep.subr.mxu0 0.0
  %3704 = vmatpush1.msra.mxu0 %v3106
  %3705 = vmatprep.subr.mxu0 0.0
  %3706 = vmatpush1.msra.mxu0 %v3107
  %3707 = vmatprep.subr.mxu0 0.0
  %3708 = vmatpush1.msra.mxu0 %v3108
  %3709 = vmatprep.subr.mxu0 0.0
  %3710 = vmatpush1.msra.mxu0 %v3109
  %3711 = vmatprep.subr.mxu0 0.0
  %3712 = vmatpush1.msra.mxu0 %v3110
  %3713 = vmatprep.subr.mxu0 0.0
  %3714 = vmatpush1.msra.mxu0 %v3111
  %3715 = vmatprep.subr.mxu0 0.0
  %3716 = vmatpush1.msra.mxu0 %v3112
  %3717 = vmatprep.subr.mxu0 0.0
  %3718 = vmatpush1.msra.mxu0 %v3113
  %3719 = vmatprep.subr.mxu0 0.0
  %3720 = vmatpush1.msra.mxu0 %v3114
  %3721 = vmatprep.subr.mxu0 0.0
  %3722 = vmatpush1.msra.mxu0 %v3115
  %3723 = vmatprep.subr.mxu0 0.0
  %3724 = vmatpush1.msra.mxu0 %v3116
  %3725 = vmatprep.subr.mxu0 0.0
  %3726 = vmatpush1.msra.mxu0 %v3117
  %3727 = vmatprep.subr.mxu0 0.0
  %3728 = vmatpush1.msra.mxu0 %v3118
  %3729 = vmatprep.subr.mxu0 0.0
  %3730 = vmatpush1.msra.mxu0 %v3119
  %3731 = vmatprep.subr.mxu0 0.0
  %3732 = vmatpush1.msra.mxu0 %v3120
  %3733 = vmatprep.subr.mxu0 0.0
  %3734 = vmatpush1.msra.mxu0 0.0
  %3735 = vmatprep.subr.mxu0 0.0
  %3736 = vmatpush1.msra.mxu0 0.0
  %3737 = vmatprep.subr.mxu0 0.0
  %3738 = vmatpush1.msra.mxu0 0.0
  %3739 = vmatprep.subr.mxu0 0.0
  %3740 = vmatpush1.msra.mxu0 0.0
  %3741 = vmatprep.subr.mxu0 0.0
  %3742 = vmatpush1.msra.mxu0 0.0
  %3743 = vmatprep.subr.mxu0 0.0
  %3744 = vmatpush1.msra.mxu0 0.0
  %3745 = vmatprep.subr.mxu0 0.0
  %3746 = vmatpush1.msra.mxu0 0.0
  %3747 = vmatprep.subr.mxu0 0.0
  %3748 = vmatpush1.msra.mxu0 0.0
  %3749 = vmatprep.subr.mxu0 0.0
  %3750 = vmatpush1.msra.mxu0 0.0
  %3751 = vmatprep.subr.mxu0 0.0
  %3752 = vmatpush1.msra.mxu0 0.0
  %3753 = vmatprep.subr.mxu0 0.0
  %3754 = vmatpush1.msra.mxu0 0.0
  %3755 = vmatprep.subr.mxu0 0.0
  %3756 = vmatpush1.msra.mxu0 0.0
  %3757 = vmatprep.subr.mxu0 0.0
  %3758 = vmatpush1.msra.mxu0 0.0
  %3759 = vmatprep.subr.mxu0 0.0
  %3760 = vmatpush1.msra.mxu0 0.0
  %3761 = vmatprep.subr.mxu0 0.0
  %3762 = vmatpush1.msra.mxu0 0.0
  %3763 = vmatprep.subr.mxu0 0.0
  %3764 = vmatpush1.msra.mxu0 0.0
  %3765 = vmatprep.mubr.f32.mxu0 0.0
  %3766 = vmatmul.mubr.f32.gmra.mrb[0].mxu0 %v2841
  %v3767 = vpop.f32.mrb[0].mxu0
  %v3768 = vadd.f32 %v3623, %v3767
  %v3769 = vpop.f32.mrb[0].mxu0
  %3770 = vmatprep.mubr.f32.mxu0 0.0
  %3771 = vmatmul.mubr.f32.gmra.mrb[0].mxu0 %v2850
  %v3772 = vpop.f32.mrb[0].mxu0
  %v3773 = vadd.f32 %v3628, %v3772
  %v3774 = vpop.f32.mrb[0].mxu0
  %3775 = vmatprep.mubr.f32.mxu0 0.0
  %3776 = vmatmul.mubr.f32.gmra.mrb[0].mxu0 %v2859
  %v3777 = vpop.f32.mrb[0].mxu0
  %v3778 = vadd.f32 %v3633, %v3777
  %v3779 = vpop.f32.mrb[0].mxu0
  %3780 = vmatprep.mubr.f32.mxu0 0.0
  %3781 = vmatmul.mubr.f32.gmra.mrb[0].mxu0 %v2868
  %v3782 = vpop.f32.mrb[0].mxu0
  %v3783 = vadd.f32 %v3638, %v3782
  %v3784 = vpop.f32.mrb[0].mxu0
  %3785 = vmatprep.mubr.f32.mxu0 0.0
  %3786 = vmatmul.mubr.f32.gmra.mrb[0].mxu0 %v2877
  %v3787 = vpop.f32.mrb[0].mxu0
  %v3788 = vadd.f32 %v3643, %v3787
  %v3789 = vpop.f32.mrb[0].mxu0
  %3790 = vmatprep.mubr.f32.mxu0 0.0
  %3791 = vmatmul.mubr.f32.gmra.mrb[0].mxu0 %v2886
  %v3792 = vpop.f32.mrb[0].mxu0
  %v3793 = vadd.f32 %v3648, %v3792
  %v3794 = vpop.f32.mrb[0].mxu0
  %3795 = vmatprep.mubr.f32.mxu0 0.0
  %3796 = vmatmul.mubr.f32.gmra.mrb[0].mxu0 %v2895
  %v3797 = vpop.f32.mrb[0].mxu0
  %v3798 = vadd.f32 %v3653, %v3797
  %v3799 = vpop.f32.mrb[0].mxu0
  %3800 = vmatprep.mubr.f32.mxu0 0.0
  %3801 = vmatmul.mubr.f32.gmra.mrb[0].mxu0 %v2904
  %v3802 = vpop.f32.mrb[0].mxu0
  %v3803 = vadd.f32 %v3658, %v3802
  %v3804 = vpop.f32.mrb[0].mxu0
  %3805 = vmatprep.mubr.f32.mxu0 0.0
  %3806 = vmatmul.mubr.f32.gmra.mrb[0].mxu0 %v2913
  %v3807 = vpop.f32.mrb[0].mxu0
  %v3808 = vadd.f32 %v3663, %v3807
  %v3809 = vpop.f32.mrb[0].mxu0
  %3810 = vmatprep.mubr.f32.mxu0 0.0
  %3811 = vmatmul.mubr.f32.gmra.mrb[0].mxu0 %v2922
  %v3812 = vpop.f32.mrb[0].mxu0
  %v3813 = vadd.f32 %v3668, %v3812
  %v3814 = vpop.f32.mrb[0].mxu0
  %3815 = vmatprep.mubr.f32.mxu0 0.0
  %3816 = vmatmul.mubr.f32.gmra.mrb[0].mxu0 %v2931
  %v3817 = vpop.f32.mrb[0].mxu0
  %v3818 = vadd.f32 %v3673, %v3817
  %v3819 = vpop.f32.mrb[0].mxu0
  %3820 = vmatprep.mubr.f32.mxu0 0.0
  %3821 = vmatmul.mubr.f32.gmra.mrb[0].mxu0 %v2940
  %v3822 = vpop.f32.mrb[0].mxu0
  %v3823 = vadd.f32 %v3678, %v3822
  %v3824 = vpop.f32.mrb[0].mxu0
  %3825 = vmatprep.mubr.f32.mxu0 0.0
  %3826 = vmatmul.mubr.f32.gmra.mrb[0].mxu0 %v2949
  %v3827 = vpop.f32.mrb[0].mxu0
  %v3828 = vadd.f32 %v3683, %v3827
  %v3829 = vpop.f32.mrb[0].mxu0
  %3830 = vmatprep.mubr.f32.mxu0 0.0
  %3831 = vmatmul.mubr.f32.gmra.mrb[0].mxu0 %v2958
  %v3832 = vpop.f32.mrb[0].mxu0
  %v3833 = vadd.f32 %v3688, %v3832
  %v3834 = vpop.f32.mrb[0].mxu0
  %3835 = vmatprep.mubr.f32.mxu0 0.0
  %3836 = vmatmul.mubr.f32.gmra.mrb[0].mxu0 %v2967
  %v3837 = vpop.f32.mrb[0].mxu0
  %v3838 = vadd.f32 %v3693, %v3837
  %v3839 = vpop.f32.mrb[0].mxu0
  %3840 = vmatprep.mubr.f32.mxu0 0.0
  %3841 = vmatmul.mubr.f32.gmra.mrb[0].mxu0 %v2976
  %v3842 = vpop.f32.mrb[0].mxu0
  %v3843 = vadd.f32 %v3698, %v3842
  %v3844 = vpop.f32.mrb[0].mxu0
  %3845 = vdwg.mxu0
  %v3846 = vld [vmem:[%s6] sm:$0x1]
  %v3847 = vld [vmem:[%s7] sm:$0x1]
  %v3848 = vsel %vm1488, %v3768, 0.0
  %v3849 = vsel %vm1488, %v3773, 0.0
  %v3850 = vadd.f32 %v3848, %v3849
  %v3851 = vsel %vm1488, %v3778, 0.0
  %v3852 = vadd.f32 %v3850, %v3851
  %v3853 = vsel %vm1488, %v3783, 0.0
  %v3854 = vadd.f32 %v3852, %v3853
  %v3855 = vsel %vm1488, %v3788, 0.0
  %v3856 = vadd.f32 %v3854, %v3855
  %v3857 = vsel %vm1488, %v3793, 0.0
  %v3858 = vadd.f32 %v3856, %v3857
  %v3859 = vsel %vm1488, %v3798, 0.0
  %v3860 = vadd.f32 %v3858, %v3859
  %v3861 = vsel %vm1488, %v3803, 0.0
  %v3862 = vadd.f32 %v3860, %v3861
  %v3863 = vsel %vm1488, %v3808, 0.0
  %v3864 = vadd.f32 %v3862, %v3863
  %v3865 = vsel %vm1488, %v3813, 0.0
  %v3866 = vadd.f32 %v3864, %v3865
  %v3867 = vsel %vm1488, %v3818, 0.0
  %v3868 = vadd.f32 %v3866, %v3867
  %v3869 = vsel %vm1488, %v3823, 0.0
  %v3870 = vadd.f32 %v3868, %v3869
  %v3871 = vsel %vm1488, %v3828, 0.0
  %v3872 = vadd.f32 %v3870, %v3871
  %v3873 = vsel %vm1488, %v3833, 0.0
  %v3874 = vadd.f32 %v3872, %v3873
  %v3875 = vsel %vm1488, %v3838, 0.0
  %v3876 = vadd.f32 %v3874, %v3875
  %v3877 = vsel %vm1488, %v3843, 0.0
  %v3878 = vadd.f32 %v3876, %v3877
  %v3879 = vrot.slane %v3878, 4
  %v3880 = vadd.f32 %v3878, %v3879
  %v3881 = vrot.slane %v3880, 2
  %v3882 = vadd.f32 %v3880, %v3881
  %v3883 = vrot.slane %v3882, 1
  %v3884 = vadd.f32 %v3882, %v3883
  %v3885 = vmul.f32 %v3768, %v3768
  %v3886 = vmul.f32 %v3773, %v3773
  %v3887 = vmul.f32 %v3778, %v3778
  %v3888 = vmul.f32 %v3783, %v3783
  %v3889 = vmul.f32 %v3788, %v3788
  %v3890 = vmul.f32 %v3793, %v3793
  %v3891 = vmul.f32 %v3798, %v3798
  %v3892 = vmul.f32 %v3803, %v3803
  %v3893 = vmul.f32 %v3808, %v3808
  %v3894 = vmul.f32 %v3813, %v3813
  %v3895 = vmul.f32 %v3818, %v3818
  %v3896 = vmul.f32 %v3823, %v3823
  %v3897 = vmul.f32 %v3828, %v3828
  %v3898 = vmul.f32 %v3833, %v3833
  %v3899 = vmul.f32 %v3838, %v3838
  %v3900 = vmul.f32 %v3843, %v3843
  %v3901 = vsel %vm1488, %v3885, 0.0
  %v3902 = vsel %vm1488, %v3886, 0.0
  %v3903 = vadd.f32 %v3901, %v3902
  %v3904 = vsel %vm1488, %v3887, 0.0
  %v3905 = vadd.f32 %v3903, %v3904
  %v3906 = vsel %vm1488, %v3888, 0.0
  %v3907 = vadd.f32 %v3905, %v3906
  %v3908 = vsel %vm1488, %v3889, 0.0
  %v3909 = vadd.f32 %v3907, %v3908
  %v3910 = vsel %vm1488, %v3890, 0.0
  %v3911 = vadd.f32 %v3909, %v3910
  %v3912 = vsel %vm1488, %v3891, 0.0
  %v3913 = vadd.f32 %v3911, %v3912
  %v3914 = vsel %vm1488, %v3892, 0.0
  %v3915 = vadd.f32 %v3913, %v3914
  %v3916 = vsel %vm1488, %v3893, 0.0
  %v3917 = vadd.f32 %v3915, %v3916
  %v3918 = vsel %vm1488, %v3894, 0.0
  %v3919 = vadd.f32 %v3917, %v3918
  %v3920 = vsel %vm1488, %v3895, 0.0
  %v3921 = vadd.f32 %v3919, %v3920
  %v3922 = vsel %vm1488, %v3896, 0.0
  %v3923 = vadd.f32 %v3921, %v3922
  %v3924 = vsel %vm1488, %v3897, 0.0
  %v3925 = vadd.f32 %v3923, %v3924
  %v3926 = vsel %vm1488, %v3898, 0.0
  %v3927 = vadd.f32 %v3925, %v3926
  %v3928 = vsel %vm1488, %v3899, 0.0
  %v3929 = vadd.f32 %v3927, %v3928
  %v3930 = vsel %vm1488, %v3900, 0.0
  %v3931 = vadd.f32 %v3929, %v3930
  %v3932 = vrot.slane %v3931, 4
  %v3933 = vadd.f32 %v3931, %v3932
  %v3934 = vrot.slane %v3933, 2
  %v3935 = vadd.f32 %v3933, %v3934
  %v3936 = vrot.slane %v3935, 1
  %v3937 = vadd.f32 %v3935, %v3936
  %v3938 = vmul.f32 %v3884, 0.0078125
  %v3939 = vmul.f32 %v3937, 0.0078125
  %v3940 = vmul.f32 %v3938, %v3938
  %v3941 = vsub.f32 %v3939, %v3940
  %v3942 = vmax.f32 %v3941, 0.0
  %v3943 = vadd.f32 %v3942, 1e-05
  %v3944 = vrsqrt.pop %v3943
  %v3945 = vmul.f32 %v3846, %v3944
  %v3946 = vmul.f32 %v3938, %v3945
  %v3947 = vsub.f32 %v3847, %v3946
  %v3949 = vlaneseq
  %v3950 = vshrl.u32 %v3949, 7
  %v3951 = vsub.s32 0, %v3950
  %v3952 = vrot.slane %v3945, %v3951
  %v3954 = vmul.f32 %v3768, %v3952
  %v3955 = vmul.f32 %v3773, %v3952
  %v3956 = vmul.f32 %v3778, %v3952
  %v3957 = vmul.f32 %v3783, %v3952
  %v3958 = vmul.f32 %v3788, %v3952
  %v3959 = vmul.f32 %v3793, %v3952
  %v3960 = vmul.f32 %v3798, %v3952
  %v3961 = vmul.f32 %v3803, %v3952
  %v3962 = vmul.f32 %v3808, %v3952
  %v3963 = vmul.f32 %v3813, %v3952
  %v3964 = vmul.f32 %v3818, %v3952
  %v3965 = vmul.f32 %v3823, %v3952
  %v3966 = vmul.f32 %v3828, %v3952
  %v3967 = vmul.f32 %v3833, %v3952
  %v3968 = vmul.f32 %v3838, %v3952
  %v3969 = vmul.f32 %v3843, %v3952
  %v3971 = vlaneseq
  %v3972 = vshrl.u32 %v3971, 7
  %v3973 = vsub.s32 0, %v3972
  %v3974 = vrot.slane %v3947, %v3973
  %v3976 = vadd.f32 %v3954, %v3974
  %v3977 = vadd.f32 %v3955, %v3974
  %v3978 = vadd.f32 %v3956, %v3974
  %v3979 = vadd.f32 %v3957, %v3974
  %v3980 = vadd.f32 %v3958, %v3974
  %v3981 = vadd.f32 %v3959, %v3974
  %v3982 = vadd.f32 %v3960, %v3974
  %v3983 = vadd.f32 %v3961, %v3974
  %v3984 = vadd.f32 %v3962, %v3974
  %v3985 = vadd.f32 %v3963, %v3974
  %v3986 = vadd.f32 %v3964, %v3974
  %v3987 = vadd.f32 %v3965, %v3974
  %v3988 = vadd.f32 %v3966, %v3974
  %v3989 = vadd.f32 %v3967, %v3974
  %v3990 = vadd.f32 %v3968, %v3974
  %v3991 = vadd.f32 %v3969, %v3974
  %v3992 = vmax.f32 %v3976, 0.0
  %v3993 = vmax.f32 %v3977, 0.0
  %v3994 = vmax.f32 %v3978, 0.0
  %v3995 = vmax.f32 %v3979, 0.0
  %v3996 = vmax.f32 %v3980, 0.0
  %v3997 = vmax.f32 %v3981, 0.0
  %v3998 = vmax.f32 %v3982, 0.0
  %v3999 = vmax.f32 %v3983, 0.0
  %v4000 = vmax.f32 %v3984, 0.0
  %v4001 = vmax.f32 %v3985, 0.0
  %v4002 = vmax.f32 %v3986, 0.0
  %v4003 = vmax.f32 %v3987, 0.0
  %v4004 = vmax.f32 %v3988, 0.0
  %v4005 = vmax.f32 %v3989, 0.0
  %v4006 = vmax.f32 %v3990, 0.0
  %v4007 = vmax.f32 %v3991, 0.0
  %v4008 = vmax.f32 %v3992, %v3996
  %v4009 = vmax.f32 %v3993, %v3997
  %v4010 = vmax.f32 %v3994, %v3998
  %v4011 = vmax.f32 %v3995, %v3999
  %v4012 = vmax.f32 %v4000, %v4004
  %v4013 = vmax.f32 %v4001, %v4005
  %v4014 = vmax.f32 %v4002, %v4006
  %v4015 = vmax.f32 %v4003, %v4007
  %v4016 = vmax.f32 %v4008, %v4012
  %v4017 = vmax.f32 %v4009, %v4013
  %v4018 = vmax.f32 %v4010, %v4014
  %v4019 = vmax.f32 %v4011, %v4015
  %v4020 = vld [vmem:[%s9] sm:$0xff]
  %v4022 = vsel %vm1488, %v4016, 0
  %v4025 = vsel %vm1488, %v4017, 0
  %v4028 = vsel %vm1488, %v4018, 0
  %v4031 = vsel %vm1488, %v4019, 0
  %4033 = vmatprep.subr.mxu0 0.0
  %4034 = vmatpush1.msra.mxu0 %v4020
  %4035 = vmatprep.subr.mxu0 0.0
  %4036 = vmatpush1.msra.mxu0 0.0
  %4037 = vmatprep.subr.mxu0 0.0
  %4038 = vmatpush1.msra.mxu0 0.0
  %4039 = vmatprep.subr.mxu0 0.0
  %4040 = vmatpush1.msra.mxu0 0.0
  %4041 = vmatprep.subr.mxu0 0.0
  %4042 = vmatpush1.msra.mxu0 0.0
  %4043 = vmatprep.subr.mxu0 0.0
  %4044 = vmatpush1.msra.mxu0 0.0
  %4045 = vmatprep.subr.mxu0 0.0
  %4046 = vmatpush1.msra.mxu0 0.0
  %4047 = vmatprep.subr.mxu0 0.0
  %4048 = vmatpush1.msra.mxu0 0.0
  %4049 = vmatprep.subr.mxu0 0.0
  %4050 = vmatpush1.msra.mxu0 0.0
  %4051 = vmatprep.subr.mxu0 0.0
  %4052 = vmatpush1.msra.mxu0 0.0
  %4053 = vmatprep.subr.mxu0 0.0
  %4054 = vmatpush1.msra.mxu0 0.0
  %4055 = vmatprep.subr.mxu0 0.0
  %4056 = vmatpush1.msra.mxu0 0.0
  %4057 = vmatprep.subr.mxu0 0.0
  %4058 = vmatpush1.msra.mxu0 0.0
  %4059 = vmatprep.subr.mxu0 0.0
  %4060 = vmatpush1.msra.mxu0 0.0
  %4061 = vmatprep.subr.mxu0 0.0
  %4062 = vmatpush1.msra.mxu0 0.0
  %4063 = vmatprep.subr.mxu0 0.0
  %4064 = vmatpush1.msra.mxu0 0.0
  %4065 = vmatprep.subr.mxu0 0.0
  %4066 = vmatpush1.msra.mxu0 0.0
  %4067 = vmatprep.subr.mxu0 0.0
  %4068 = vmatpush1.msra.mxu0 0.0
  %4069 = vmatprep.subr.mxu0 0.0
  %4070 = vmatpush1.msra.mxu0 0.0
  %4071 = vmatprep.subr.mxu0 0.0
  %4072 = vmatpush1.msra.mxu0 0.0
  %4073 = vmatprep.subr.mxu0 0.0
  %4074 = vmatpush1.msra.mxu0 0.0
  %4075 = vmatprep.subr.mxu0 0.0
  %4076 = vmatpush1.msra.mxu0 0.0
  %4077 = vmatprep.subr.mxu0 0.0
  %4078 = vmatpush1.msra.mxu0 0.0
  %4079 = vmatprep.subr.mxu0 0.0
  %4080 = vmatpush1.msra.mxu0 0.0
  %4081 = vmatprep.subr.mxu0 0.0
  %4082 = vmatpush1.msra.mxu0 0.0
  %4083 = vmatprep.subr.mxu0 0.0
  %4084 = vmatpush1.msra.mxu0 0.0
  %4085 = vmatprep.subr.mxu0 0.0
  %4086 = vmatpush1.msra.mxu0 0.0
  %4087 = vmatprep.subr.mxu0 0.0
  %4088 = vmatpush1.msra.mxu0 0.0
  %4089 = vmatprep.subr.mxu0 0.0
  %4090 = vmatpush1.msra.mxu0 0.0
  %4091 = vmatprep.subr.mxu0 0.0
  %4092 = vmatpush1.msra.mxu0 0.0
  %4093 = vmatprep.subr.mxu0 0.0
  %4094 = vmatpush1.msra.mxu0 0.0
  %4095 = vmatprep.subr.mxu0 0.0
  %4096 = vmatpush1.msra.mxu0 0.0
  %4097 = vmatprep.mubr.f32.mxu0 0.0
  %4098 = vmatmul.mubr.f32.gmra.mrb[0].mxu0 %v4022
  %v4099 = vpop.f32.mrb[0].mxu0
  %v4100 = vadd.f32 0.0, %v4099
  %v4101 = vpop.f32.mrb[0].mxu0
  %4102 = vmatprep.mubr.f32.mxu0 0.0
  %4103 = vmatmul.mubr.f32.gmra.mrb[0].mxu0 %v4025
  %v4104 = vpop.f32.mrb[0].mxu0
  %v4105 = vadd.f32 0.0, %v4104
  %v4106 = vpop.f32.mrb[0].mxu0
  %4107 = vmatprep.mubr.f32.mxu0 0.0
  %4108 = vmatmul.mubr.f32.gmra.mrb[0].mxu0 %v4028
  %v4109 = vpop.f32.mrb[0].mxu0
  %v4110 = vadd.f32 0.0, %v4109
  %v4111 = vpop.f32.mrb[0].mxu0
  %4112 = vmatprep.mubr.f32.mxu0 0.0
  %4113 = vmatmul.mubr.f32.gmra.mrb[0].mxu0 %v4031
  %v4114 = vpop.f32.mrb[0].mxu0
  %v4115 = vadd.f32 0.0, %v4114
  %v4116 = vpop.f32.mrb[0].mxu0
  %4117 = vdwg.mxu0
  %4118 = vst [vmem:[#allocation3] sm:$0xff] %v4100
  %4119 = vst [vmem:[#allocation3 + $0x8] sm:$0xff] %v4105
  %4120 = vst [vmem:[#allocation3 + $0x10] sm:$0xff] %v4110
  %4121 = vst [vmem:[#allocation3 + $0x18] sm:$0xff] %v4115
  %s4122 = scalar_lea.vmem %s9, 8
  %v4123 = vld [vmem:[%s4122] sm:$0xff]
  %4124 = vmatprep.subr.mxu0 0.0
  %4125 = vmatpush1.msra.mxu0 %v4123
  %4126 = vmatprep.subr.mxu0 0.0
  %4127 = vmatpush1.msra.mxu0 0.0
  %4128 = vmatprep.subr.mxu0 0.0
  %4129 = vmatpush1.msra.mxu0 0.0
  %4130 = vmatprep.subr.mxu0 0.0
  %4131 = vmatpush1.msra.mxu0 0.0
  %4132 = vmatprep.subr.mxu0 0.0
  %4133 = vmatpush1.msra.mxu0 0.0
  %4134 = vmatprep.subr.mxu0 0.0
  %4135 = vmatpush1.msra.mxu0 0.0
  %4136 = vmatprep.subr.mxu0 0.0
  %4137 = vmatpush1.msra.mxu0 0.0
  %4138 = vmatprep.subr.mxu0 0.0
  %4139 = vmatpush1.msra.mxu0 0.0
  %4140 = vmatprep.subr.mxu0 0.0
  %4141 = vmatpush1.msra.mxu0 0.0
  %4142 = vmatprep.subr.mxu0 0.0
  %4143 = vmatpush1.msra.mxu0 0.0
  %4144 = vmatprep.subr.mxu0 0.0
  %4145 = vmatpush1.msra.mxu0 0.0
  %4146 = vmatprep.subr.mxu0 0.0
  %4147 = vmatpush1.msra.mxu0 0.0
  %4148 = vmatprep.subr.mxu0 0.0
  %4149 = vmatpush1.msra.mxu0 0.0
  %4150 = vmatprep.subr.mxu0 0.0
  %4151 = vmatpush1.msra.mxu0 0.0
  %4152 = vmatprep.subr.mxu0 0.0
  %4153 = vmatpush1.msra.mxu0 0.0
  %4154 = vmatprep.subr.mxu0 0.0
  %4155 = vmatpush1.msra.mxu0 0.0
  %4156 = vmatprep.subr.mxu0 0.0
  %4157 = vmatpush1.msra.mxu0 0.0
  %4158 = vmatprep.subr.mxu0 0.0
  %4159 = vmatpush1.msra.mxu0 0.0
  %4160 = vmatprep.subr.mxu0 0.0
  %4161 = vmatpush1.msra.mxu0 0.0
  %4162 = vmatprep.subr.mxu0 0.0
  %4163 = vmatpush1.msra.mxu0 0.0
  %4164 = vmatprep.subr.mxu0 0.0
  %4165 = vmatpush1.msra.mxu0 0.0
  %4166 = vmatprep.subr.mxu0 0.0
  %4167 = vmatpush1.msra.mxu0 0.0
  %4168 = vmatprep.subr.mxu0 0.0
  %4169 = vmatpush1.msra.mxu0 0.0
  %4170 = vmatprep.subr.mxu0 0.0
  %4171 = vmatpush1.msra.mxu0 0.0
  %4172 = vmatprep.subr.mxu0 0.0
  %4173 = vmatpush1.msra.mxu0 0.0
  %4174 = vmatprep.subr.mxu0 0.0
  %4175 = vmatpush1.msra.mxu0 0.0
  %4176 = vmatprep.subr.mxu0 0.0
  %4177 = vmatpush1.msra.mxu0 0.0
  %4178 = vmatprep.subr.mxu0 0.0
  %4179 = vmatpush1.msra.mxu0 0.0
  %4180 = vmatprep.subr.mxu0 0.0
  %4181 = vmatpush1.msra.mxu0 0.0
  %4182 = vmatprep.subr.mxu0 0.0
  %4183 = vmatpush1.msra.mxu0 0.0
  %4184 = vmatprep.subr.mxu0 0.0
  %4185 = vmatpush1.msra.mxu0 0.0
  %4186 = vmatprep.subr.mxu0 0.0
  %4187 = vmatpush1.msra.mxu0 0.0
  %4188 = vmatprep.mubr.f32.mxu0 0.0
  %4189 = vmatmul.mubr.f32.gmra.mrb[0].mxu0 %v4022
  %v4190 = vpop.f32.mrb[0].mxu0
  %v4191 = vadd.f32 0.0, %v4190
  %v4192 = vpop.f32.mrb[0].mxu0
  %4193 = vmatprep.mubr.f32.mxu0 0.0
  %4194 = vmatmul.mubr.f32.gmra.mrb[0].mxu0 %v4025
  %v4195 = vpop.f32.mrb[0].mxu0
  %v4196 = vadd.f32 0.0, %v4195
  %v4197 = vpop.f32.mrb[0].mxu0
  %4198 = vmatprep.mubr.f32.mxu0 0.0
  %4199 = vmatmul.mubr.f32.gmra.mrb[0].mxu0 %v4028
  %v4200 = vpop.f32.mrb[0].mxu0
  %v4201 = vadd.f32 0.0, %v4200
  %v4202 = vpop.f32.mrb[0].mxu0
  %4203 = vmatprep.mubr.f32.mxu0 0.0
  %4204 = vmatmul.mubr.f32.gmra.mrb[0].mxu0 %v4031
  %v4205 = vpop.f32.mrb[0].mxu0
  %v4206 = vadd.f32 0.0, %v4205
  %v4207 = vpop.f32.mrb[0].mxu0
  %4208 = vdwg.mxu0
  %4209 = vst [vmem:[#allocation3 + $0x20] sm:$0xff] %v4191
  %4210 = vst [vmem:[#allocation3 + $0x28] sm:$0xff] %v4196
  %4211 = vst [vmem:[#allocation3 + $0x30] sm:$0xff] %v4201
  %4212 = vst [vmem:[#allocation3 + $0x38] sm:$0xff] %v4206
  %s4213 = scalar_lea.vmem %s9, 16
  %v4214 = vld [vmem:[%s4213] sm:$0xff]
  %4215 = vmatprep.subr.mxu0 0.0
  %4216 = vmatpush1.msra.mxu0 %v4214
  %4217 = vmatprep.subr.mxu0 0.0
  %4218 = vmatpush1.msra.mxu0 0.0
  %4219 = vmatprep.subr.mxu0 0.0
  %4220 = vmatpush1.msra.mxu0 0.0
  %4221 = vmatprep.subr.mxu0 0.0
  %4222 = vmatpush1.msra.mxu0 0.0
  %4223 = vmatprep.subr.mxu0 0.0
  %4224 = vmatpush1.msra.mxu0 0.0
  %4225 = vmatprep.subr.mxu0 0.0
  %4226 = vmatpush1.msra.mxu0 0.0
  %4227 = vmatprep.subr.mxu0 0.0
  %4228 = vmatpush1.msra.mxu0 0.0
  %4229 = vmatprep.subr.mxu0 0.0
  %4230 = vmatpush1.msra.mxu0 0.0
  %4231 = vmatprep.subr.mxu0 0.0
  %4232 = vmatpush1.msra.mxu0 0.0
  %4233 = vmatprep.subr.mxu0 0.0
  %4234 = vmatpush1.msra.mxu0 0.0
  %4235 = vmatprep.subr.mxu0 0.0
  %4236 = vmatpush1.msra.mxu0 0.0
  %4237 = vmatprep.subr.mxu0 0.0
  %4238 = vmatpush1.msra.mxu0 0.0
  %4239 = vmatprep.subr.mxu0 0.0
  %4240 = vmatpush1.msra.mxu0 0.0
  %4241 = vmatprep.subr.mxu0 0.0
  %4242 = vmatpush1.msra.mxu0 0.0
  %4243 = vmatprep.subr.mxu0 0.0
  %4244 = vmatpush1.msra.mxu0 0.0
  %4245 = vmatprep.subr.mxu0 0.0
  %4246 = vmatpush1.msra.mxu0 0.0
  %4247 = vmatprep.subr.mxu0 0.0
  %4248 = vmatpush1.msra.mxu0 0.0
  %4249 = vmatprep.subr.mxu0 0.0
  %4250 = vmatpush1.msra.mxu0 0.0
  %4251 = vmatprep.subr.mxu0 0.0
  %4252 = vmatpush1.msra.mxu0 0.0
  %4253 = vmatprep.subr.mxu0 0.0
  %4254 = vmatpush1.msra.mxu0 0.0
  %4255 = vmatprep.subr.mxu0 0.0
  %4256 = vmatpush1.msra.mxu0 0.0
  %4257 = vmatprep.subr.mxu0 0.0
  %4258 = vmatpush1.msra.mxu0 0.0
  %4259 = vmatprep.subr.mxu0 0.0
  %4260 = vmatpush1.msra.mxu0 0.0
  %4261 = vmatprep.subr.mxu0 0.0
  %4262 = vmatpush1.msra.mxu0 0.0
  %4263 = vmatprep.subr.mxu0 0.0
  %4264 = vmatpush1.msra.mxu0 0.0
  %4265 = vmatprep.subr.mxu0 0.0
  %4266 = vmatpush1.msra.mxu0 0.0
  %4267 = vmatprep.subr.mxu0 0.0
  %4268 = vmatpush1.msra.mxu0 0.0
  %4269 = vmatprep.subr.mxu0 0.0
  %4270 = vmatpush1.msra.mxu0 0.0
  %4271 = vmatprep.subr.mxu0 0.0
  %4272 = vmatpush1.msra.mxu0 0.0
  %4273 = vmatprep.subr.mxu0 0.0
  %4274 = vmatpush1.msra.mxu0 0.0
  %4275 = vmatprep.subr.mxu0 0.0
  %4276 = vmatpush1.msra.mxu0 0.0
  %4277 = vmatprep.subr.mxu0 0.0
  %4278 = vmatpush1.msra.mxu0 0.0
  %4279 = vmatprep.mubr.f32.mxu0 0.0
  %4280 = vmatmul.mubr.f32.gmra.mrb[0].mxu0 %v4022
  %v4281 = vpop.f32.mrb[0].mxu0
  %v4282 = vadd.f32 0.0, %v4281
  %v4283 = vpop.f32.mrb[0].mxu0
  %4284 = vmatprep.mubr.f32.mxu0 0.0
  %4285 = vmatmul.mubr.f32.gmra.mrb[0].mxu0 %v4025
  %v4286 = vpop.f32.mrb[0].mxu0
  %v4287 = vadd.f32 0.0, %v4286
  %v4288 = vpop.f32.mrb[0].mxu0
  %4289 = vmatprep.mubr.f32.mxu0 0.0
  %4290 = vmatmul.mubr.f32.gmra.mrb[0].mxu0 %v4028
  %v4291 = vpop.f32.mrb[0].mxu0
  %v4292 = vadd.f32 0.0, %v4291
  %v4293 = vpop.f32.mrb[0].mxu0
  %4294 = vmatprep.mubr.f32.mxu0 0.0
  %4295 = vmatmul.mubr.f32.gmra.mrb[0].mxu0 %v4031
  %v4296 = vpop.f32.mrb[0].mxu0
  %v4297 = vadd.f32 0.0, %v4296
  %v4298 = vpop.f32.mrb[0].mxu0
  %4299 = vdwg.mxu0
  %4300 = vst [vmem:[#allocation3 + $0x40] sm:$0xff] %v4282
  %4301 = vst [vmem:[#allocation3 + $0x48] sm:$0xff] %v4287
  %4302 = vst [vmem:[#allocation3 + $0x50] sm:$0xff] %v4292
  %4303 = vst [vmem:[#allocation3 + $0x58] sm:$0xff] %v4297
  %s4304 = scalar_lea.vmem %s9, 24
  %v4305 = vld [vmem:[%s4304] sm:$0xff]
  %4306 = vmatprep.subr.mxu0 0.0
  %4307 = vmatpush1.msra.mxu0 %v4305
  %4308 = vmatprep.subr.mxu0 0.0
  %4309 = vmatpush1.msra.mxu0 0.0
  %4310 = vmatprep.subr.mxu0 0.0
  %4311 = vmatpush1.msra.mxu0 0.0
  %4312 = vmatprep.subr.mxu0 0.0
  %4313 = vmatpush1.msra.mxu0 0.0
  %4314 = vmatprep.subr.mxu0 0.0
  %4315 = vmatpush1.msra.mxu0 0.0
  %4316 = vmatprep.subr.mxu0 0.0
  %4317 = vmatpush1.msra.mxu0 0.0
  %4318 = vmatprep.subr.mxu0 0.0
  %4319 = vmatpush1.msra.mxu0 0.0
  %4320 = vmatprep.subr.mxu0 0.0
  %4321 = vmatpush1.msra.mxu0 0.0
  %4322 = vmatprep.subr.mxu0 0.0
  %4323 = vmatpush1.msra.mxu0 0.0
  %4324 = vmatprep.subr.mxu0 0.0
  %4325 = vmatpush1.msra.mxu0 0.0
  %4326 = vmatprep.subr.mxu0 0.0
  %4327 = vmatpush1.msra.mxu0 0.0
  %4328 = vmatprep.subr.mxu0 0.0
  %4329 = vmatpush1.msra.mxu0 0.0
  %4330 = vmatprep.subr.mxu0 0.0
  %4331 = vmatpush1.msra.mxu0 0.0
  %4332 = vmatprep.subr.mxu0 0.0
  %4333 = vmatpush1.msra.mxu0 0.0
  %4334 = vmatprep.subr.mxu0 0.0
  %4335 = vmatpush1.msra.mxu0 0.0
  %4336 = vmatprep.subr.mxu0 0.0
  %4337 = vmatpush1.msra.mxu0 0.0
  %4338 = vmatprep.subr.mxu0 0.0
  %4339 = vmatpush1.msra.mxu0 0.0
  %4340 = vmatprep.subr.mxu0 0.0
  %4341 = vmatpush1.msra.mxu0 0.0
  %4342 = vmatprep.subr.mxu0 0.0
  %4343 = vmatpush1.msra.mxu0 0.0
  %4344 = vmatprep.subr.mxu0 0.0
  %4345 = vmatpush1.msra.mxu0 0.0
  %4346 = vmatprep.subr.mxu0 0.0
  %4347 = vmatpush1.msra.mxu0 0.0
  %4348 = vmatprep.subr.mxu0 0.0
  %4349 = vmatpush1.msra.mxu0 0.0
  %4350 = vmatprep.subr.mxu0 0.0
  %4351 = vmatpush1.msra.mxu0 0.0
  %4352 = vmatprep.subr.mxu0 0.0
  %4353 = vmatpush1.msra.mxu0 0.0
  %4354 = vmatprep.subr.mxu0 0.0
  %4355 = vmatpush1.msra.mxu0 0.0
  %4356 = vmatprep.subr.mxu0 0.0
  %4357 = vmatpush1.msra.mxu0 0.0
  %4358 = vmatprep.subr.mxu0 0.0
  %4359 = vmatpush1.msra.mxu0 0.0
  %4360 = vmatprep.subr.mxu0 0.0
  %4361 = vmatpush1.msra.mxu0 0.0
  %4362 = vmatprep.subr.mxu0 0.0
  %4363 = vmatpush1.msra.mxu0 0.0
  %4364 = vmatprep.subr.mxu0 0.0
  %4365 = vmatpush1.msra.mxu0 0.0
  %4366 = vmatprep.subr.mxu0 0.0
  %4367 = vmatpush1.msra.mxu0 0.0
  %4368 = vmatprep.subr.mxu0 0.0
  %4369 = vmatpush1.msra.mxu0 0.0
  %4370 = vmatprep.mubr.f32.mxu0 0.0
  %4371 = vmatmul.mubr.f32.gmra.mrb[0].mxu0 %v4022
  %v4372 = vpop.f32.mrb[0].mxu0
  %v4373 = vadd.f32 0.0, %v4372
  %v4374 = vpop.f32.mrb[0].mxu0
  %4375 = vmatprep.mubr.f32.mxu0 0.0
  %4376 = vmatmul.mubr.f32.gmra.mrb[0].mxu0 %v4025
  %v4377 = vpop.f32.mrb[0].mxu0
  %v4378 = vadd.f32 0.0, %v4377
  %v4379 = vpop.f32.mrb[0].mxu0
  %4380 = vmatprep.mubr.f32.mxu0 0.0
  %4381 = vmatmul.mubr.f32.gmra.mrb[0].mxu0 %v4028
  %v4382 = vpop.f32.mrb[0].mxu0
  %v4383 = vadd.f32 0.0, %v4382
  %v4384 = vpop.f32.mrb[0].mxu0
  %4385 = vmatprep.mubr.f32.mxu0 0.0
  %4386 = vmatmul.mubr.f32.gmra.mrb[0].mxu0 %v4031
  %v4387 = vpop.f32.mrb[0].mxu0
  %v4388 = vadd.f32 0.0, %v4387
  %v4389 = vpop.f32.mrb[0].mxu0
  %4390 = vdwg.mxu0
  %4391 = vst [vmem:[#allocation3 + $0x60] sm:$0xff] %v4373
  %4392 = vst [vmem:[#allocation3 + $0x68] sm:$0xff] %v4378
  %4393 = vst [vmem:[#allocation3 + $0x70] sm:$0xff] %v4383
  %4394 = vst [vmem:[#allocation3 + $0x78] sm:$0xff] %v4388
  %v4395 = vld [vmem:[%s8] sm:$0xff]
  %v4396 = vld [vmem:[#allocation3] sm:$0xff]
  %v4397 = vld [vmem:[#allocation3 + $0x8] sm:$0xff]
  %v4398 = vld [vmem:[#allocation3 + $0x10] sm:$0xff]
  %v4399 = vld [vmem:[#allocation3 + $0x18] sm:$0xff]
  %v4400 = vld [vmem:[#allocation3 + $0x20] sm:$0xff]
  %v4401 = vld [vmem:[#allocation3 + $0x28] sm:$0xff]
  %v4402 = vld [vmem:[#allocation3 + $0x30] sm:$0xff]
  %v4403 = vld [vmem:[#allocation3 + $0x38] sm:$0xff]
  %v4404 = vld [vmem:[#allocation3 + $0x40] sm:$0xff]
  %v4405 = vld [vmem:[#allocation3 + $0x48] sm:$0xff]
  %v4406 = vld [vmem:[#allocation3 + $0x50] sm:$0xff]
  %v4407 = vld [vmem:[#allocation3 + $0x58] sm:$0xff]
  %v4408 = vld [vmem:[#allocation3 + $0x60] sm:$0xff]
  %v4409 = vld [vmem:[#allocation3 + $0x68] sm:$0xff]
  %v4410 = vld [vmem:[#allocation3 + $0x70] sm:$0xff]
  %v4411 = vld [vmem:[#allocation3 + $0x78] sm:$0xff]
  %v4412 = vld [vmem:[%s11] sm:$0x1]
  %v4414 = vlaneseq
  %v4415 = vshrl.u32 %v4414, 7
  %v4416 = vsub.s32 0, %v4415
  %v4417 = vrot.slane %v4412, %v4416
  %4419 = vmatprep.subr.mxu0 0.0
  %4420 = vmatpush1.msra.mxu0 %v4396
  %4421 = vmatprep.subr.mxu0 0.0
  %4422 = vmatpush1.msra.mxu0 %v4397
  %4423 = vmatprep.subr.mxu0 0.0
  %4424 = vmatpush1.msra.mxu0 %v4398
  %4425 = vmatprep.subr.mxu0 0.0
  %4426 = vmatpush1.msra.mxu0 %v4399
  %4427 = vmatprep.subr.mxu0 0.0
  %4428 = vmatpush1.msra.mxu0 %v4400
  %4429 = vmatprep.subr.mxu0 0.0
  %4430 = vmatpush1.msra.mxu0 %v4401
  %4431 = vmatprep.subr.mxu0 0.0
  %4432 = vmatpush1.msra.mxu0 %v4402
  %4433 = vmatprep.subr.mxu0 0.0
  %4434 = vmatpush1.msra.mxu0 %v4403
  %4435 = vmatprep.subr.mxu0 0.0
  %4436 = vmatpush1.msra.mxu0 %v4404
  %4437 = vmatprep.subr.mxu0 0.0
  %4438 = vmatpush1.msra.mxu0 %v4405
  %4439 = vmatprep.subr.mxu0 0.0
  %4440 = vmatpush1.msra.mxu0 %v4406
  %4441 = vmatprep.subr.mxu0 0.0
  %4442 = vmatpush1.msra.mxu0 %v4407
  %4443 = vmatprep.subr.mxu0 0.0
  %4444 = vmatpush1.msra.mxu0 %v4408
  %4445 = vmatprep.subr.mxu0 0.0
  %4446 = vmatpush1.msra.mxu0 %v4409
  %4447 = vmatprep.subr.mxu0 0.0
  %4448 = vmatpush1.msra.mxu0 %v4410
  %4449 = vmatprep.subr.mxu0 0.0
  %4450 = vmatpush1.msra.mxu0 %v4411
  %4451 = vmatprep.subr.mxu0 0.0
  %4452 = vmatpush1.msra.mxu0 0.0
  %4453 = vmatprep.subr.mxu0 0.0
  %4454 = vmatpush1.msra.mxu0 0.0
  %4455 = vmatprep.subr.mxu0 0.0
  %4456 = vmatpush1.msra.mxu0 0.0
  %4457 = vmatprep.subr.mxu0 0.0
  %4458 = vmatpush1.msra.mxu0 0.0
  %4459 = vmatprep.subr.mxu0 0.0
  %4460 = vmatpush1.msra.mxu0 0.0
  %4461 = vmatprep.subr.mxu0 0.0
  %4462 = vmatpush1.msra.mxu0 0.0
  %4463 = vmatprep.subr.mxu0 0.0
  %4464 = vmatpush1.msra.mxu0 0.0
  %4465 = vmatprep.subr.mxu0 0.0
  %4466 = vmatpush1.msra.mxu0 0.0
  %4467 = vmatprep.subr.mxu0 0.0
  %4468 = vmatpush1.msra.mxu0 0.0
  %4469 = vmatprep.subr.mxu0 0.0
  %4470 = vmatpush1.msra.mxu0 0.0
  %4471 = vmatprep.subr.mxu0 0.0
  %4472 = vmatpush1.msra.mxu0 0.0
  %4473 = vmatprep.subr.mxu0 0.0
  %4474 = vmatpush1.msra.mxu0 0.0
  %4475 = vmatprep.subr.mxu0 0.0
  %4476 = vmatpush1.msra.mxu0 0.0
  %4477 = vmatprep.subr.mxu0 0.0
  %4478 = vmatpush1.msra.mxu0 0.0
  %4479 = vmatprep.subr.mxu0 0.0
  %4480 = vmatpush1.msra.mxu0 0.0
  %4481 = vmatprep.subr.mxu0 0.0
  %4482 = vmatpush1.msra.mxu0 0.0
  %4483 = vmatprep.mubr.f32.mxu0 0.0
  %4484 = vmatmul.mubr.f32.gmra.mrb[0].mxu0 %v4395
  %v4485 = vpop.f32.mrb[0].mxu0
  %v4486 = vadd.f32 %v4417, %v4485
  %v4487 = vpop.f32.mrb[0].mxu0
  %4488 = vdwg.mxu0
  %v4489 = vld [vmem:[%s10] sm:$0xff]
  %v4490 = vld [vmem:[%s10 + $0x8] sm:$0xff]
  %v4491 = vld [vmem:[%s10 + $0x10] sm:$0xff]
  %v4492 = vld [vmem:[%s10 + $0x18] sm:$0xff]
  %vm4493 = vcmask 261120
  %v4495 = vsel %vm4493, 0.0, 0
  %4497 = vmatprep.subr.mxu0 0.0
  %4498 = vmatpush1.msra.mxu0 %v4489
  %4499 = vmatprep.subr.mxu0 0.0
  %4500 = vmatpush1.msra.mxu0 %v4490
  %4501 = vmatprep.subr.mxu0 0.0
  %4502 = vmatpush1.msra.mxu0 %v4491
  %4503 = vmatprep.subr.mxu0 0.0
  %4504 = vmatpush1.msra.mxu0 %v4492
  %4505 = vmatprep.subr.mxu0 0.0
  %4506 = vmatpush1.msra.mxu0 0.0
  %4507 = vmatprep.subr.mxu0 0.0
  %4508 = vmatpush1.msra.mxu0 0.0
  %4509 = vmatprep.subr.mxu0 0.0
  %4510 = vmatpush1.msra.mxu0 0.0
  %4511 = vmatprep.subr.mxu0 0.0
  %4512 = vmatpush1.msra.mxu0 0.0
  %4513 = vmatprep.subr.mxu0 0.0
  %4514 = vmatpush1.msra.mxu0 0.0
  %4515 = vmatprep.subr.mxu0 0.0
  %4516 = vmatpush1.msra.mxu0 0.0
  %4517 = vmatprep.subr.mxu0 0.0
  %4518 = vmatpush1.msra.mxu0 0.0
  %4519 = vmatprep.subr.mxu0 0.0
  %4520 = vmatpush1.msra.mxu0 0.0
  %4521 = vmatprep.subr.mxu0 0.0
  %4522 = vmatpush1.msra.mxu0 0.0
  %4523 = vmatprep.subr.mxu0 0.0
  %4524 = vmatpush1.msra.mxu0 0.0
  %4525 = vmatprep.subr.mxu0 0.0
  %4526 = vmatpush1.msra.mxu0 0.0
  %4527 = vmatprep.subr.mxu0 0.0
  %4528 = vmatpush1.msra.mxu0 0.0
  %4529 = vmatprep.subr.mxu0 0.0
  %4530 = vmatpush1.msra.mxu0 0.0
  %4531 = vmatprep.subr.mxu0 0.0
  %4532 = vmatpush1.msra.mxu0 0.0
  %4533 = vmatprep.subr.mxu0 0.0
  %4534 = vmatpush1.msra.mxu0 0.0
  %4535 = vmatprep.subr.mxu0 0.0
  %4536 = vmatpush1.msra.mxu0 0.0
  %4537 = vmatprep.subr.mxu0 0.0
  %4538 = vmatpush1.msra.mxu0 0.0
  %4539 = vmatprep.subr.mxu0 0.0
  %4540 = vmatpush1.msra.mxu0 0.0
  %4541 = vmatprep.subr.mxu0 0.0
  %4542 = vmatpush1.msra.mxu0 0.0
  %4543 = vmatprep.subr.mxu0 0.0
  %4544 = vmatpush1.msra.mxu0 0.0
  %4545 = vmatprep.subr.mxu0 0.0
  %4546 = vmatpush1.msra.mxu0 0.0
  %4547 = vmatprep.subr.mxu0 0.0
  %4548 = vmatpush1.msra.mxu0 0.0
  %4549 = vmatprep.subr.mxu0 0.0
  %4550 = vmatpush1.msra.mxu0 0.0
  %4551 = vmatprep.subr.mxu0 0.0
  %4552 = vmatpush1.msra.mxu0 0.0
  %4553 = vmatprep.subr.mxu0 0.0
  %4554 = vmatpush1.msra.mxu0 0.0
  %4555 = vmatprep.subr.mxu0 0.0
  %4556 = vmatpush1.msra.mxu0 0.0
  %4557 = vmatprep.subr.mxu0 0.0
  %4558 = vmatpush1.msra.mxu0 0.0
  %4559 = vmatprep.subr.mxu0 0.0
  %4560 = vmatpush1.msra.mxu0 0.0
  %4561 = vmatprep.mubr.f32.mxu0 0.0
  %4562 = vmatmul.mubr.f32.gmra.mrb[0].mxu0 %v4495
  %v4563 = vpop.f32.mrb[0].mxu0
  %v4564 = vadd.f32 0.0, %v4563
  %v4565 = vpop.f32.mrb[0].mxu0
  %4566 = vdwg.mxu0
  %v4567 = vadd.f32 %v4486, %v4564
  %v4568 = vxor.u32 %v4567, 2147483648
  %v4569 = vmul.f32 %v4568, 1.442695
  %v4570 = vpow.pop %v4569
  %v4571 = vadd.f32 %v4570, 1.0
  %v4572 = vrcp.pop %v4571
  %v4573 = vmul.f32 1.0, %v4572
  %v4574 = vtanh.pop %v4567
  %v4575 = vmul.f32 %v4573, 0.0
  %4577 = vrot.lane.b32.xlu0 %v4574, 64
  %v4578 = vpop.permute.xlu0 %4577
  %v4580 = vmul.f32 %v4573, %v4578
  %4582 = vrot.lane.b32.xlu0 %v4580, 32
  %v4583 = vpop.permute.xlu0 %4582
  %v4585 = vadd.f32 %v4575, %v4583
  %v4586 = vtanh.pop %v4585
  %4588 = vrot.lane.b32.xlu0 %v4586, 64
  %v4589 = vpop.permute.xlu0 %4588
  %v4591 = vmul.f32 %v4573, %v4589
  %v4592 = vadd.f32 %v4591, 0.0
  %4594 = vrot.lane.b32.xlu0 %v4591, 32
  %v4595 = vpop.permute.xlu0 %4594
  %v4596 = vsel %vm4493, %v4595, 0
  %4598 = vmatprep.subr.mxu0 0.0
  %4599 = vmatpush1.msra.mxu0 %v4489
  %4600 = vmatprep.subr.mxu0 0.0
  %4601 = vmatpush1.msra.mxu0 %v4490
  %4602 = vmatprep.subr.mxu0 0.0
  %4603 = vmatpush1.msra.mxu0 %v4491
  %4604 = vmatprep.subr.mxu0 0.0
  %4605 = vmatpush1.msra.mxu0 %v4492
  %4606 = vmatprep.subr.mxu0 0.0
  %4607 = vmatpush1.msra.mxu0 0.0
  %4608 = vmatprep.subr.mxu0 0.0
  %4609 = vmatpush1.msra.mxu0 0.0
  %4610 = vmatprep.subr.mxu0 0.0
  %4611 = vmatpush1.msra.mxu0 0.0
  %4612 = vmatprep.subr.mxu0 0.0
  %4613 = vmatpush1.msra.mxu0 0.0
  %4614 = vmatprep.subr.mxu0 0.0
  %4615 = vmatpush1.msra.mxu0 0.0
  %4616 = vmatprep.subr.mxu0 0.0
  %4617 = vmatpush1.msra.mxu0 0.0
  %4618 = vmatprep.subr.mxu0 0.0
  %4619 = vmatpush1.msra.mxu0 0.0
  %4620 = vmatprep.subr.mxu0 0.0
  %4621 = vmatpush1.msra.mxu0 0.0
  %4622 = vmatprep.subr.mxu0 0.0
  %4623 = vmatpush1.msra.mxu0 0.0
  %4624 = vmatprep.subr.mxu0 0.0
  %4625 = vmatpush1.msra.mxu0 0.0
  %4626 = vmatprep.subr.mxu0 0.0
  %4627 = vmatpush1.msra.mxu0 0.0
  %4628 = vmatprep.subr.mxu0 0.0
  %4629 = vmatpush1.msra.mxu0 0.0
  %4630 = vmatprep.subr.mxu0 0.0
  %4631 = vmatpush1.msra.mxu0 0.0
  %4632 = vmatprep.subr.mxu0 0.0
  %4633 = vmatpush1.msra.mxu0 0.0
  %4634 = vmatprep.subr.mxu0 0.0
  %4635 = vmatpush1.msra.mxu0 0.0
  %4636 = vmatprep.subr.mxu0 0.0
  %4637 = vmatpush1.msra.mxu0 0.0
  %4638 = vmatprep.subr.mxu0 0.0
  %4639 = vmatpush1.msra.mxu0 0.0
  %4640 = vmatprep.subr.mxu0 0.0
  %4641 = vmatpush1.msra.mxu0 0.0
  %4642 = vmatprep.subr.mxu0 0.0
  %4643 = vmatpush1.msra.mxu0 0.0
  %4644 = vmatprep.subr.mxu0 0.0
  %4645 = vmatpush1.msra.mxu0 0.0
  %4646 = vmatprep.subr.mxu0 0.0
  %4647 = vmatpush1.msra.mxu0 0.0
  %4648 = vmatprep.subr.mxu0 0.0
  %4649 = vmatpush1.msra.mxu0 0.0
  %4650 = vmatprep.subr.mxu0 0.0
  %4651 = vmatpush1.msra.mxu0 0.0
  %4652 = vmatprep.subr.mxu0 0.0
  %4653 = vmatpush1.msra.mxu0 0.0
  %4654 = vmatprep.subr.mxu0 0.0
  %4655 = vmatpush1.msra.mxu0 0.0
  %4656 = vmatprep.subr.mxu0 0.0
  %4657 = vmatpush1.msra.mxu0 0.0
  %4658 = vmatprep.subr.mxu0 0.0
  %4659 = vmatpush1.msra.mxu0 0.0
  %4660 = vmatprep.subr.mxu0 0.0
  %4661 = vmatpush1.msra.mxu0 0.0
  %4662 = vmatprep.mubr.f32.mxu0 0.0
  %4663 = vmatmul.mubr.f32.gmra.mrb[0].mxu0 %v4596
  %v4664 = vpop.f32.mrb[0].mxu0
  %v4665 = vadd.f32 0.0, %v4664
  %v4666 = vpop.f32.mrb[0].mxu0
  %4667 = vdwg.mxu0
  %v4669 = vrot.slane %v4665, 6
  %v4671 = vadd.f32 %v4486, %v4669
  %v4672 = vxor.u32 %v4671, 2147483648
  %v4673 = vmul.f32 %v4672, 1.442695
  %v4674 = vpow.pop %v4673
  %v4675 = vadd.f32 %v4674, 1.0
  %v4676 = vrcp.pop %v4675
  %v4677 = vmul.f32 1.0, %v4676
  %v4678 = vtanh.pop %v4671
  %v4680 = vrot.slane %v4585, 6
  %v4682 = vmul.f32 %v4677, %v4680
  %4684 = vrot.lane.b32.xlu0 %v4678, 64
  %v4685 = vpop.permute.xlu0 %4684
  %v4687 = vmul.f32 %v4677, %v4685
  %4689 = vrot.lane.b32.xlu0 %v4687, 32
  %v4690 = vpop.permute.xlu0 %4689
  %v4692 = vadd.f32 %v4682, %v4690
  %v4693 = vtanh.pop %v4692
  %4695 = vrot.lane.b32.xlu0 %v4693, 64
  %v4696 = vpop.permute.xlu0 %4695
  %v4698 = vmul.f32 %v4677, %v4696
  %v4700 = vrot.slane %v4698, 2
  %v4702 = vadd.f32 %v4592, %v4700
  %4703 = vrot.lane.b32.xlu0 %v4700, 32
  %v4704 = vpop.permute.xlu0 %4703
  %v4705 = vsel %vm4493, %v4704, 0
  %4707 = vmatprep.subr.mxu0 0.0
  %4708 = vmatpush1.msra.mxu0 %v4489
  %4709 = vmatprep.subr.mxu0 0.0
  %4710 = vmatpush1.msra.mxu0 %v4490
  %4711 = vmatprep.subr.mxu0 0.0
  %4712 = vmatpush1.msra.mxu0 %v4491
  %4713 = vmatprep.subr.mxu0 0.0
  %4714 = vmatpush1.msra.mxu0 %v4492
  %4715 = vmatprep.subr.mxu0 0.0
  %4716 = vmatpush1.msra.mxu0 0.0
  %4717 = vmatprep.subr.mxu0 0.0
  %4718 = vmatpush1.msra.mxu0 0.0
  %4719 = vmatprep.subr.mxu0 0.0
  %4720 = vmatpush1.msra.mxu0 0.0
  %4721 = vmatprep.subr.mxu0 0.0
  %4722 = vmatpush1.msra.mxu0 0.0
  %4723 = vmatprep.subr.mxu0 0.0
  %4724 = vmatpush1.msra.mxu0 0.0
  %4725 = vmatprep.subr.mxu0 0.0
  %4726 = vmatpush1.msra.mxu0 0.0
  %4727 = vmatprep.subr.mxu0 0.0
  %4728 = vmatpush1.msra.mxu0 0.0
  %4729 = vmatprep.subr.mxu0 0.0
  %4730 = vmatpush1.msra.mxu0 0.0
  %4731 = vmatprep.subr.mxu0 0.0
  %4732 = vmatpush1.msra.mxu0 0.0
  %4733 = vmatprep.subr.mxu0 0.0
  %4734 = vmatpush1.msra.mxu0 0.0
  %4735 = vmatprep.subr.mxu0 0.0
  %4736 = vmatpush1.msra.mxu0 0.0
  %4737 = vmatprep.subr.mxu0 0.0
  %4738 = vmatpush1.msra.mxu0 0.0
  %4739 = vmatprep.subr.mxu0 0.0
  %4740 = vmatpush1.msra.mxu0 0.0
  %4741 = vmatprep.subr.mxu0 0.0
  %4742 = vmatpush1.msra.mxu0 0.0
  %4743 = vmatprep.subr.mxu0 0.0
  %4744 = vmatpush1.msra.mxu0 0.0
  %4745 = vmatprep.subr.mxu0 0.0
  %4746 = vmatpush1.msra.mxu0 0.0
  %4747 = vmatprep.subr.mxu0 0.0
  %4748 = vmatpush1.msra.mxu0 0.0
  %4749 = vmatprep.subr.mxu0 0.0
  %4750 = vmatpush1.msra.mxu0 0.0
  %4751 = vmatprep.subr.mxu0 0.0
  %4752 = vmatpush1.msra.mxu0 0.0
  %4753 = vmatprep.subr.mxu0 0.0
  %4754 = vmatpush1.msra.mxu0 0.0
  %4755 = vmatprep.subr.mxu0 0.0
  %4756 = vmatpush1.msra.mxu0 0.0
  %4757 = vmatprep.subr.mxu0 0.0
  %4758 = vmatpush1.msra.mxu0 0.0
  %4759 = vmatprep.subr.mxu0 0.0
  %4760 = vmatpush1.msra.mxu0 0.0
  %4761 = vmatprep.subr.mxu0 0.0
  %4762 = vmatpush1.msra.mxu0 0.0
  %4763 = vmatprep.subr.mxu0 0.0
  %4764 = vmatpush1.msra.mxu0 0.0
  %4765 = vmatprep.subr.mxu0 0.0
  %4766 = vmatpush1.msra.mxu0 0.0
  %4767 = vmatprep.subr.mxu0 0.0
  %4768 = vmatpush1.msra.mxu0 0.0
  %4769 = vmatprep.subr.mxu0 0.0
  %4770 = vmatpush1.msra.mxu0 0.0
  %4771 = vmatprep.mubr.f32.mxu0 0.0
  %4772 = vmatmul.mubr.f32.gmra.mrb[0].mxu0 %v4705
  %v4773 = vpop.f32.mrb[0].mxu0
  %v4774 = vadd.f32 0.0, %v4773
  %v4775 = vpop.f32.mrb[0].mxu0
  %4776 = vdwg.mxu0
  %v4778 = vrot.slane %v4774, 4
  %v4780 = vadd.f32 %v4486, %v4778
  %v4781 = vxor.u32 %v4780, 2147483648
  %v4782 = vmul.f32 %v4781, 1.442695
  %v4783 = vpow.pop %v4782
  %v4784 = vadd.f32 %v4783, 1.0
  %v4785 = vrcp.pop %v4784
  %v4786 = vmul.f32 1.0, %v4785
  %v4787 = vtanh.pop %v4780
  %v4789 = vrot.slane %v4692, 6
  %v4791 = vmul.f32 %v4786, %v4789
  %4793 = vrot.lane.b32.xlu0 %v4787, 64
  %v4794 = vpop.permute.xlu0 %4793
  %v4796 = vmul.f32 %v4786, %v4794
  %4798 = vrot.lane.b32.xlu0 %v4796, 32
  %v4799 = vpop.permute.xlu0 %4798
  %v4801 = vadd.f32 %v4791, %v4799
  %v4802 = vtanh.pop %v4801
  %4804 = vrot.lane.b32.xlu0 %v4802, 64
  %v4805 = vpop.permute.xlu0 %4804
  %v4807 = vmul.f32 %v4786, %v4805
  %v4809 = vrot.slane %v4807, 4
  %v4811 = vadd.f32 %v4702, %v4809
  %4812 = vrot.lane.b32.xlu0 %v4809, 32
  %v4813 = vpop.permute.xlu0 %4812
  %v4814 = vsel %vm4493, %v4813, 0
  %4816 = vmatprep.subr.mxu0 0.0
  %4817 = vmatpush1.msra.mxu0 %v4489
  %4818 = vmatprep.subr.mxu0 0.0
  %4819 = vmatpush1.msra.mxu0 %v4490
  %4820 = vmatprep.subr.mxu0 0.0
  %4821 = vmatpush1.msra.mxu0 %v4491
  %4822 = vmatprep.subr.mxu0 0.0
  %4823 = vmatpush1.msra.mxu0 %v4492
  %4824 = vmatprep.subr.mxu0 0.0
  %4825 = vmatpush1.msra.mxu0 0.0
  %4826 = vmatprep.subr.mxu0 0.0
  %4827 = vmatpush1.msra.mxu0 0.0
  %4828 = vmatprep.subr.mxu0 0.0
  %4829 = vmatpush1.msra.mxu0 0.0
  %4830 = vmatprep.subr.mxu0 0.0
  %4831 = vmatpush1.msra.mxu0 0.0
  %4832 = vmatprep.subr.mxu0 0.0
  %4833 = vmatpush1.msra.mxu0 0.0
  %4834 = vmatprep.subr.mxu0 0.0
  %4835 = vmatpush1.msra.mxu0 0.0
  %4836 = vmatprep.subr.mxu0 0.0
  %4837 = vmatpush1.msra.mxu0 0.0
  %4838 = vmatprep.subr.mxu0 0.0
  %4839 = vmatpush1.msra.mxu0 0.0
  %4840 = vmatprep.subr.mxu0 0.0
  %4841 = vmatpush1.msra.mxu0 0.0
  %4842 = vmatprep.subr.mxu0 0.0
  %4843 = vmatpush1.msra.mxu0 0.0
  %4844 = vmatprep.subr.mxu0 0.0
  %4845 = vmatpush1.msra.mxu0 0.0
  %4846 = vmatprep.subr.mxu0 0.0
  %4847 = vmatpush1.msra.mxu0 0.0
  %4848 = vmatprep.subr.mxu0 0.0
  %4849 = vmatpush1.msra.mxu0 0.0
  %4850 = vmatprep.subr.mxu0 0.0
  %4851 = vmatpush1.msra.mxu0 0.0
  %4852 = vmatprep.subr.mxu0 0.0
  %4853 = vmatpush1.msra.mxu0 0.0
  %4854 = vmatprep.subr.mxu0 0.0
  %4855 = vmatpush1.msra.mxu0 0.0
  %4856 = vmatprep.subr.mxu0 0.0
  %4857 = vmatpush1.msra.mxu0 0.0
  %4858 = vmatprep.subr.mxu0 0.0
  %4859 = vmatpush1.msra.mxu0 0.0
  %4860 = vmatprep.subr.mxu0 0.0
  %4861 = vmatpush1.msra.mxu0 0.0
  %4862 = vmatprep.subr.mxu0 0.0
  %4863 = vmatpush1.msra.mxu0 0.0
  %4864 = vmatprep.subr.mxu0 0.0
  %4865 = vmatpush1.msra.mxu0 0.0
  %4866 = vmatprep.subr.mxu0 0.0
  %4867 = vmatpush1.msra.mxu0 0.0
  %4868 = vmatprep.subr.mxu0 0.0
  %4869 = vmatpush1.msra.mxu0 0.0
  %4870 = vmatprep.subr.mxu0 0.0
  %4871 = vmatpush1.msra.mxu0 0.0
  %4872 = vmatprep.subr.mxu0 0.0
  %4873 = vmatpush1.msra.mxu0 0.0
  %4874 = vmatprep.subr.mxu0 0.0
  %4875 = vmatpush1.msra.mxu0 0.0
  %4876 = vmatprep.subr.mxu0 0.0
  %4877 = vmatpush1.msra.mxu0 0.0
  %4878 = vmatprep.subr.mxu0 0.0
  %4879 = vmatpush1.msra.mxu0 0.0
  %4880 = vmatprep.mubr.f32.mxu0 0.0
  %4881 = vmatmul.mubr.f32.gmra.mrb[0].mxu0 %v4814
  %v4882 = vpop.f32.mrb[0].mxu0
  %v4883 = vadd.f32 0.0, %v4882
  %v4884 = vpop.f32.mrb[0].mxu0
  %4885 = vdwg.mxu0
  %v4887 = vrot.slane %v4883, 2
  %v4889 = vadd.f32 %v4486, %v4887
  %v4890 = vxor.u32 %v4889, 2147483648
  %v4891 = vmul.f32 %v4890, 1.442695
  %v4892 = vpow.pop %v4891
  %v4893 = vadd.f32 %v4892, 1.0
  %v4894 = vrcp.pop %v4893
  %v4895 = vmul.f32 1.0, %v4894
  %v4896 = vtanh.pop %v4889
  %v4898 = vrot.slane %v4801, 6
  %v4900 = vmul.f32 %v4895, %v4898
  %4902 = vrot.lane.b32.xlu0 %v4896, 64
  %v4903 = vpop.permute.xlu0 %4902
  %v4905 = vmul.f32 %v4895, %v4903
  %4907 = vrot.lane.b32.xlu0 %v4905, 32
  %v4908 = vpop.permute.xlu0 %4907
  %v4910 = vadd.f32 %v4900, %v4908
  %v4911 = vtanh.pop %v4910
  %4913 = vrot.lane.b32.xlu0 %v4911, 64
  %v4914 = vpop.permute.xlu0 %4913
  %v4916 = vmul.f32 %v4895, %v4914
  %v4918 = vrot.slane %v4916, 6
  %v4920 = vadd.f32 %v4811, %v4918
  %v4921 = vmul.f32 %v4920, 0.25
  %v4922 = vld [vmem:[%s12] sm:$0xff]
  %v4923 = vld [vmem:[%s12 + $0x8] sm:$0xff]
  %v4924 = vld [vmem:[%s12 + $0x10] sm:$0xff]
  %v4925 = vld [vmem:[%s12 + $0x18] sm:$0xff]
  %v4926 = vld [vmem:[%s13] sm:$0x1]
  %v4928 = vlaneseq
  %v4929 = vshrl.u32 %v4928, 7
  %v4930 = vsub.s32 0, %v4929
  %v4931 = vrot.slane %v4926, %v4930
  %4934 = vrot.lane.b32.xlu0 %v4921, 32
  %v4935 = vpop.permute.xlu0 %4934
  %v4936 = vsel %vm4493, %v4935, 0
  %4938 = vmatprep.subr.mxu0 0.0
  %4939 = vmatpush1.msra.mxu0 %v4922
  %4940 = vmatprep.subr.mxu0 0.0
  %4941 = vmatpush1.msra.mxu0 %v4923
  %4942 = vmatprep.subr.mxu0 0.0
  %4943 = vmatpush1.msra.mxu0 %v4924
  %4944 = vmatprep.subr.mxu0 0.0
  %4945 = vmatpush1.msra.mxu0 %v4925
  %4946 = vmatprep.subr.mxu0 0.0
  %4947 = vmatpush1.msra.mxu0 0.0
  %4948 = vmatprep.subr.mxu0 0.0
  %4949 = vmatpush1.msra.mxu0 0.0
  %4950 = vmatprep.subr.mxu0 0.0
  %4951 = vmatpush1.msra.mxu0 0.0
  %4952 = vmatprep.subr.mxu0 0.0
  %4953 = vmatpush1.msra.mxu0 0.0
  %4954 = vmatprep.subr.mxu0 0.0
  %4955 = vmatpush1.msra.mxu0 0.0
  %4956 = vmatprep.subr.mxu0 0.0
  %4957 = vmatpush1.msra.mxu0 0.0
  %4958 = vmatprep.subr.mxu0 0.0
  %4959 = vmatpush1.msra.mxu0 0.0
  %4960 = vmatprep.subr.mxu0 0.0
  %4961 = vmatpush1.msra.mxu0 0.0
  %4962 = vmatprep.subr.mxu0 0.0
  %4963 = vmatpush1.msra.mxu0 0.0
  %4964 = vmatprep.subr.mxu0 0.0
  %4965 = vmatpush1.msra.mxu0 0.0
  %4966 = vmatprep.subr.mxu0 0.0
  %4967 = vmatpush1.msra.mxu0 0.0
  %4968 = vmatprep.subr.mxu0 0.0
  %4969 = vmatpush1.msra.mxu0 0.0
  %4970 = vmatprep.subr.mxu0 0.0
  %4971 = vmatpush1.msra.mxu0 0.0
  %4972 = vmatprep.subr.mxu0 0.0
  %4973 = vmatpush1.msra.mxu0 0.0
  %4974 = vmatprep.subr.mxu0 0.0
  %4975 = vmatpush1.msra.mxu0 0.0
  %4976 = vmatprep.subr.mxu0 0.0
  %4977 = vmatpush1.msra.mxu0 0.0
  %4978 = vmatprep.subr.mxu0 0.0
  %4979 = vmatpush1.msra.mxu0 0.0
  %4980 = vmatprep.subr.mxu0 0.0
  %4981 = vmatpush1.msra.mxu0 0.0
  %4982 = vmatprep.subr.mxu0 0.0
  %4983 = vmatpush1.msra.mxu0 0.0
  %4984 = vmatprep.subr.mxu0 0.0
  %4985 = vmatpush1.msra.mxu0 0.0
  %4986 = vmatprep.subr.mxu0 0.0
  %4987 = vmatpush1.msra.mxu0 0.0
  %4988 = vmatprep.subr.mxu0 0.0
  %4989 = vmatpush1.msra.mxu0 0.0
  %4990 = vmatprep.subr.mxu0 0.0
  %4991 = vmatpush1.msra.mxu0 0.0
  %4992 = vmatprep.subr.mxu0 0.0
  %4993 = vmatpush1.msra.mxu0 0.0
  %4994 = vmatprep.subr.mxu0 0.0
  %4995 = vmatpush1.msra.mxu0 0.0
  %4996 = vmatprep.subr.mxu0 0.0
  %4997 = vmatpush1.msra.mxu0 0.0
  %4998 = vmatprep.subr.mxu0 0.0
  %4999 = vmatpush1.msra.mxu0 0.0
  %5000 = vmatprep.subr.mxu0 0.0
  %5001 = vmatpush1.msra.mxu0 0.0
  %5002 = vmatprep.mubr.f32.mxu0 0.0
  %5003 = vmatmul.mubr.f32.gmra.mrb[0].mxu0 %v4936
  %v5004 = vpop.f32.mrb[0].mxu0
  %v5005 = vadd.f32 %v4931, %v5004
  %v5006 = vpop.f32.mrb[0].mxu0
  %5007 = vdwg.mxu0
  %vm5008 = vcmask 25600
  %5009 = vst.msk [vmem:[%s14] sm:$0x3] %vm5008, %v5005
  // Predicated region
  $region58: #{cnn_ftlstm_forward.1} parent=0 // pred_check
    _
  $region59: #{cnn_ftlstm_forward.1} parent=0 // pred_check_branch
    %5011 = sbr.rel (0) target = $region61
  $region60: #{cnn_ftlstm_forward.1} parent=0 // pred_region
    _
  $region61: #{cnn_ftlstm_forward.1} parent=0 // pred_fallthru
    _
  // Predicated region
  $region62: #{cnn_ftlstm_forward.1} parent=0 // pred_check
    _
  $region63: #{cnn_ftlstm_forward.1} parent=0 // pred_check_branch
    %5013 = sbr.rel (0) target = $region65
  $region64: #{cnn_ftlstm_forward.1} parent=0 // pred_region
    _
  $region65: #{cnn_ftlstm_forward.1} parent=0 // pred_fallthru
    _

</llo_original>
